<compile_context>
chip_gen: v5e
topology: v5e:2x2
jax: 0.10.0
libtpu: 0.0.40
codegen_flags: <defaults>
</compile_context>

<pallas_src>
import functools

import jax
import jax.numpy as jnp
from jax.experimental import pallas as pl
from jax.experimental.pallas import tpu as pltpu


def _vmem_limit(bytes_needed):
    # Generous headroom over the double-buffered pipeline blocks + temporaries,
    # clamped to stay well under physical VMEM on every generation.
    return int(min(max(4 * bytes_needed + (4 << 20), 32 << 20), 100 << 20))


# -----------------------------------------------------------------------------
# Kernel 1: fused cv1 (1x1+BN+SiLU) -> cv2 (3x3+BN+SiLU) -> global avg pool ->
#           ECA 1-D channel conv (banded matmul) -> sigmoid
# -----------------------------------------------------------------------------
def _cv1_cv2_pool_attn_kernel(xf_ref, w1_ref, b1_ref, pmask_ref, w2_ref, b2_ref,
                              omask_ref, band_ref, x1_ref, attn_ref, *, H, W):
    Wp = W + 2
    rows_out = H * Wp
    c1 = w1_ref.shape[-1]
    cout = x1_ref.shape[-1]
    lane = attn_ref.shape[-1]

    # cv1: 1x1 conv + folded BN + SiLU, entirely in VMEM (no HBM round trip).
    xf = xf_ref[0]                                               # (rows_in, Cin) bf16
    y1 = jnp.dot(xf, w1_ref[...], preferred_element_type=jnp.float32) + b1_ref[...]
    y1 = y1 * jax.nn.sigmoid(y1)                                 # SiLU
    # Zero-pad positions must stay exactly zero for the 3x3 conv; pmask is a
    # precomputed (rows_in, 1) f32 constant (no per-step iota/mod/select).
    y1 = (y1 * pmask_ref[...]).astype(jnp.bfloat16)

    # cv2: 3x3 conv + folded BN as 9 shifted dots on the halo'd tile; the bias
    # is folded into the first accumulate (no separate full-tile add pass).
    acc = None
    for t in range(9):
        dh, dw = divmod(t, 3)
        off = dh * Wp + dw
        d = jnp.dot(y1[off:off + rows_out, :], w2_ref[t * c1:(t + 1) * c1, :],
                    preferred_element_type=jnp.float32)
        acc = (d + b2_ref[...]) if acc is None else (acc + d)

    y = acc * jax.nn.sigmoid(acc)                                # SiLU
    y = y * omask_ref[...]                                       # zero wrap-around junk cols
    x1_ref[...] = y.reshape(1, rows_out, cout).astype(x1_ref.dtype)

    # Global average pool over the valid HxW outputs + ECA attention.  The band
    # matrix is already column-replicated to `lane` lanes, so sigmoid(pool@band)
    # comes out lane-tiled for the lane-dense rescale kernel.
    pool = jnp.sum(y, axis=0, keepdims=True) * (1.0 / (H * W))   # (1, cout)
    attn = jax.nn.sigmoid(jnp.dot(pool, band_ref[...],
                                  preferred_element_type=jnp.float32))
    attn_ref[...] = attn.reshape(1, 1, lane)


def cv1_cv2_pool_attn(xf, w1, b1, pmask, w2f, b2, omask, band_lane, *, H, W):
    """xf:(N,(H+3)*(W+2),Cin) bf16 zero-padded flat image; returns
    x1_wide:(N,H*(W+2),Cout) bf16 (junk cols zeroed) and attn:(N,1,lane) f32."""
    N, rows_in, cin = xf.shape
    c1 = w1.shape[-1]
    cout = w2f.shape[-1]
    Wp = W + 2
    rows_out = H * Wp
    lane = band_lane.shape[-1]

    blk = rows_in * cin * 2 + rows_out * cout * 2                # pipelined bf16 blocks
    tmp = rows_in * c1 * 6 + 2 * rows_out * cout * 4             # in-kernel temporaries
    limit = _vmem_limit(2 * blk + tmp)

    return pl.pallas_call(
        functools.partial(_cv1_cv2_pool_attn_kernel, H=H, W=W),
        out_shape=(
            jax.ShapeDtypeStruct((N, rows_out, cout), jnp.bfloat16),
            jax.ShapeDtypeStruct((N, 1, lane), jnp.float32),
        ),
        grid_spec=pltpu.PrefetchScalarGridSpec(
            num_scalar_prefetch=0,
            grid=(N,),
            in_specs=[
                pl.BlockSpec((1, rows_in, cin), lambda n: (n, 0, 0)),
                pl.BlockSpec((cin, c1), lambda n: (0, 0)),
                pl.BlockSpec((1, c1), lambda n: (0, 0)),
                pl.BlockSpec((rows_in, 1), lambda n: (0, 0)),
                pl.BlockSpec((9 * c1, cout), lambda n: (0, 0)),
                pl.BlockSpec((1, cout), lambda n: (0, 0)),
                pl.BlockSpec((rows_out, 1), lambda n: (0, 0)),
                pl.BlockSpec((cout, lane), lambda n: (0, 0)),
            ],
            out_specs=(
                pl.BlockSpec((1, rows_out, cout), lambda n: (n, 0, 0)),
                pl.BlockSpec((1, 1, lane), lambda n: (n, 0, 0)),
            ),
        ),
        compiler_params=pltpu.CompilerParams(
            dimension_semantics=("parallel",),
            vmem_limit_bytes=limit,
        ),
    )(xf, w1, b1, pmask, w2f, b2, omask, band_lane)


# -----------------------------------------------------------------------------
# Kernel 2: ECA rescale (+ residual), lane-dense bf16, row-tiled
# -----------------------------------------------------------------------------
def _eca_scale_kernel(x1_ref, attn_ref, o_ref):
    a = attn_ref[...].astype(x1_ref.dtype)                       # (1,1,LANE) bf16
    o_ref[...] = x1_ref[...] * a


def _eca_scale_add_kernel(x1_ref, attn_ref, xr_ref, o_ref):
    a = attn_ref[...].astype(x1_ref.dtype)
    o_ref[...] = x1_ref[...] * a + xr_ref[...]


def eca_scale(x1, attn, x_res=None, *, tl_max=4096):
    """out = x1 * attn (+ x_res).  x1/x_res/out are bf16 in a lane-dense
    (N, L, 128) view when packable; the L axis is row-tiled."""
    N, L, lane = x1.shape
    tl = L if L <= tl_max else tl_max                            # tl_max is a mult of 8
    grid = (N, pl.cdiv(L, tl))

    in_specs = [
        pl.BlockSpec((1, tl, lane), lambda n, l: (n, l, 0)),
        pl.BlockSpec((1, 1, lane), lambda n, l: (n, 0, 0)),
    ]
    args = [x1, attn]
    kernel = _eca_scale_kernel
    if x_res is not None:                                        # only DMA x when add=True
        in_specs.append(pl.BlockSpec((1, tl, lane), lambda n, l: (n, l, 0)))
        args.append(x_res)
        kernel = _eca_scale_add_kernel

    limit = _vmem_limit(2 * (len(args) + 1) * tl * lane * 2)

    return pl.pallas_call(
        kernel,
        out_shape=jax.ShapeDtypeStruct((N, L, lane), jnp.bfloat16),
        grid_spec=pltpu.PrefetchScalarGridSpec(
            num_scalar_prefetch=0,
            grid=grid,
            in_specs=in_specs,
            out_specs=pl.BlockSpec((1, tl, lane), lambda n, l: (n, l, 0)),
        ),
        compiler_params=pltpu.CompilerParams(
            dimension_semantics=("parallel", "parallel"),
            vmem_limit_bytes=limit,
        ),
    )(*args)


# -----------------------------------------------------------------------------
# Parameter construction (deterministic, BN folded into weights/bias)
# -----------------------------------------------------------------------------
_EPS = 1e-5


def _init_conv_bn(key, cin, cout, k):
    """YOLO Conv: Conv2d(bias=False) + BatchNorm2d (eval), BN folded in.
    Returns weight (k, k, cin, cout) and bias (cout,)."""
    k1, k2, k3, k4, k5 = jax.random.split(key, 5)
    w = jax.random.normal(k1, (cout, cin, k, k), jnp.float32) * 0.1
    gamma = jax.random.uniform(k2, (cout,), minval=0.5, maxval=1.5)
    beta = jax.random.normal(k3, (cout,)) * 0.1
    mean = jax.random.normal(k4, (cout,)) * 0.1
    var = jax.random.uniform(k5, (cout,), minval=0.5, maxval=1.5)
    scale = gamma / jnp.sqrt(var + _EPS)
    w_f = jnp.transpose(w, (2, 3, 1, 0)) * scale                 # (kh,kw,cin,cout)
    b_f = beta - mean * scale
    return w_f, b_f


def _eca_band_matrix(w_k, c):
    """Conv1d(1,1,k, pad=(k-1)//2, bias=False) over the channel axis as a banded
    (C, C) matrix so that attn = sigmoid(pooled @ band)."""
    k = w_k.shape[0]
    pad = (k - 1) // 2
    idx = jnp.arange(c)
    diff = idx[:, None] - idx[None, :]                           # i - j
    tap = jnp.clip(diff + pad, 0, k - 1)
    return jnp.where(jnp.abs(diff) <= pad, w_k[tap], 0.0).astype(jnp.float32)


def make_eca_bottleneck_params(key, cv1in, cv1out, cv2out, shortcut=True, k_size=3):
    k1, k2, k3 = jax.random.split(key, 3)
    w1, b1 = _init_conv_bn(k1, cv1in, cv1out, 1)
    w2, b2 = _init_conv_bn(k2, cv1out, cv2out, 3)
    w_eca = jax.random.normal(k3, (k_size,), jnp.float32) * 0.5
    return {
        "cv1_w": w1.reshape(cv1in, cv1out).astype(jnp.bfloat16),
        "cv1_b": b1.reshape(1, cv1out),
        "cv2_wf": w2.reshape(9 * cv1out, cv2out).astype(jnp.bfloat16),
        "cv2_b": b2.reshape(1, cv2out),
        "eca_band": _eca_band_matrix(w_eca, cv2out),
        "add": bool(shortcut and cv1in == cv2out),
    }


# -----------------------------------------------------------------------------
# Forward (glue: transpose / pad / flatten only; all compute in Pallas kernels)
# -----------------------------------------------------------------------------
def eca_bottleneck_forward(x_nchw, params):
    # Single NCHW->NHWC transpose, straight to bf16 (no f32 NHWC materialization).
    x = jnp.transpose(x_nchw, (0, 2, 3, 1)).astype(jnp.bfloat16)
    N, H, W, cin = x.shape
    Wp = W + 2
    rows_out = H * Wp
    cout = params["cv2_b"].shape[-1]

    # Lane-dense packing of the ECA tail: view (R, C) as (R*C/128, 128) so the
    # elementwise rescale runs on full 128-lane vregs (unmasked vld/vst).
    lane_dense = (128 % cout == 0) and ((rows_out * cout) % 128 == 0)
    reps = (128 // cout) if lane_dense else 1
    band_lane = jnp.tile(params["eca_band"], (1, reps))          # (cout, cout*reps)

    # Zero-pad: 1 top, 2 bottom, 1 left/right (extra bottom row keeps every
    # shifted flat slice in-bounds; it only ever feeds the junk columns).
    xf = jnp.pad(x, ((0, 0), (1, 2), (1, 1), (0, 0))).reshape(N, (H + 3) * Wp, cin)

    # Compile-time masks (no per-grid-step iota/mod/select inside the kernel).
    pr = jnp.arange(H + 3)
    pc = jnp.arange(Wp)
    pvalid = ((pr >= 1) & (pr <= H))[:, None] & ((pc >= 1) & (pc <= W))[None, :]
    pmask = pvalid.astype(jnp.float32).reshape((H + 3) * Wp, 1)
    omask = jnp.broadcast_to(pc < W, (H, Wp)).astype(jnp.float32).reshape(rows_out, 1)

    # Fused cv1 -> cv2 -> global avg pool -> ECA attention: one HBM write of x1.
    x1_wide, attn = cv1_cv2_pool_attn(
        xf, params["cv1_w"], params["cv1_b"], pmask,
        params["cv2_wf"], params["cv2_b"], omask, band_lane, H=H, W=W)

    if lane_dense:
        L = rows_out * cout // 128
        x1_v = x1_wide.reshape(N, L, 128)
    else:
        x1_v = x1_wide

    x_res = None
    if params["add"]:
        xr = jnp.pad(x, ((0, 0), (0, 0), (0, 2), (0, 0))).reshape(N, rows_out, cin)
        x_res = xr.reshape(N, L, 128) if lane_dense else xr

    out_v = eca_scale(x1_v, attn, x_res)                         # bf16 out

    # Drop the 2 junk columns per row and return NCHW f32 (slice + transpose +
    # upcast fuse into one XLA pass over the bf16 result).
    out = out_v.reshape(N, H, Wp, cout)[:, :, :W, :]
    return jnp.transpose(out, (0, 3, 1, 2)).astype(jnp.float32)


# -----------------------------------------------------------------------------
if __name__ == "__main__":
    # ECABottleneckprune(cv1in=16, cv1out=8, cv2out=16, shortcut=True)
    cv1in, cv1out, cv2out = 16, 8, 16            # shortcut active (cv1in == cv2out)
    N, H, W = 2, 16, 16

    kp, kx = jax.random.split(jax.random.PRNGKey(0))
    params = make_eca_bottleneck_params(kp, cv1in, cv1out, cv2out, shortcut=True)
    x = jax.random.normal(kx, (N, cv1in, H, W), jnp.float32)

    out = jax.jit(lambda a: eca_bottleneck_forward(a, params))(x)
    jax.block_until_ready(out)
    assert out.shape == (N, cv2out, H, W)
    assert bool(jnp.all(jnp.isfinite(out)))
    print("KERNEL_OK")
</pallas_src>

<mosaic_0001>
module attributes {stable_mosaic.version = 11 : i64} {
  func.func @_eca_scale_add_kernel(%arg0: i32, %arg1: i32, %arg2: memref<1x36x128xbf16, #tpu.memory_space<vmem>>, %arg3: memref<1x1x128xf32, #tpu.memory_space<vmem>>, %arg4: memref<1x36x128xbf16, #tpu.memory_space<vmem>>, %arg5: memref<1x36x128xbf16, #tpu.memory_space<vmem>>) attributes {dimension_semantics = [#tpu.dimension_semantics<parallel>, #tpu.dimension_semantics<parallel>], iteration_bounds = array<i64: 2, 1>, scalar_prefetch = 0 : i64, scratch_operands = 0 : i64, tpu.core_type = #tpu.core_type<tc>, window_params = [{transform_indices = @transform_0, window_bounds = array<i64: 1, 36, 128>}, {transform_indices = @transform_1, window_bounds = array<i64: 1, 1, 128>}, {transform_indices = @transform_2, window_bounds = array<i64: 1, 36, 128>}, {transform_indices = @transform_3, window_bounds = array<i64: 1, 36, 128>}]} {
    %c0 = arith.constant 0 : index
    %c0_0 = arith.constant 0 : index
    %c0_1 = arith.constant 0 : index
    %0 = vector.load %arg3[%c0, %c0_0, %c0_1] : memref<1x1x128xf32, #tpu.memory_space<vmem>>, vector<1x1x128xf32>
    %1 = arith.truncf %0 : vector<1x1x128xf32> to vector<1x1x128xbf16>
    %c0_2 = arith.constant 0 : index
    %c0_3 = arith.constant 0 : index
    %c0_4 = arith.constant 0 : index
    %2 = vector.load %arg2[%c0_2, %c0_3, %c0_4] : memref<1x36x128xbf16, #tpu.memory_space<vmem>>, vector<1x36x128xbf16>
    %3 = vector.broadcast %1 : vector<1x1x128xbf16> to vector<1x36x128xbf16>
    %4 = arith.mulf %2, %3 : vector<1x36x128xbf16>
    %c0_5 = arith.constant 0 : index
    %c0_6 = arith.constant 0 : index
    %c0_7 = arith.constant 0 : index
    %5 = vector.load %arg4[%c0_5, %c0_6, %c0_7] : memref<1x36x128xbf16, #tpu.memory_space<vmem>>, vector<1x36x128xbf16>
    %6 = arith.addf %4, %5 : vector<1x36x128xbf16>
    %c0_8 = arith.constant 0 : index
    %c0_9 = arith.constant 0 : index
    %c0_10 = arith.constant 0 : index
    %7 = vector.load %arg5[%c0_8, %c0_9, %c0_10] : memref<1x36x128xbf16, #tpu.memory_space<vmem>>, vector<1x36x128xbf16>
    tpu.vector_store %arg5[%c0_8, %c0_9, %c0_10], %6 {strides = array<i32>} : memref<1x36x128xbf16, #tpu.memory_space<vmem>>, vector<1x36x128xbf16>,
    return
  }
  func.func @transform_0(%arg0: i32, %arg1: i32) -> (i32, i32, i32) {
    %c0_i32 = arith.constant 0 : i32
    %c0_i32_0 = arith.constant 0 : i32
    return %arg0, %arg1, %c0_i32 : i32, i32, i32
  }
  func.func @transform_1(%arg0: i32, %arg1: i32) -> (i32, i32, i32) {
    %c0_i32 = arith.constant 0 : i32
    %c0_i32_0 = arith.constant 0 : i32
    %c0_i32_1 = arith.constant 0 : i32
    return %arg0, %c0_i32, %c0_i32_0 : i32, i32, i32
  }
  func.func @transform_2(%arg0: i32, %arg1: i32) -> (i32, i32, i32) {
    %c0_i32 = arith.constant 0 : i32
    %c0_i32_0 = arith.constant 0 : i32
    return %arg0, %arg1, %c0_i32 : i32, i32, i32
  }
  func.func @transform_3(%arg0: i32, %arg1: i32) -> (i32, i32, i32) {
    %c0_i32 = arith.constant 0 : i32
    %c0_i32_0 = arith.constant 0 : i32
    return %arg0, %arg1, %c0_i32 : i32, i32, i32
  }
}

module attributes {stable_mosaic.version = 11 : i64} {
  func.func @_cv1_cv2_pool_attn_kernel(%arg0: i32, %arg1: memref<1x342x16xbf16, #tpu.memory_space<vmem>>, %arg2: memref<16x8xbf16, #tpu.memory_space<vmem>>, %arg3: memref<1x8xf32, #tpu.memory_space<vmem>>, %arg4: memref<342x1xf32, #tpu.memory_space<vmem>>, %arg5: memref<72x16xbf16, #tpu.memory_space<vmem>>, %arg6: memref<1x16xf32, #tpu.memory_space<vmem>>, %arg7: memref<288x1xf32, #tpu.memory_space<vmem>>, %arg8: memref<16x128xf32, #tpu.memory_space<vmem>>, %arg9: memref<1x288x16xbf16, #tpu.memory_space<vmem>>, %arg10: memref<1x1x128xf32, #tpu.memory_space<vmem>>) attributes {dimension_semantics = [#tpu.dimension_semantics<parallel>], iteration_bounds = array<i64: 2>, scalar_prefetch = 0 : i64, scratch_operands = 0 : i64, tpu.core_type = #tpu.core_type<tc>, window_params = [{transform_indices = @transform_0, window_bounds = array<i64: 1, 342, 16>}, {pipeline_mode = #tpu.pipeline_mode<synchronous>, transform_indices = @transform_1, window_bounds = array<i64: 16, 8>}, {pipeline_mode = #tpu.pipeline_mode<synchronous>, transform_indices = @transform_2, window_bounds = array<i64: 1, 8>}, {pipeline_mode = #tpu.pipeline_mode<synchronous>, transform_indices = @transform_3, window_bounds = array<i64: 342, 1>}, {pipeline_mode = #tpu.pipeline_mode<synchronous>, transform_indices = @transform_4, window_bounds = array<i64: 72, 16>}, {pipeline_mode = #tpu.pipeline_mode<synchronous>, transform_indices = @transform_5, window_bounds = array<i64: 1, 16>}, {pipeline_mode = #tpu.pipeline_mode<synchronous>, transform_indices = @transform_6, window_bounds = array<i64: 288, 1>}, {pipeline_mode = #tpu.pipeline_mode<synchronous>, transform_indices = @transform_7, window_bounds = array<i64: 16, 128>}, {transform_indices = @transform_8, window_bounds = array<i64: 1, 288, 16>}, {transform_indices = @transform_9, window_bounds = array<i64: 1, 1, 128>}]} {
    %c0 = arith.constant 0 : index
    %c0_0 = arith.constant 0 : index
    %c0_1 = arith.constant 0 : index
    %0 = vector.load %arg1[%c0, %c0_0, %c0_1] : memref<1x342x16xbf16, #tpu.memory_space<vmem>>, vector<1x342x16xbf16>
    %1 = vector.shape_cast %0 : vector<1x342x16xbf16> to vector<342x16xbf16>
    %c0_2 = arith.constant 0 : index
    %c0_3 = arith.constant 0 : index
    %2 = vector.load %arg2[%c0_2, %c0_3] : memref<16x8xbf16, #tpu.memory_space<vmem>>, vector<16x8xbf16>
    %cst = arith.constant dense<0.000000e+00> : vector<342x8xf32>
    %3 = tpu.matmul %1, %2, %cst {dimension_numbers = #tpu.dot_dimension_numbers<[1], [0], [0], [1], [0, 0, 1, 1], [], []>} : vector<342x16xbf16>, vector<16x8xbf16>, vector<342x8xf32> -> vector<342x8xf32>
    %c0_4 = arith.constant 0 : index
    %c0_5 = arith.constant 0 : index
    %4 = vector.load %arg3[%c0_4, %c0_5] : memref<1x8xf32, #tpu.memory_space<vmem>>, vector<1x8xf32>
    %5 = vector.broadcast %4 : vector<1x8xf32> to vector<342x8xf32>
    %6 = arith.addf %3, %5 : vector<342x8xf32>
    %7 = arith.negf %6 : vector<342x8xf32>
    %8 = math.exp %7 : vector<342x8xf32>
    %cst_6 = arith.constant 1.000000e+00 : f32
    %9 = vector.broadcast %cst_6 : f32 to vector<342x8xf32>
    %10 = arith.addf %9, %8 : vector<342x8xf32>
    %11 = arith.divf %9, %10 : vector<342x8xf32>
    %12 = arith.mulf %6, %11 : vector<342x8xf32>
    %c0_7 = arith.constant 0 : index
    %c0_8 = arith.constant 0 : index
    %13 = vector.load %arg4[%c0_7, %c0_8] : memref<342x1xf32, #tpu.memory_space<vmem>>, vector<342x1xf32>
    %14 = vector.broadcast %13 : vector<342x1xf32> to vector<342x8xf32>
    %15 = arith.mulf %12, %14 : vector<342x8xf32>
    %16 = arith.truncf %15 : vector<342x8xf32> to vector<342x8xbf16>
    %17 = vector.extract_strided_slice %16 {offsets = [0, 0], sizes = [288, 8], strides = [1, 1]} : vector<342x8xbf16> to vector<288x8xbf16>
    %c0_9 = arith.constant 0 : index
    %c0_10 = arith.constant 0 : index
    %18 = vector.load %arg5[%c0_9, %c0_10] : memref<72x16xbf16, #tpu.memory_space<vmem>>, vector<8x16xbf16>
    %cst_11 = arith.constant dense<0.000000e+00> : vector<288x16xf32>
    %19 = tpu.matmul %17, %18, %cst_11 {dimension_numbers = #tpu.dot_dimension_numbers<[1], [0], [0], [1], [0, 0, 1, 1], [], []>} : vector<288x8xbf16>, vector<8x16xbf16>, vector<288x16xf32> -> vector<288x16xf32>
    %c0_12 = arith.constant 0 : index
    %c0_13 = arith.constant 0 : index
    %20 = vector.load %arg6[%c0_12, %c0_13] : memref<1x16xf32, #tpu.memory_space<vmem>>, vector<1x16xf32>
    %21 = vector.broadcast %20 : vector<1x16xf32> to vector<288x16xf32>
    %22 = arith.addf %19, %21 : vector<288x16xf32>
    %23 = vector.extract_strided_slice %16 {offsets = [1, 0], sizes = [288, 8], strides = [1, 1]} : vector<342x8xbf16> to vector<288x8xbf16>
    %c8 = arith.constant 8 : index
    %c0_14 = arith.constant 0 : index
    %24 = vector.load %arg5[%c8, %c0_14] : memref<72x16xbf16, #tpu.memory_space<vmem>>, vector<8x16xbf16>
    %cst_15 = arith.constant dense<0.000000e+00> : vector<288x16xf32>
    %25 = tpu.matmul %23, %24, %cst_15 {dimension_numbers = #tpu.dot_dimension_numbers<[1], [0], [0], [1], [0, 0, 1, 1], [], []>} : vector<288x8xbf16>, vector<8x16xbf16>, vector<288x16xf32> -> vector<288x16xf32>
    %26 = arith.addf %22, %25 : vector<288x16xf32>
    %27 = vector.extract_strided_slice %16 {offsets = [2, 0], sizes = [288, 8], strides = [1, 1]} : vector<342x8xbf16> to vector<288x8xbf16>
    %c16 = arith.constant 16 : index
    %c0_16 = arith.constant 0 : index
    %28 = vector.load %arg5[%c16, %c0_16] : memref<72x16xbf16, #tpu.memory_space<vmem>>, vector<8x16xbf16>
    %cst_17 = arith.constant dense<0.000000e+00> : vector<288x16xf32>
    %29 = tpu.matmul %27, %28, %cst_17 {dimension_numbers = #tpu.dot_dimension_numbers<[1], [0], [0], [1], [0, 0, 1, 1], [], []>} : vector<288x8xbf16>, vector<8x16xbf16>, vector<288x16xf32> -> vector<288x16xf32>
    %30 = arith.addf %26, %29 : vector<288x16xf32>
    %31 = vector.extract_strided_slice %16 {offsets = [18, 0], sizes = [288, 8], strides = [1, 1]} : vector<342x8xbf16> to vector<288x8xbf16>
    %c24 = arith.constant 24 : index
    %c0_18 = arith.constant 0 : index
    %32 = vector.load %arg5[%c24, %c0_18] : memref<72x16xbf16, #tpu.memory_space<vmem>>, vector<8x16xbf16>
    %cst_19 = arith.constant dense<0.000000e+00> : vector<288x16xf32>
    %33 = tpu.matmul %31, %32, %cst_19 {dimension_numbers = #tpu.dot_dimension_numbers<[1], [0], [0], [1], [0, 0, 1, 1], [], []>} : vector<288x8xbf16>, vector<8x16xbf16>, vector<288x16xf32> -> vector<288x16xf32>
    %34 = arith.addf %30, %33 : vector<288x16xf32>
    %35 = vector.extract_strided_slice %16 {offsets = [19, 0], sizes = [288, 8], strides = [1, 1]} : vector<342x8xbf16> to vector<288x8xbf16>
    %c32 = arith.constant 32 : index
    %c0_20 = arith.constant 0 : index
    %36 = vector.load %arg5[%c32, %c0_20] : memref<72x16xbf16, #tpu.memory_space<vmem>>, vector<8x16xbf16>
    %cst_21 = arith.constant dense<0.000000e+00> : vector<288x16xf32>
    %37 = tpu.matmul %35, %36, %cst_21 {dimension_numbers = #tpu.dot_dimension_numbers<[1], [0], [0], [1], [0, 0, 1, 1], [], []>} : vector<288x8xbf16>, vector<8x16xbf16>, vector<288x16xf32> -> vector<288x16xf32>
    %38 = arith.addf %34, %37 : vector<288x16xf32>
    %39 = vector.extract_strided_slice %16 {offsets = [20, 0], sizes = [288, 8], strides = [1, 1]} : vector<342x8xbf16> to vector<288x8xbf16>
    %c40 = arith.constant 40 : index
    %c0_22 = arith.constant 0 : index
    %40 = vector.load %arg5[%c40, %c0_22] : memref<72x16xbf16, #tpu.memory_space<vmem>>, vector<8x16xbf16>
    %cst_23 = arith.constant dense<0.000000e+00> : vector<288x16xf32>
    %41 = tpu.matmul %39, %40, %cst_23 {dimension_numbers = #tpu.dot_dimension_numbers<[1], [0], [0], [1], [0, 0, 1, 1], [], []>} : vector<288x8xbf16>, vector<8x16xbf16>, vector<288x16xf32> -> vector<288x16xf32>
    %42 = arith.addf %38, %41 : vector<288x16xf32>
    %43 = vector.extract_strided_slice %16 {offsets = [36, 0], sizes = [288, 8], strides = [1, 1]} : vector<342x8xbf16> to vector<288x8xbf16>
    %c48 = arith.constant 48 : index
    %c0_24 = arith.constant 0 : index
    %44 = vector.load %arg5[%c48, %c0_24] : memref<72x16xbf16, #tpu.memory_space<vmem>>, vector<8x16xbf16>
    %cst_25 = arith.constant dense<0.000000e+00> : vector<288x16xf32>
    %45 = tpu.matmul %43, %44, %cst_25 {dimension_numbers = #tpu.dot_dimension_numbers<[1], [0], [0], [1], [0, 0, 1, 1], [], []>} : vector<288x8xbf16>, vector<8x16xbf16>, vector<288x16xf32> -> vector<288x16xf32>
    %46 = arith.addf %42, %45 : vector<288x16xf32>
    %47 = vector.extract_strided_slice %16 {offsets = [37, 0], sizes = [288, 8], strides = [1, 1]} : vector<342x8xbf16> to vector<288x8xbf16>
    %c56 = arith.constant 56 : index
    %c0_26 = arith.constant 0 : index
    %48 = vector.load %arg5[%c56, %c0_26] : memref<72x16xbf16, #tpu.memory_space<vmem>>, vector<8x16xbf16>
    %cst_27 = arith.constant dense<0.000000e+00> : vector<288x16xf32>
    %49 = tpu.matmul %47, %48, %cst_27 {dimension_numbers = #tpu.dot_dimension_numbers<[1], [0], [0], [1], [0, 0, 1, 1], [], []>} : vector<288x8xbf16>, vector<8x16xbf16>, vector<288x16xf32> -> vector<288x16xf32>
    %50 = arith.addf %46, %49 : vector<288x16xf32>
    %51 = vector.extract_strided_slice %16 {offsets = [38, 0], sizes = [288, 8], strides = [1, 1]} : vector<342x8xbf16> to vector<288x8xbf16>
    %c64 = arith.constant 64 : index
    %c0_28 = arith.constant 0 : index
    %52 = vector.load %arg5[%c64, %c0_28] : memref<72x16xbf16, #tpu.memory_space<vmem>>, vector<8x16xbf16>
    %cst_29 = arith.constant dense<0.000000e+00> : vector<288x16xf32>
    %53 = tpu.matmul %51, %52, %cst_29 {dimension_numbers = #tpu.dot_dimension_numbers<[1], [0], [0], [1], [0, 0, 1, 1], [], []>} : vector<288x8xbf16>, vector<8x16xbf16>, vector<288x16xf32> -> vector<288x16xf32>
    %54 = arith.addf %50, %53 : vector<288x16xf32>
    %55 = arith.negf %54 : vector<288x16xf32>
    %56 = math.exp %55 : vector<288x16xf32>
    %cst_30 = arith.constant 1.000000e+00 : f32
    %57 = vector.broadcast %cst_30 : f32 to vector<288x16xf32>
    %58 = arith.addf %57, %56 : vector<288x16xf32>
    %59 = arith.divf %57, %58 : vector<288x16xf32>
    %60 = arith.mulf %54, %59 : vector<288x16xf32>
    %c0_31 = arith.constant 0 : index
    %c0_32 = arith.constant 0 : index
    %61 = vector.load %arg7[%c0_31, %c0_32] : memref<288x1xf32, #tpu.memory_space<vmem>>, vector<288x1xf32>
    %62 = vector.broadcast %61 : vector<288x1xf32> to vector<288x16xf32>
    %63 = arith.mulf %60, %62 : vector<288x16xf32>
    %64 = vector.shape_cast %63 : vector<288x16xf32> to vector<1x288x16xf32>
    %65 = arith.truncf %64 : vector<1x288x16xf32> to vector<1x288x16xbf16>
    %c0_33 = arith.constant 0 : index
    %c0_34 = arith.constant 0 : index
    %c0_35 = arith.constant 0 : index
    %66 = vector.load %arg9[%c0_33, %c0_34, %c0_35] : memref<1x288x16xbf16, #tpu.memory_space<vmem>>, vector<1x288x16xbf16>
    tpu.vector_store %arg9[%c0_33, %c0_34, %c0_35], %65 {strides = array<i32>} : memref<1x288x16xbf16, #tpu.memory_space<vmem>>, vector<1x288x16xbf16>,
    %cst_36 = arith.constant dense<0.000000e+00> : vector<16xf32>
    %67 = vector.multi_reduction <add>, %63, %cst_36 [0] : vector<288x16xf32> to vector<16xf32>
    %68 = vector.shape_cast %67 : vector<16xf32> to vector<1x16xf32>
    %cst_37 = arith.constant 3.906250e-03 : f32
    %69 = vector.broadcast %cst_37 : f32 to vector<1x16xf32>
    %70 = arith.mulf %68, %69 : vector<1x16xf32>
    %c0_38 = arith.constant 0 : index
    %c0_39 = arith.constant 0 : index
    %71 = vector.load %arg8[%c0_38, %c0_39] : memref<16x128xf32, #tpu.memory_space<vmem>>, vector<16x128xf32>
    %cst_40 = arith.constant dense<0.000000e+00> : vector<1x128xf32>
    %72 = tpu.matmul %70, %71, %cst_40 {dimension_numbers = #tpu.dot_dimension_numbers<[1], [0], [0], [1], [0, 0, 1, 1], [], []>} : vector<1x16xf32>, vector<16x128xf32>, vector<1x128xf32> -> vector<1x128xf32>
    %73 = arith.negf %72 : vector<1x128xf32>
    %74 = math.exp %73 : vector<1x128xf32>
    %cst_41 = arith.constant 1.000000e+00 : f32
    %75 = vector.broadcast %cst_41 : f32 to vector<1x128xf32>
    %76 = arith.addf %75, %74 : vector<1x128xf32>
    %77 = arith.divf %75, %76 : vector<1x128xf32>
    %78 = vector.shape_cast %77 : vector<1x128xf32> to vector<1x1x128xf32>
    %c0_42 = arith.constant 0 : index
    %c0_43 = arith.constant 0 : index
    %c0_44 = arith.constant 0 : index
    %79 = vector.load %arg10[%c0_42, %c0_43, %c0_44] : memref<1x1x128xf32, #tpu.memory_space<vmem>>, vector<1x1x128xf32>
    tpu.vector_store %arg10[%c0_42, %c0_43, %c0_44], %78 {strides = array<i32>} : memref<1x1x128xf32, #tpu.memory_space<vmem>>, vector<1x1x128xf32>,
    return
  }
  func.func @transform_0(%arg0: i32) -> (i32, i32, i32) {
    %c0_i32 = arith.constant 0 : i32
    %c0_i32_0 = arith.constant 0 : i32
    %c0_i32_1 = arith.constant 0 : i32
    return %arg0, %c0_i32, %c0_i32_0 : i32, i32, i32
  }
  func.func @transform_1(%arg0: i32) -> (i32, i32) {
    %c0_i32 = arith.constant 0 : i32
    %c0_i32_0 = arith.constant 0 : i32
    %c0_i32_1 = arith.constant 0 : i32
    return %c0_i32, %c0_i32_0 : i32, i32
  }
  func.func @transform_2(%arg0: i32) -> (i32, i32) {
    %c0_i32 = arith.constant 0 : i32
    %c0_i32_0 = arith.constant 0 : i32
    %c0_i32_1 = arith.constant 0 : i32
    return %c0_i32, %c0_i32_0 : i32, i32
  }
  func.func @transform_3(%arg0: i32) -> (i32, i32) {
    %c0_i32 = arith.constant 0 : i32
    %c0_i32_0 = arith.constant 0 : i32
    %c0_i32_1 = arith.constant 0 : i32
    return %c0_i32, %c0_i32_0 : i32, i32
  }
  func.func @transform_4(%arg0: i32) -> (i32, i32) {
    %c0_i32 = arith.constant 0 : i32
    %c0_i32_0 = arith.constant 0 : i32
    %c0_i32_1 = arith.constant 0 : i32
    return %c0_i32, %c0_i32_0 : i32, i32
  }
  func.func @transform_5(%arg0: i32) -> (i32, i32) {
    %c0_i32 = arith.constant 0 : i32
    %c0_i32_0 = arith.constant 0 : i32
    %c0_i32_1 = arith.constant 0 : i32
    return %c0_i32, %c0_i32_0 : i32, i32
  }
  func.func @transform_6(%arg0: i32) -> (i32, i32) {
    %c0_i32 = arith.constant 0 : i32
    %c0_i32_0 = arith.constant 0 : i32
    %c0_i32_1 = arith.constant 0 : i32
    return %c0_i32, %c0_i32_0 : i32, i32
  }
  func.func @transform_7(%arg0: i32) -> (i32, i32) {
    %c0_i32 = arith.constant 0 : i32
    %c0_i32_0 = arith.constant 0 : i32
    %c0_i32_1 = arith.constant 0 : i32
    return %c0_i32, %c0_i32_0 : i32, i32
  }
  func.func @transform_8(%arg0: i32) -> (i32, i32, i32) {
    %c0_i32 = arith.constant 0 : i32
    %c0_i32_0 = arith.constant 0 : i32
    %c0_i32_1 = arith.constant 0 : i32
    return %arg0, %c0_i32, %c0_i32_0 : i32, i32, i32
  }
  func.func @transform_9(%arg0: i32) -> (i32, i32, i32) {
    %c0_i32 = arith.constant 0 : i32
    %c0_i32_0 = arith.constant 0 : i32
    %c0_i32_1 = arith.constant 0 : i32
    return %arg0, %c0_i32, %c0_i32_0 : i32, i32, i32
  }
}

</mosaic_0001>

<llo_original>
// kernel: tile.7
$region0: #{tile.7}
  %s0 = inlined_call_operand.vmem [shape: f32[16,8,16], index: 0, kind: input, shape index: {}]
  %s1 = inlined_call_operand.vmem [shape: f32[16,128], index: 1, kind: output, shape index: {}]
  %v2 = vld [vmem:[%s0] ss:$8 sm:$0xf]
  %v3 = vld [vmem:[%s0] ss:$8 sm:$0xf0]
  %vm4 = vcmask 1047556
  %v5 = vsel %vm4, %v3, %v2
  %vm6 = vcmask 130048
  %7 = vst.msk [vmem:[%s1] sm:$0xff] %vm6, %v5
  %s8 = scalar_lea.vmem %s0, 64
  %v9 = vld [vmem:[%s8] ss:$8 sm:$0xf]
  %s10 = scalar_lea.vmem %s0, 64
  %v11 = vld [vmem:[%s10] ss:$8 sm:$0xf0]
  %vm12 = vcmask 1047556
  %v13 = vsel %vm12, %v11, %v9
  %vm14 = vcmask 130048
  %s15 = scalar_lea.vmem %s1, 8
  %16 = vst.msk [vmem:[%s15] sm:$0xff] %vm14, %v13
  %s17 = scalar_lea.vmem %s0, 7
  %v18 = vld [vmem:[%s17] ss:$8 sm:$0xf]
  %s19 = scalar_lea.vmem %s0, 7
  %v20 = vld [vmem:[%s19] ss:$8 sm:$0xf0]
  %vm21 = vcmask 1047556
  %v22 = vsel %vm21, %v20, %v18
  %23 = vrot.lane.b32.xlu0 %v22, 112
  %v24 = vpop.permute.xlu0 %23
  %vm25 = vcmask 1048448
  %26 = vst.msk [vmem:[%s1] sm:$0xff] %vm25, %v24
  %s27 = scalar_lea.vmem %s0, 71
  %v28 = vld [vmem:[%s27] ss:$8 sm:$0xf]
  %s29 = scalar_lea.vmem %s0, 71
  %v30 = vld [vmem:[%s29] ss:$8 sm:$0xf0]
  %vm31 = vcmask 1047556
  %v32 = vsel %vm31, %v30, %v28
  %33 = vrot.lane.b32.xlu0 %v32, 112
  %v34 = vpop.permute.xlu0 %33
  %vm35 = vcmask 1048448
  %s36 = scalar_lea.vmem %s1, 8
  %37 = vst.msk [vmem:[%s36] sm:$0xff] %vm35, %v34
  %s38 = scalar_lea.vmem %s0, 6
  %v39 = vld [vmem:[%s38] ss:$8 sm:$0xf]
  %s40 = scalar_lea.vmem %s0, 6
  %v41 = vld [vmem:[%s40] ss:$8 sm:$0xf0]
  %vm42 = vcmask 1047556
  %v43 = vsel %vm42, %v41, %v39
  %44 = vrot.lane.b32.xlu0 %v43, 96
  %v45 = vpop.permute.xlu0 %44
  %vm46 = vcmask 917248
  %47 = vst.msk [vmem:[%s1] sm:$0xff] %vm46, %v45
  %s48 = scalar_lea.vmem %s0, 70
  %v49 = vld [vmem:[%s48] ss:$8 sm:$0xf]
  %s50 = scalar_lea.vmem %s0, 70
  %v51 = vld [vmem:[%s50] ss:$8 sm:$0xf0]
  %vm52 = vcmask 1047556
  %v53 = vsel %vm52, %v51, %v49
  %54 = vrot.lane.b32.xlu0 %v53, 96
  %v55 = vpop.permute.xlu0 %54
  %vm56 = vcmask 917248
  %s57 = scalar_lea.vmem %s1, 8
  %58 = vst.msk [vmem:[%s57] sm:$0xff] %vm56, %v55
  %s59 = scalar_lea.vmem %s0, 5
  %v60 = vld [vmem:[%s59] ss:$8 sm:$0xf]
  %s61 = scalar_lea.vmem %s0, 5
  %v62 = vld [vmem:[%s61] ss:$8 sm:$0xf0]
  %vm63 = vcmask 1047556
  %v64 = vsel %vm63, %v62, %v60
  %65 = vrot.lane.b32.xlu0 %v64, 80
  %v66 = vpop.permute.xlu0 %65
  %vm67 = vcmask 786048
  %68 = vst.msk [vmem:[%s1] sm:$0xff] %vm67, %v66
  %s69 = scalar_lea.vmem %s0, 69
  %v70 = vld [vmem:[%s69] ss:$8 sm:$0xf]
  %s71 = scalar_lea.vmem %s0, 69
  %v72 = vld [vmem:[%s71] ss:$8 sm:$0xf0]
  %vm73 = vcmask 1047556
  %v74 = vsel %vm73, %v72, %v70
  %75 = vrot.lane.b32.xlu0 %v74, 80
  %v76 = vpop.permute.xlu0 %75
  %vm77 = vcmask 786048
  %s78 = scalar_lea.vmem %s1, 8
  %79 = vst.msk [vmem:[%s78] sm:$0xff] %vm77, %v76
  %s80 = scalar_lea.vmem %s0, 4
  %v81 = vld [vmem:[%s80] ss:$8 sm:$0xf]
  %s82 = scalar_lea.vmem %s0, 4
  %v83 = vld [vmem:[%s82] ss:$8 sm:$0xf0]
  %vm84 = vcmask 1047556
  %v85 = vsel %vm84, %v83, %v81
  %86 = vrot.lane.b32.xlu0 %v85, 64
  %v87 = vpop.permute.xlu0 %86
  %vm88 = vcmask 654848
  %89 = vst.msk [vmem:[%s1] sm:$0xff] %vm88, %v87
  %s90 = scalar_lea.vmem %s0, 68
  %v91 = vld [vmem:[%s90] ss:$8 sm:$0xf]
  %s92 = scalar_lea.vmem %s0, 68
  %v93 = vld [vmem:[%s92] ss:$8 sm:$0xf0]
  %vm94 = vcmask 1047556
  %v95 = vsel %vm94, %v93, %v91
  %96 = vrot.lane.b32.xlu0 %v95, 64
  %v97 = vpop.permute.xlu0 %96
  %vm98 = vcmask 654848
  %s99 = scalar_lea.vmem %s1, 8
  %100 = vst.msk [vmem:[%s99] sm:$0xff] %vm98, %v97
  %s101 = scalar_lea.vmem %s0, 3
  %v102 = vld [vmem:[%s101] ss:$8 sm:$0xf]
  %s103 = scalar_lea.vmem %s0, 3
  %v104 = vld [vmem:[%s103] ss:$8 sm:$0xf0]
  %vm105 = vcmask 1047556
  %v106 = vsel %vm105, %v104, %v102
  %107 = vrot.lane.b32.xlu0 %v106, 48
  %v108 = vpop.permute.xlu0 %107
  %vm109 = vcmask 523648
  %110 = vst.msk [vmem:[%s1] sm:$0xff] %vm109, %v108
  %s111 = scalar_lea.vmem %s0, 67
  %v112 = vld [vmem:[%s111] ss:$8 sm:$0xf]
  %s113 = scalar_lea.vmem %s0, 67
  %v114 = vld [vmem:[%s113] ss:$8 sm:$0xf0]
  %vm115 = vcmask 1047556
  %v116 = vsel %vm115, %v114, %v112
  %117 = vrot.lane.b32.xlu0 %v116, 48
  %v118 = vpop.permute.xlu0 %117
  %vm119 = vcmask 523648
  %s120 = scalar_lea.vmem %s1, 8
  %121 = vst.msk [vmem:[%s120] sm:$0xff] %vm119, %v118
  %s122 = scalar_lea.vmem %s0, 2
  %v123 = vld [vmem:[%s122] ss:$8 sm:$0xf]
  %s124 = scalar_lea.vmem %s0, 2
  %v125 = vld [vmem:[%s124] ss:$8 sm:$0xf0]
  %vm126 = vcmask 1047556
  %v127 = vsel %vm126, %v125, %v123
  %128 = vrot.lane.b32.xlu0 %v127, 32
  %v129 = vpop.permute.xlu0 %128
  %vm130 = vcmask 392448
  %131 = vst.msk [vmem:[%s1] sm:$0xff] %vm130, %v129
  %s132 = scalar_lea.vmem %s0, 66
  %v133 = vld [vmem:[%s132] ss:$8 sm:$0xf]
  %s134 = scalar_lea.vmem %s0, 66
  %v135 = vld [vmem:[%s134] ss:$8 sm:$0xf0]
  %vm136 = vcmask 1047556
  %v137 = vsel %vm136, %v135, %v133
  %138 = vrot.lane.b32.xlu0 %v137, 32
  %v139 = vpop.permute.xlu0 %138
  %vm140 = vcmask 392448
  %s141 = scalar_lea.vmem %s1, 8
  %142 = vst.msk [vmem:[%s141] sm:$0xff] %vm140, %v139
  %s143 = scalar_lea.vmem %s0, 1
  %v144 = vld [vmem:[%s143] ss:$8 sm:$0xf]
  %s145 = scalar_lea.vmem %s0, 1
  %v146 = vld [vmem:[%s145] ss:$8 sm:$0xf0]
  %vm147 = vcmask 1047556
  %v148 = vsel %vm147, %v146, %v144
  %149 = vrot.lane.b32.xlu0 %v148, 16
  %v150 = vpop.permute.xlu0 %149
  %vm151 = vcmask 261248
  %152 = vst.msk [vmem:[%s1] sm:$0xff] %vm151, %v150
  %s153 = scalar_lea.vmem %s0, 65
  %v154 = vld [vmem:[%s153] ss:$8 sm:$0xf]
  %s155 = scalar_lea.vmem %s0, 65
  %v156 = vld [vmem:[%s155] ss:$8 sm:$0xf0]
  %vm157 = vcmask 1047556
  %v158 = vsel %vm157, %v156, %v154
  %159 = vrot.lane.b32.xlu0 %v158, 16
  %v160 = vpop.permute.xlu0 %159
  %vm161 = vcmask 261248
  %s162 = scalar_lea.vmem %s1, 8
  %163 = vst.msk [vmem:[%s162] sm:$0xff] %vm161, %v160

// kernel: _lambda_.3
$region0: #{_lambda_.3}
  #allocation0 [shape = 'u32[]', space=smem, size = 0x4, offset = 0x4, fixed_abs, tag = 'smem constant byte address 0x4 - core index']
  #allocation1 [shape = 'u32[72,128]{1,0:T(1,128)}', space=vmem, size = 0x9000, scoped, tag = 'internal scratch']
  %s0 = inlined_call_operand.vmem [shape: bf16[2,36,128], index: 0, kind: input, shape index: {}]
  %s1 = inlined_call_operand.vmem [shape: f32[2,1,128], index: 1, kind: input, shape index: {}]
  %s2 = inlined_call_operand.vmem [shape: bf16[2,36,128], index: 2, kind: input, shape index: {}]
  %s3 = inlined_call_operand.vmem [shape: bf16[2,36,128], index: 3, kind: output, shape index: {}]
  %s4 = sld [smem:[#allocation0]]
  $region45: #{_lambda_.3} parent=0
    _
  %s6 = ssub.s32 1, %s4
  %s7 = scalar_select 0, %s6, %s4
  loop: start=0, step=1, limit=4
  $region2: #{_lambda_.3} parent=0 // loop_pre_header
    _
  $region3: #{_lambda_.3} parent=0 // loop_header
    %s9 = sphi 0, %s13
    %p10 = scmp.ge.s32.totalorder %s9, 4
    %s16 = sphi 0, %s28
    %s17 = sphi 0, %s24
    %s18 = sphi 0, %s16
    %s19 = sphi 0, %s17
    %s20 = sphi 0, %s18
    %s21 = sphi 0, %s19
    %s33 = sphi 0, %s35
    %s36 = sphi 0, %s33
    %s37 = sphi 0, %s36
    %s53 = sphi 0, %s37
    %s59 = sphi 0, %s61
    %s62 = sphi 0, %s59
    %s63 = sphi 0, %s62
    %s79 = sphi 0, %s63
    %s87 = sphi 0, %s89
    %s90 = sphi 0, %s87
    %s91 = sphi 0, %s90
    %s107 = sphi 0, %s91
    %s115 = sphi 0, %s117
    %s118 = sphi 0, %s115
    %s119 = sphi 0, %s118
    %s135 = sphi 0, %s119
  $region4: #{_lambda_.3} parent=0 // loop_header_branch
    %12 = sbr.rel (%p10) target = $region8
  $region5: #{_lambda_.3} parent=0 // loop_body
    %s14 = ssub.s32 %s9, 1
    %s15 = ssub.s32 %s9, 2
    %s22 = sadd.s32 1, %s17
    %p23 = scmp.ge.s32.totalorder %s22, 1
    %s24 = scalar_select %p23, 0, %s22
    %s25 = sadd.s32 1, %s16
    %s26 = scalar_select %p23, %s25, %s16
    %p27 = scmp.ge.s32.totalorder %s26, 2
    %s28 = scalar_select %p27, 0, %s26
    %s29 = ssub.s32 %s16, %s28
    %s30 = ssub.s32 %s17, %s24
    %s31 = sor.u32 %s29, %s30
    %p32 = scmp.eq.s32.totalorder %s31, 0
    %s34 = sadd.s32 %s33, 1
    %s35 = scalar_select %p32, %s33, %s34
    %p38 = pneg %p32
    %p39 = scmp.eq.s32.totalorder %s9, 1
    %p40 = por %p38, %p39
    %p41 = scmp.ne.s32.totalorder %s33, %s36
    %p42 = scmp.eq.s32.totalorder %s9, 0
    %p43 = por %p41, %p42
    %p44 = scmp.ne.s32.totalorder %s33, %s36
    %p45 = scmp.eq.s32.totalorder %s14, 1
    %p46 = por %p44, %p45
    %p47 = scmp.ne.s32.totalorder %s36, %s37
    %p48 = scmp.eq.s32.totalorder %s14, 0
    %p49 = por %p47, %p48
    %p50 = scmp.ne.s32.totalorder %s36, %s37
    %p51 = scmp.eq.s32.totalorder %s15, 1
    %p52 = por %p50, %p51
    %p54 = scmp.ne.s32.totalorder %s37, %s53
    %p55 = scmp.eq.s32.totalorder %s15, 0
    %p56 = por %p54, %p55
    %s57 = ssub.s32 %s16, %s28
    %p58 = scmp.eq.s32.totalorder %s57, 0
    %s60 = sadd.s32 %s59, 1
    %s61 = scalar_select %p58, %s59, %s60
    %p64 = pneg %p58
    %p65 = scmp.eq.s32.totalorder %s9, 1
    %p66 = por %p64, %p65
    %p67 = scmp.ne.s32.totalorder %s59, %s62
    %p68 = scmp.eq.s32.totalorder %s9, 0
    %p69 = por %p67, %p68
    %p70 = scmp.ne.s32.totalorder %s59, %s62
    %p71 = scmp.eq.s32.totalorder %s14, 1
    %p72 = por %p70, %p71
    %p73 = scmp.ne.s32.totalorder %s62, %s63
    %p74 = scmp.eq.s32.totalorder %s14, 0
    %p75 = por %p73, %p74
    %p76 = scmp.ne.s32.totalorder %s62, %s63
    %p77 = scmp.eq.s32.totalorder %s15, 1
    %p78 = por %p76, %p77
    %p80 = scmp.ne.s32.totalorder %s63, %s79
    %p81 = scmp.eq.s32.totalorder %s15, 0
    %p82 = por %p80, %p81
    %s83 = ssub.s32 %s16, %s28
    %s84 = ssub.s32 %s17, %s24
    %s85 = sor.u32 %s83, %s84
    %p86 = scmp.eq.s32.totalorder %s85, 0
    %s88 = sadd.s32 %s87, 1
    %s89 = scalar_select %p86, %s87, %s88
    %p92 = pneg %p86
    %p93 = scmp.eq.s32.totalorder %s9, 1
    %p94 = por %p92, %p93
    %p95 = scmp.ne.s32.totalorder %s87, %s90
    %p96 = scmp.eq.s32.totalorder %s9, 0
    %p97 = por %p95, %p96
    %p98 = scmp.ne.s32.totalorder %s87, %s90
    %p99 = scmp.eq.s32.totalorder %s14, 1
    %p100 = por %p98, %p99
    %p101 = scmp.ne.s32.totalorder %s90, %s91
    %p102 = scmp.eq.s32.totalorder %s14, 0
    %p103 = por %p101, %p102
    %p104 = scmp.ne.s32.totalorder %s90, %s91
    %p105 = scmp.eq.s32.totalorder %s15, 1
    %p106 = por %p104, %p105
    %p108 = scmp.ne.s32.totalorder %s91, %s107
    %p109 = scmp.eq.s32.totalorder %s15, 0
    %p110 = por %p108, %p109
    %s111 = ssub.s32 %s16, %s28
    %s112 = ssub.s32 %s17, %s24
    %s113 = sor.u32 %s111, %s112
    %p114 = scmp.eq.s32.totalorder %s113, 0
    %s116 = sadd.s32 %s115, 1
    %s117 = scalar_select %p114, %s115, %s116
    %p120 = pneg %p114
    %p121 = scmp.eq.s32.totalorder %s9, 1
    %p122 = por %p120, %p121
    %p123 = scmp.ne.s32.totalorder %s115, %s118
    %p124 = scmp.eq.s32.totalorder %s9, 0
    %p125 = por %p123, %p124
    %p126 = scmp.ne.s32.totalorder %s115, %s118
    %p127 = scmp.eq.s32.totalorder %s14, 1
    %p128 = por %p126, %p127
    %p129 = scmp.ne.s32.totalorder %s118, %s119
    %p130 = scmp.eq.s32.totalorder %s14, 0
    %p131 = por %p129, %p130
    %p132 = scmp.ne.s32.totalorder %s118, %s119
    %p133 = scmp.eq.s32.totalorder %s15, 1
    %p134 = por %p132, %p133
    %p136 = scmp.ne.s32.totalorder %s119, %s135
    %p137 = scmp.eq.s32.totalorder %s15, 0
    %p138 = por %p136, %p137
    %p139 = scmp.le.s32.totalorder 1, %s9
    %p140 = scmp.lt.s32.totalorder %s9, 3
    %p141 = pnand %p139, %p140
    %p142 = pneg %p141
    // Predicated region
    $region9: #{_lambda_.3} parent=5 // pred_check
      _
    $region10: #{_lambda_.3} parent=5 // pred_check_branch
      %144 = sbr.rel (%p141) target = $region12
    $region11: #{_lambda_.3} parent=5 // pred_region
      %s145 = ssub.s32 %s9, 1
    $region12: #{_lambda_.3} parent=5 // pred_fallthru
      _
    %p146 = scmp.lt.s32.totalorder %s9, 2
    // Predicated region
    $region13: #{_lambda_.3} parent=5 // pred_check
      %p147 = pneg %p146
    $region14: #{_lambda_.3} parent=5 // pred_check_branch
      %149 = sbr.rel (%p147) target = $region16
    $region15: #{_lambda_.3} parent=5 // pred_region
      // Predicated region
      $region17: #{_lambda_.3} parent=15 // pred_check
        %p150 = pneg %p43
      $region18: #{_lambda_.3} parent=15 // pred_check_branch
        %152 = sbr.rel (%p150) target = $region20
      $region19: #{_lambda_.3} parent=15 // pred_region
        %s153 = smul.u32 5, %s17
        %p154 = scmp.lt.s32.totalorder %s16, 1
        %s155 = scalar_select %p154, %s16, 1
        %p156 = scmp.lt.s32.totalorder %s153, 4
        %s157 = scalar_select %p156, %s153, 4
        %s158 = smul.addr %s155, 5
        %s159 = sadd.s32 %s157, %s158
        %s160 = smul.addr %s159, 4
        %s161 = scalar_lea.vmem %s0, %s160
        %s162 = smul.u32 5, %s17
      $region20: #{_lambda_.3} parent=15 // pred_fallthru
        _
      // Predicated region
      $region21: #{_lambda_.3} parent=15 // pred_check
        %p163 = pneg %p69
      $region22: #{_lambda_.3} parent=15 // pred_check_branch
        %165 = sbr.rel (%p163) target = $region24
      $region23: #{_lambda_.3} parent=15 // pred_region
        %p166 = scmp.lt.s32.totalorder %s16, 1
        %s167 = scalar_select %p166, %s16, 1
        %s168 = scalar_lea.vmem %s1, %s167
      $region24: #{_lambda_.3} parent=15 // pred_fallthru
        _
      // Predicated region
      $region25: #{_lambda_.3} parent=15 // pred_check
        %p169 = pneg %p97
      $region26: #{_lambda_.3} parent=15 // pred_check_branch
        %171 = sbr.rel (%p169) target = $region28
      $region27: #{_lambda_.3} parent=15 // pred_region
        %s172 = smul.u32 5, %s17
        %p173 = scmp.lt.s32.totalorder %s16, 1
        %s174 = scalar_select %p173, %s16, 1
        %p175 = scmp.lt.s32.totalorder %s172, 4
        %s176 = scalar_select %p175, %s172, 4
        %s177 = smul.addr %s174, 5
        %s178 = sadd.s32 %s176, %s177
        %s179 = smul.addr %s178, 4
        %s180 = scalar_lea.vmem %s2, %s179
        %s181 = smul.u32 5, %s17
      $region28: #{_lambda_.3} parent=15 // pred_fallthru
        _
    $region16: #{_lambda_.3} parent=5 // pred_fallthru
      _
    %p182 = scmp.le.s32.totalorder 1, %s9
    %p183 = scmp.lt.s32.totalorder %s9, 3
    %p184 = pnand %p182, %p183
    %p185 = pneg %p184
    // Predicated region
    $region29: #{_lambda_.3} parent=5 // pred_check
      _
    $region30: #{_lambda_.3} parent=5 // pred_check_branch
      %187 = sbr.rel (%p184) target = $region32
    $region31: #{_lambda_.3} parent=5 // pred_region
      %s188 = ssub.s32 %s9, 1
      %s189 = smul.u32 5, %s19
      %p190 = scmp.lt.s32.totalorder %s18, 1
      %s191 = scalar_select %p190, %s18, 1
      %p192 = scmp.lt.s32.totalorder %s189, 4
      %s193 = scalar_select %p192, %s189, 4
      %s194 = smul.addr %s191, 5
      %s195 = sadd.s32 %s193, %s194
      %s196 = smul.addr %s195, 4
      %s197 = scalar_lea.vmem %s0, %s196
      %p198 = pneg %p49
      %p199 = pneg %p46
      %p200 = scmp.lt.s32.totalorder %s18, 1
      %s201 = scalar_select %p200, %s18, 1
      %s202 = scalar_lea.vmem %s1, %s201
      %p203 = pneg %p75
      %p204 = pneg %p72
      %s205 = smul.u32 5, %s19
      %p206 = scmp.lt.s32.totalorder %s18, 1
      %s207 = scalar_select %p206, %s18, 1
      %p208 = scmp.lt.s32.totalorder %s205, 4
      %s209 = scalar_select %p208, %s205, 4
      %s210 = smul.addr %s207, 5
      %s211 = sadd.s32 %s209, %s210
      %s212 = smul.addr %s211, 4
      %s213 = scalar_lea.vmem %s2, %s212
      %p214 = pneg %p103
      %p215 = pneg %p100
      %p216 = pneg %p131
      %p217 = pneg %p128
      %s218 = smul.u32 5, %s19
      %p219 = scmp.lt.s32.totalorder %s18, 1
      %s220 = scalar_select %p219, %s18, 1
      %p221 = scmp.lt.s32.totalorder %s218, 4
      %s222 = scalar_select %p221, %s218, 4
      %s223 = smul.addr %s220, 5
      %s224 = sadd.s32 %s222, %s223
      %s225 = smul.addr %s224, 4
      %s226 = scalar_lea.vmem %s3, %s225
      %s227 = smul.u32 5, %s19
      %p228 = scmp.lt.s32.totalorder %s18, 1
      %s229 = scalar_select %p228, %s18, 1
      %p230 = scmp.lt.s32.totalorder %s227, 4
      %s231 = scalar_select %p230, %s227, 4
      %s232 = smul.addr %s229, 5
      %s233 = sadd.s32 %s231, %s232
      %s234 = smul.addr %s233, 4
      %s235 = scalar_lea.vmem %s0, %s234
      %s236 = smul.u32 5, %s19
      %p237 = scmp.lt.s32.totalorder %s18, 1
      %s238 = scalar_select %p237, %s18, 1
      %s239 = scalar_lea.vmem %s1, %s238
      %s240 = smul.u32 5, %s19
      %p241 = scmp.lt.s32.totalorder %s18, 1
      %s242 = scalar_select %p241, %s18, 1
      %p243 = scmp.lt.s32.totalorder %s240, 4
      %s244 = scalar_select %p243, %s240, 4
      %s245 = smul.addr %s242, 5
      %s246 = sadd.s32 %s244, %s245
      %s247 = smul.addr %s246, 4
      %s248 = scalar_lea.vmem %s2, %s247
      %s249 = smul.u32 5, %s19
      %s250 = smul.u32 5, %s19
      %p251 = scmp.lt.s32.totalorder %s18, 1
      %s252 = scalar_select %p251, %s18, 1
      %p253 = scmp.lt.s32.totalorder %s250, 4
      %s254 = scalar_select %p253, %s250, 4
      %s255 = smul.addr %s252, 5
      %s256 = sadd.s32 %s254, %s255
      %s257 = smul.addr %s256, 4
      %s258 = scalar_lea.vmem %s3, %s257
      %s259 = smul.u32 5, %s19
      %v260 = vld [vmem:[%s239] sm:$0x1]
      %v261 = vpack.c.bf16 %v260, %v260
      %v262 = vld [vmem:[%s235] sm:$0xf]
      %v263 = vld [vmem:[%s235 + $0x4] sm:$0xf]
      %v264 = vld [vmem:[%s235 + $0x8] sm:$0xf]
      %v265 = vld [vmem:[%s235 + $0xc] sm:$0xf]
      %v266 = vld [vmem:[%s235 + $0x10] sm:$0x3]
      %v268 = vpack.i.b16 %v261, %v261
      %v270 = vperm.slane %v268, 0
      %v271 = vunpack.c.l.bf16 %v262
      %v272 = vunpack.c.l.bf16 %v263
      %v273 = vunpack.c.l.bf16 %v264
      %v274 = vunpack.c.l.bf16 %v265
      %v275 = vunpack.c.l.bf16 %v266
      %v276 = vunpack.c.l.bf16 %v270
      %v277 = vmul.f32 %v271, %v276
      %v278 = vmul.f32 %v272, %v276
      %v279 = vmul.f32 %v273, %v276
      %v280 = vmul.f32 %v274, %v276
      %v281 = vmul.f32 %v275, %v276
      %v282 = vpack.c.bf16 %v277, %v277
      %v283 = vpack.c.bf16 %v278, %v278
      %v284 = vpack.c.bf16 %v279, %v279
      %v285 = vpack.c.bf16 %v280, %v280
      %v286 = vpack.c.bf16 %v281, %v281
      %v287 = vld [vmem:[%s248] sm:$0xf]
      %v288 = vld [vmem:[%s248 + $0x4] sm:$0xf]
      %v289 = vld [vmem:[%s248 + $0x8] sm:$0xf]
      %v290 = vld [vmem:[%s248 + $0xc] sm:$0xf]
      %v291 = vld [vmem:[%s248 + $0x10] sm:$0x3]
      %v292 = vunpack.c.l.bf16 %v282
      %v293 = vunpack.c.l.bf16 %v283
      %v294 = vunpack.c.l.bf16 %v284
      %v295 = vunpack.c.l.bf16 %v285
      %v296 = vunpack.c.l.bf16 %v286
      %v297 = vunpack.c.l.bf16 %v287
      %v298 = vunpack.c.l.bf16 %v288
      %v299 = vunpack.c.l.bf16 %v289
      %v300 = vunpack.c.l.bf16 %v290
      %v301 = vunpack.c.l.bf16 %v291
      %v302 = vadd.f32 %v292, %v297
      %v303 = vadd.f32 %v293, %v298
      %v304 = vadd.f32 %v294, %v299
      %v305 = vadd.f32 %v295, %v300
      %v306 = vadd.f32 %v296, %v301
      %v307 = vpack.c.bf16 %v302, %v302
      %v308 = vpack.c.bf16 %v303, %v303
      %v309 = vpack.c.bf16 %v304, %v304
      %v310 = vpack.c.bf16 %v305, %v305
      %v311 = vpack.c.bf16 %v306, %v306
      %312 = vst [vmem:[%s258] sm:$0xf] %v307
      %313 = vst [vmem:[%s258 + $0x4] sm:$0xf] %v308
      %314 = vst [vmem:[%s258 + $0x8] sm:$0xf] %v309
      %315 = vst [vmem:[%s258 + $0xc] sm:$0xf] %v310
      %316 = vst [vmem:[%s258 + $0x10] sm:$0x3] %v311
      %s317 = smul.u32 5, %s19
      %p318 = scmp.lt.s32.totalorder %s18, 1
      %s319 = scalar_select %p318, %s18, 1
      %p320 = scmp.lt.s32.totalorder %s317, 4
      %s321 = scalar_select %p320, %s317, 4
      %s322 = smul.addr %s319, 5
      %s323 = sadd.s32 %s321, %s322
      %s324 = smul.addr %s323, 4
      %s325 = scalar_lea.vmem %s3, %s324
      // Predicated region
      $region33: #{_lambda_.3} parent=31 // pred_check
        %p326 = pneg %p128
      $region34: #{_lambda_.3} parent=31 // pred_check_branch
        %328 = sbr.rel (%p326) target = $region36
      $region35: #{_lambda_.3} parent=31 // pred_region
        %s329 = smul.u32 5, %s19
      $region36: #{_lambda_.3} parent=31 // pred_fallthru
        _
    $region32: #{_lambda_.3} parent=5 // pred_fallthru
      _
    %p330 = scmp.le.s32.totalorder 2, %s9
    // Predicated region
    $region37: #{_lambda_.3} parent=5 // pred_check
      %p331 = pneg %p330
    $region38: #{_lambda_.3} parent=5 // pred_check_branch
      %333 = sbr.rel (%p331) target = $region40
    $region39: #{_lambda_.3} parent=5 // pred_region
      %s334 = ssub.s32 %s9, 2
      // Predicated region
      $region41: #{_lambda_.3} parent=39 // pred_check
        %p335 = pneg %p134
      $region42: #{_lambda_.3} parent=39 // pred_check_branch
        %337 = sbr.rel (%p335) target = $region44
      $region43: #{_lambda_.3} parent=39 // pred_region
        %s338 = smul.u32 5, %s21
        %p339 = scmp.lt.s32.totalorder %s20, 1
        %s340 = scalar_select %p339, %s20, 1
        %p341 = scmp.lt.s32.totalorder %s338, 4
        %s342 = scalar_select %p341, %s338, 4
        %s343 = smul.addr %s340, 5
        %s344 = sadd.s32 %s342, %s343
        %s345 = smul.addr %s344, 4
        %s346 = scalar_lea.vmem %s3, %s345
      $region44: #{_lambda_.3} parent=39 // pred_fallthru
        _
    $region40: #{_lambda_.3} parent=5 // pred_fallthru
      _
  $region6: #{_lambda_.3} parent=0 // loop_footer
    %s13 = sadd.s32 1, %s9
  $region7: #{_lambda_.3} parent=0 // loop_footer_branch
    %8 = sbr.rel target = $region3
  $region8: #{_lambda_.3} parent=0 // loop_exit
    _

// kernel: _lambda_.2
$region0: #{_lambda_.2}
  #allocation0 [shape = 'u32[]', space=smem, size = 0x4, offset = 0x4, fixed_abs, tag = 'smem constant byte address 0x4 - core index']
  #allocation1 [shape = 'u32[72,128]{1,0:T(1,128)}', space=vmem, size = 0x9000, scoped, tag = 'internal scratch']
  %s0 = inlined_call_operand.vmem [shape: bf16[2,342,16], index: 0, kind: input, shape index: {}]
  %s1 = inlined_call_operand.vmem [shape: bf16[16,8], index: 1, kind: input, shape index: {}]
  %s2 = inlined_call_operand.vmem [shape: f32[1,8], index: 2, kind: input, shape index: {}]
  %s3 = inlined_call_operand.vmem [shape: f32[342,1], index: 3, kind: input, shape index: {}]
  %s4 = inlined_call_operand.vmem [shape: bf16[72,16], index: 4, kind: input, shape index: {}]
  %s5 = inlined_call_operand.vmem [shape: f32[1,16], index: 5, kind: input, shape index: {}]
  %s6 = inlined_call_operand.vmem [shape: f32[288,1], index: 6, kind: input, shape index: {}]
  %s7 = inlined_call_operand.vmem [shape: f32[16,128], index: 7, kind: input, shape index: {}]
  %s8 = inlined_call_operand.vmem [shape: bf16[2,288,16], index: 8, kind: output, shape index: {0}]
  %s9 = inlined_call_operand.vmem [shape: f32[2,1,128], index: 9, kind: output, shape index: {1}]
  %10 = xla_tuple %s8, %s9
  %s11 = sld [smem:[#allocation0]]
  $region73: #{_lambda_.2} parent=0
    _
  %s13 = ssub.s32 1, %s11
  %s14 = scalar_select 0, %s13, %s11
  loop: start=0, step=1, limit=4
  $region2: #{_lambda_.2} parent=0 // loop_pre_header
    _
  $region3: #{_lambda_.2} parent=0 // loop_header
    %s16 = sphi 0, %s20
    %p17 = scmp.ge.s32.totalorder %s16, 4
    %s26 = sphi 0, %s28
    %s29 = sphi 0, %s26
    %s30 = sphi 0, %s29
    %s46 = sphi 0, %s30
    %s50 = sphi 0, %s50
    %s52 = sphi 0, %s50
    %s53 = sphi 0, %s52
    %s67 = sphi 0, %s53
    %s71 = sphi 0, %s71
    %s73 = sphi 0, %s71
    %s74 = sphi 0, %s73
    %s88 = sphi 0, %s74
    %s92 = sphi 0, %s92
    %s94 = sphi 0, %s92
    %s95 = sphi 0, %s94
    %s109 = sphi 0, %s95
    %s113 = sphi 0, %s113
    %s115 = sphi 0, %s113
    %s116 = sphi 0, %s115
    %s130 = sphi 0, %s116
    %s134 = sphi 0, %s134
    %s136 = sphi 0, %s134
    %s137 = sphi 0, %s136
    %s151 = sphi 0, %s137
    %s155 = sphi 0, %s155
    %s157 = sphi 0, %s155
    %s158 = sphi 0, %s157
    %s172 = sphi 0, %s158
    %s176 = sphi 0, %s176
    %s178 = sphi 0, %s176
    %s179 = sphi 0, %s178
    %s193 = sphi 0, %s179
    %s199 = sphi 0, %s201
    %s202 = sphi 0, %s199
    %s203 = sphi 0, %s202
    %s219 = sphi 0, %s203
    %s225 = sphi 0, %s227
    %s228 = sphi 0, %s225
    %s229 = sphi 0, %s228
    %s245 = sphi 0, %s229
  $region4: #{_lambda_.2} parent=0 // loop_header_branch
    %19 = sbr.rel (%p17) target = $region8
  $region5: #{_lambda_.2} parent=0 // loop_body
    %s21 = ssub.s32 %s16, 1
    %s22 = ssub.s32 %s16, 2
    %s23 = sadd.s32 %s16, 1
    %s24 = ssub.s32 %s16, %s23
    %p25 = scmp.eq.s32.totalorder %s24, 0
    %s27 = sadd.s32 %s26, 1
    %s28 = scalar_select %p25, %s26, %s27
    %p31 = pneg %p25
    %p32 = scmp.eq.s32.totalorder %s16, 1
    %p33 = por %p31, %p32
    %p34 = scmp.ne.s32.totalorder %s26, %s29
    %p35 = scmp.eq.s32.totalorder %s16, 0
    %p36 = por %p34, %p35
    %p37 = scmp.ne.s32.totalorder %s26, %s29
    %p38 = scmp.eq.s32.totalorder %s21, 1
    %p39 = por %p37, %p38
    %p40 = scmp.ne.s32.totalorder %s29, %s30
    %p41 = scmp.eq.s32.totalorder %s21, 0
    %p42 = por %p40, %p41
    %p43 = scmp.ne.s32.totalorder %s29, %s30
    %p44 = scmp.eq.s32.totalorder %s22, 1
    %p45 = por %p43, %p44
    %p47 = scmp.ne.s32.totalorder %s30, %s46
    %p48 = scmp.eq.s32.totalorder %s22, 0
    %p49 = por %p47, %p48
    %s51 = sadd.s32 %s50, 1
    %p54 = scmp.eq.s32.totalorder %s16, 1
    %p55 = scmp.ne.s32.totalorder %s50, %s52
    %p56 = scmp.eq.s32.totalorder %s16, 0
    %p57 = por %p55, %p56
    %p58 = scmp.ne.s32.totalorder %s50, %s52
    %p59 = scmp.eq.s32.totalorder %s21, 1
    %p60 = por %p58, %p59
    %p61 = scmp.ne.s32.totalorder %s52, %s53
    %p62 = scmp.eq.s32.totalorder %s21, 0
    %p63 = por %p61, %p62
    %p64 = scmp.ne.s32.totalorder %s52, %s53
    %p65 = scmp.eq.s32.totalorder %s22, 1
    %p66 = por %p64, %p65
    %p68 = scmp.ne.s32.totalorder %s53, %s67
    %p69 = scmp.eq.s32.totalorder %s22, 0
    %p70 = por %p68, %p69
    %s72 = sadd.s32 %s71, 1
    %p75 = scmp.eq.s32.totalorder %s16, 1
    %p76 = scmp.ne.s32.totalorder %s71, %s73
    %p77 = scmp.eq.s32.totalorder %s16, 0
    %p78 = por %p76, %p77
    %p79 = scmp.ne.s32.totalorder %s71, %s73
    %p80 = scmp.eq.s32.totalorder %s21, 1
    %p81 = por %p79, %p80
    %p82 = scmp.ne.s32.totalorder %s73, %s74
    %p83 = scmp.eq.s32.totalorder %s21, 0
    %p84 = por %p82, %p83
    %p85 = scmp.ne.s32.totalorder %s73, %s74
    %p86 = scmp.eq.s32.totalorder %s22, 1
    %p87 = por %p85, %p86
    %p89 = scmp.ne.s32.totalorder %s74, %s88
    %p90 = scmp.eq.s32.totalorder %s22, 0
    %p91 = por %p89, %p90
    %s93 = sadd.s32 %s92, 1
    %p96 = scmp.eq.s32.totalorder %s16, 1
    %p97 = scmp.ne.s32.totalorder %s92, %s94
    %p98 = scmp.eq.s32.totalorder %s16, 0
    %p99 = por %p97, %p98
    %p100 = scmp.ne.s32.totalorder %s92, %s94
    %p101 = scmp.eq.s32.totalorder %s21, 1
    %p102 = por %p100, %p101
    %p103 = scmp.ne.s32.totalorder %s94, %s95
    %p104 = scmp.eq.s32.totalorder %s21, 0
    %p105 = por %p103, %p104
    %p106 = scmp.ne.s32.totalorder %s94, %s95
    %p107 = scmp.eq.s32.totalorder %s22, 1
    %p108 = por %p106, %p107
    %p110 = scmp.ne.s32.totalorder %s95, %s109
    %p111 = scmp.eq.s32.totalorder %s22, 0
    %p112 = por %p110, %p111
    %s114 = sadd.s32 %s113, 1
    %p117 = scmp.eq.s32.totalorder %s16, 1
    %p118 = scmp.ne.s32.totalorder %s113, %s115
    %p119 = scmp.eq.s32.totalorder %s16, 0
    %p120 = por %p118, %p119
    %p121 = scmp.ne.s32.totalorder %s113, %s115
    %p122 = scmp.eq.s32.totalorder %s21, 1
    %p123 = por %p121, %p122
    %p124 = scmp.ne.s32.totalorder %s115, %s116
    %p125 = scmp.eq.s32.totalorder %s21, 0
    %p126 = por %p124, %p125
    %p127 = scmp.ne.s32.totalorder %s115, %s116
    %p128 = scmp.eq.s32.totalorder %s22, 1
    %p129 = por %p127, %p128
    %p131 = scmp.ne.s32.totalorder %s116, %s130
    %p132 = scmp.eq.s32.totalorder %s22, 0
    %p133 = por %p131, %p132
    %s135 = sadd.s32 %s134, 1
    %p138 = scmp.eq.s32.totalorder %s16, 1
    %p139 = scmp.ne.s32.totalorder %s134, %s136
    %p140 = scmp.eq.s32.totalorder %s16, 0
    %p141 = por %p139, %p140
    %p142 = scmp.ne.s32.totalorder %s134, %s136
    %p143 = scmp.eq.s32.totalorder %s21, 1
    %p144 = por %p142, %p143
    %p145 = scmp.ne.s32.totalorder %s136, %s137
    %p146 = scmp.eq.s32.totalorder %s21, 0
    %p147 = por %p145, %p146
    %p148 = scmp.ne.s32.totalorder %s136, %s137
    %p149 = scmp.eq.s32.totalorder %s22, 1
    %p150 = por %p148, %p149
    %p152 = scmp.ne.s32.totalorder %s137, %s151
    %p153 = scmp.eq.s32.totalorder %s22, 0
    %p154 = por %p152, %p153
    %s156 = sadd.s32 %s155, 1
    %p159 = scmp.eq.s32.totalorder %s16, 1
    %p160 = scmp.ne.s32.totalorder %s155, %s157
    %p161 = scmp.eq.s32.totalorder %s16, 0
    %p162 = por %p160, %p161
    %p163 = scmp.ne.s32.totalorder %s155, %s157
    %p164 = scmp.eq.s32.totalorder %s21, 1
    %p165 = por %p163, %p164
    %p166 = scmp.ne.s32.totalorder %s157, %s158
    %p167 = scmp.eq.s32.totalorder %s21, 0
    %p168 = por %p166, %p167
    %p169 = scmp.ne.s32.totalorder %s157, %s158
    %p170 = scmp.eq.s32.totalorder %s22, 1
    %p171 = por %p169, %p170
    %p173 = scmp.ne.s32.totalorder %s158, %s172
    %p174 = scmp.eq.s32.totalorder %s22, 0
    %p175 = por %p173, %p174
    %s177 = sadd.s32 %s176, 1
    %p180 = scmp.eq.s32.totalorder %s16, 1
    %p181 = scmp.ne.s32.totalorder %s176, %s178
    %p182 = scmp.eq.s32.totalorder %s16, 0
    %p183 = por %p181, %p182
    %p184 = scmp.ne.s32.totalorder %s176, %s178
    %p185 = scmp.eq.s32.totalorder %s21, 1
    %p186 = por %p184, %p185
    %p187 = scmp.ne.s32.totalorder %s178, %s179
    %p188 = scmp.eq.s32.totalorder %s21, 0
    %p189 = por %p187, %p188
    %p190 = scmp.ne.s32.totalorder %s178, %s179
    %p191 = scmp.eq.s32.totalorder %s22, 1
    %p192 = por %p190, %p191
    %p194 = scmp.ne.s32.totalorder %s179, %s193
    %p195 = scmp.eq.s32.totalorder %s22, 0
    %p196 = por %p194, %p195
    %s197 = ssub.s32 %s16, %s23
    %p198 = scmp.eq.s32.totalorder %s197, 0
    %s200 = sadd.s32 %s199, 1
    %s201 = scalar_select %p198, %s199, %s200
    %p204 = pneg %p198
    %p205 = scmp.eq.s32.totalorder %s16, 1
    %p206 = por %p204, %p205
    %p207 = scmp.ne.s32.totalorder %s199, %s202
    %p208 = scmp.eq.s32.totalorder %s16, 0
    %p209 = por %p207, %p208
    %p210 = scmp.ne.s32.totalorder %s199, %s202
    %p211 = scmp.eq.s32.totalorder %s21, 1
    %p212 = por %p210, %p211
    %p213 = scmp.ne.s32.totalorder %s202, %s203
    %p214 = scmp.eq.s32.totalorder %s21, 0
    %p215 = por %p213, %p214
    %p216 = scmp.ne.s32.totalorder %s202, %s203
    %p217 = scmp.eq.s32.totalorder %s22, 1
    %p218 = por %p216, %p217
    %p220 = scmp.ne.s32.totalorder %s203, %s219
    %p221 = scmp.eq.s32.totalorder %s22, 0
    %p222 = por %p220, %p221
    %s223 = ssub.s32 %s16, %s23
    %p224 = scmp.eq.s32.totalorder %s223, 0
    %s226 = sadd.s32 %s225, 1
    %s227 = scalar_select %p224, %s225, %s226
    %p230 = pneg %p224
    %p231 = scmp.eq.s32.totalorder %s16, 1
    %p232 = por %p230, %p231
    %p233 = scmp.ne.s32.totalorder %s225, %s228
    %p234 = scmp.eq.s32.totalorder %s16, 0
    %p235 = por %p233, %p234
    %p236 = scmp.ne.s32.totalorder %s225, %s228
    %p237 = scmp.eq.s32.totalorder %s21, 1
    %p238 = por %p236, %p237
    %p239 = scmp.ne.s32.totalorder %s228, %s229
    %p240 = scmp.eq.s32.totalorder %s21, 0
    %p241 = por %p239, %p240
    %p242 = scmp.ne.s32.totalorder %s228, %s229
    %p243 = scmp.eq.s32.totalorder %s22, 1
    %p244 = por %p242, %p243
    %p246 = scmp.ne.s32.totalorder %s229, %s245
    %p247 = scmp.eq.s32.totalorder %s22, 0
    %p248 = por %p246, %p247
    %p249 = scmp.le.s32.totalorder 1, %s16
    %p250 = scmp.lt.s32.totalorder %s16, 3
    %p251 = pnand %p249, %p250
    %p252 = pneg %p251
    // Predicated region
    $region9: #{_lambda_.2} parent=5 // pred_check
      _
    $region10: #{_lambda_.2} parent=5 // pred_check_branch
      %254 = sbr.rel (%p251) target = $region12
    $region11: #{_lambda_.2} parent=5 // pred_region
      %s255 = ssub.s32 %s16, 1
      // Predicated region
      $region13: #{_lambda_.2} parent=11 // pred_check
        %p256 = pneg %p63
      $region14: #{_lambda_.2} parent=11 // pred_check_branch
        %258 = sbr.rel (%p256) target = $region16
      $region15: #{_lambda_.2} parent=11 // pred_region
        _
      $region16: #{_lambda_.2} parent=11 // pred_fallthru
        _
      // Predicated region
      $region17: #{_lambda_.2} parent=11 // pred_check
        %p259 = pneg %p84
      $region18: #{_lambda_.2} parent=11 // pred_check_branch
        %261 = sbr.rel (%p259) target = $region20
      $region19: #{_lambda_.2} parent=11 // pred_region
        _
      $region20: #{_lambda_.2} parent=11 // pred_fallthru
        _
      // Predicated region
      $region21: #{_lambda_.2} parent=11 // pred_check
        %p262 = pneg %p105
      $region22: #{_lambda_.2} parent=11 // pred_check_branch
        %264 = sbr.rel (%p262) target = $region24
      $region23: #{_lambda_.2} parent=11 // pred_region
        _
      $region24: #{_lambda_.2} parent=11 // pred_fallthru
        _
      // Predicated region
      $region25: #{_lambda_.2} parent=11 // pred_check
        %p265 = pneg %p126
      $region26: #{_lambda_.2} parent=11 // pred_check_branch
        %267 = sbr.rel (%p265) target = $region28
      $region27: #{_lambda_.2} parent=11 // pred_region
        _
      $region28: #{_lambda_.2} parent=11 // pred_fallthru
        _
      // Predicated region
      $region29: #{_lambda_.2} parent=11 // pred_check
        %p268 = pneg %p147
      $region30: #{_lambda_.2} parent=11 // pred_check_branch
        %270 = sbr.rel (%p268) target = $region32
      $region31: #{_lambda_.2} parent=11 // pred_region
        _
      $region32: #{_lambda_.2} parent=11 // pred_fallthru
        _
      // Predicated region
      $region33: #{_lambda_.2} parent=11 // pred_check
        %p271 = pneg %p168
      $region34: #{_lambda_.2} parent=11 // pred_check_branch
        %273 = sbr.rel (%p271) target = $region36
      $region35: #{_lambda_.2} parent=11 // pred_region
        _
      $region36: #{_lambda_.2} parent=11 // pred_fallthru
        _
      // Predicated region
      $region37: #{_lambda_.2} parent=11 // pred_check
        %p274 = pneg %p189
      $region38: #{_lambda_.2} parent=11 // pred_check_branch
        %276 = sbr.rel (%p274) target = $region40
      $region39: #{_lambda_.2} parent=11 // pred_region
        _
      $region40: #{_lambda_.2} parent=11 // pred_fallthru
        _
    $region12: #{_lambda_.2} parent=5 // pred_fallthru
      _
    %p277 = scmp.lt.s32.totalorder %s16, 2
    // Predicated region
    $region41: #{_lambda_.2} parent=5 // pred_check
      %p278 = pneg %p277
    $region42: #{_lambda_.2} parent=5 // pred_check_branch
      %280 = sbr.rel (%p278) target = $region44
    $region43: #{_lambda_.2} parent=5 // pred_region
      // Predicated region
      $region45: #{_lambda_.2} parent=43 // pred_check
        %p281 = pneg %p36
      $region46: #{_lambda_.2} parent=43 // pred_check_branch
        %283 = sbr.rel (%p281) target = $region48
      $region47: #{_lambda_.2} parent=43 // pred_region
        %p284 = scmp.lt.s32.totalorder %s16, 1
        %s285 = scalar_select %p284, %s16, 1
        %s286 = smul.addr %s285, 43
        %s287 = smul.addr %s286, 4
        %s288 = scalar_lea.vmem %s0, %s287
      $region48: #{_lambda_.2} parent=43 // pred_fallthru
        _
    $region44: #{_lambda_.2} parent=5 // pred_fallthru
      _
    %p289 = scmp.le.s32.totalorder 1, %s16
    %p290 = scmp.lt.s32.totalorder %s16, 3
    %p291 = pnand %p289, %p290
    %p292 = pneg %p291
    // Predicated region
    $region49: #{_lambda_.2} parent=5 // pred_check
      _
    $region50: #{_lambda_.2} parent=5 // pred_check_branch
      %294 = sbr.rel (%p291) target = $region52
    $region51: #{_lambda_.2} parent=5 // pred_region
      %s295 = ssub.s32 %s16, 1
      %p296 = scmp.lt.s32.totalorder %s21, 1
      %s297 = scalar_select %p296, %s21, 1
      %s298 = smul.addr %s297, 43
      %s299 = smul.addr %s298, 4
      %s300 = scalar_lea.vmem %s0, %s299
      %p301 = pneg %p42
      %p302 = pneg %p39
      %p303 = pneg %p63
      %p304 = pneg %p60
      %p305 = pneg %p84
      %p306 = pneg %p81
      %p307 = pneg %p105
      %p308 = pneg %p102
      %p309 = pneg %p126
      %p310 = pneg %p123
      %p311 = pneg %p147
      %p312 = pneg %p144
      %p313 = pneg %p168
      %p314 = pneg %p165
      %p315 = pneg %p189
      %p316 = pneg %p186
      %p317 = pneg %p215
      %p318 = pneg %p212
      %p319 = scmp.lt.s32.totalorder %s21, 1
      %s320 = scalar_select %p319, %s21, 1
      %s321 = smul.addr %s320, 36
      %s322 = smul.addr %s321, 4
      %s323 = scalar_lea.vmem %s8, %s322
      %p324 = pneg %p241
      %p325 = pneg %p238
      %p326 = scmp.lt.s32.totalorder %s21, 1
      %s327 = scalar_select %p326, %s21, 1
      %s328 = scalar_lea.vmem %s9, %s327
      %p329 = scmp.lt.s32.totalorder %s21, 1
      %s330 = scalar_select %p329, %s21, 1
      %s331 = smul.addr %s330, 43
      %s332 = smul.addr %s331, 4
      %s333 = scalar_lea.vmem %s0, %s332
      %p334 = scmp.lt.s32.totalorder %s21, 1
      %s335 = scalar_select %p334, %s21, 1
      %s336 = smul.addr %s335, 36
      %s337 = smul.addr %s336, 4
      %s338 = scalar_lea.vmem %s8, %s337
      %p339 = scmp.lt.s32.totalorder %s21, 1
      %s340 = scalar_select %p339, %s21, 1
      %s341 = scalar_lea.vmem %s9, %s340
      %v343 = vld [vmem:[%s333] sm:$0xf]
      %v344 = vld [vmem:[%s333 + $0x4] sm:$0xf]
      %v345 = vld [vmem:[%s333 + $0x8] sm:$0xf]
      %v346 = vld [vmem:[%s333 + $0xc] sm:$0xf]
      %v347 = vld [vmem:[%s333 + $0x10] sm:$0xf]
      %v348 = vld [vmem:[%s333 + $0x14] sm:$0xf]
      %v349 = vld [vmem:[%s333 + $0x18] sm:$0xf]
      %v350 = vld [vmem:[%s333 + $0x1c] sm:$0xf]
      %v351 = vld [vmem:[%s333 + $0x20] sm:$0xf]
      %v352 = vld [vmem:[%s333 + $0x24] sm:$0xf]
      %v353 = vld [vmem:[%s333 + $0x28] sm:$0xf]
      %v354 = vld [vmem:[%s333 + $0x2c] sm:$0xf]
      %v355 = vld [vmem:[%s333 + $0x30] sm:$0xf]
      %v356 = vld [vmem:[%s333 + $0x34] sm:$0xf]
      %v357 = vld [vmem:[%s333 + $0x38] sm:$0xf]
      %v358 = vld [vmem:[%s333 + $0x3c] sm:$0xf]
      %v359 = vld [vmem:[%s333 + $0x40] sm:$0xf]
      %v360 = vld [vmem:[%s333 + $0x44] sm:$0xf]
      %v361 = vld [vmem:[%s333 + $0x48] sm:$0xf]
      %v362 = vld [vmem:[%s333 + $0x4c] sm:$0xf]
      %v363 = vld [vmem:[%s333 + $0x50] sm:$0xf]
      %v364 = vld [vmem:[%s333 + $0x54] sm:$0xf]
      %v365 = vld [vmem:[%s333 + $0x58] sm:$0xf]
      %v366 = vld [vmem:[%s333 + $0x5c] sm:$0xf]
      %v367 = vld [vmem:[%s333 + $0x60] sm:$0xf]
      %v368 = vld [vmem:[%s333 + $0x64] sm:$0xf]
      %v369 = vld [vmem:[%s333 + $0x68] sm:$0xf]
      %v370 = vld [vmem:[%s333 + $0x6c] sm:$0xf]
      %v371 = vld [vmem:[%s333 + $0x70] sm:$0xf]
      %v372 = vld [vmem:[%s333 + $0x74] sm:$0xf]
      %v373 = vld [vmem:[%s333 + $0x78] sm:$0xf]
      %v374 = vld [vmem:[%s333 + $0x7c] sm:$0xf]
      %v375 = vld [vmem:[%s333 + $0x80] sm:$0xf]
      %v376 = vld [vmem:[%s333 + $0x84] sm:$0xf]
      %v377 = vld [vmem:[%s333 + $0x88] sm:$0xf]
      %v378 = vld [vmem:[%s333 + $0x8c] sm:$0xf]
      %v379 = vld [vmem:[%s333 + $0x90] sm:$0xf]
      %v380 = vld [vmem:[%s333 + $0x94] sm:$0xf]
      %v381 = vld [vmem:[%s333 + $0x98] sm:$0xf]
      %v382 = vld [vmem:[%s333 + $0x9c] sm:$0xf]
      %v383 = vld [vmem:[%s333 + $0xa0] sm:$0xf]
      %v384 = vld [vmem:[%s333 + $0xa4] sm:$0xf]
      %v385 = vld [vmem:[%s333 + $0xa8] sm:$0x7]
      %v386 = vld [vmem:[%s1] sm:$0xf]
      %v387 = vld [vmem:[%s1 + $0x4] sm:$0xf]
      %v388 = vld [vmem:[%s2] sm:$0x1]
      %v390 = vperm.slane %v388, 0
      %v435 = vunpack.c.l.b16 %v343
      %v436 = vunpack.c.l.b16 %v344
      %v437 = vunpack.c.l.b16 %v345
      %v438 = vunpack.c.l.b16 %v346
      %v439 = vunpack.c.l.b16 %v347
      %v440 = vunpack.c.l.b16 %v348
      %v441 = vunpack.c.l.b16 %v349
      %v442 = vunpack.c.l.b16 %v350
      %v443 = vunpack.c.l.b16 %v351
      %v444 = vunpack.c.l.b16 %v352
      %v445 = vunpack.c.l.b16 %v353
      %v446 = vunpack.c.l.b16 %v354
      %v447 = vunpack.c.l.b16 %v355
      %v448 = vunpack.c.l.b16 %v356
      %v449 = vunpack.c.l.b16 %v357
      %v450 = vunpack.c.l.b16 %v358
      %v451 = vunpack.c.l.b16 %v359
      %v452 = vunpack.c.l.b16 %v360
      %v453 = vunpack.c.l.b16 %v361
      %v454 = vunpack.c.l.b16 %v362
      %v455 = vunpack.c.l.b16 %v363
      %v456 = vunpack.c.l.b16 %v364
      %v457 = vunpack.c.l.b16 %v365
      %v458 = vunpack.c.l.b16 %v366
      %v459 = vunpack.c.l.b16 %v367
      %v460 = vunpack.c.l.b16 %v368
      %v461 = vunpack.c.l.b16 %v369
      %v462 = vunpack.c.l.b16 %v370
      %v463 = vunpack.c.l.b16 %v371
      %v464 = vunpack.c.l.b16 %v372
      %v465 = vunpack.c.l.b16 %v373
      %v466 = vunpack.c.l.b16 %v374
      %v467 = vunpack.c.l.b16 %v375
      %v468 = vunpack.c.l.b16 %v376
      %v469 = vunpack.c.l.b16 %v377
      %v470 = vunpack.c.l.b16 %v378
      %v471 = vunpack.c.l.b16 %v379
      %v472 = vunpack.c.l.b16 %v380
      %v473 = vunpack.c.l.b16 %v381
      %v474 = vunpack.c.l.b16 %v382
      %v475 = vunpack.c.l.b16 %v383
      %v476 = vunpack.c.l.b16 %v384
      %v477 = vunpack.c.l.b16 %v385
      %v478 = vpack.c.b16 %v436, %v435
      %v479 = vpack.c.b16 %v438, %v437
      %v480 = vpack.c.b16 %v440, %v439
      %v481 = vpack.c.b16 %v442, %v441
      %v482 = vpack.c.b16 %v444, %v443
      %v483 = vpack.c.b16 %v446, %v445
      %v484 = vpack.c.b16 %v448, %v447
      %v485 = vpack.c.b16 %v450, %v449
      %v486 = vpack.c.b16 %v452, %v451
      %v487 = vpack.c.b16 %v454, %v453
      %v488 = vpack.c.b16 %v456, %v455
      %v489 = vpack.c.b16 %v458, %v457
      %v490 = vpack.c.b16 %v460, %v459
      %v491 = vpack.c.b16 %v462, %v461
      %v492 = vpack.c.b16 %v464, %v463
      %v493 = vpack.c.b16 %v466, %v465
      %v494 = vpack.c.b16 %v468, %v467
      %v495 = vpack.c.b16 %v470, %v469
      %v496 = vpack.c.b16 %v472, %v471
      %v497 = vpack.c.b16 %v474, %v473
      %v498 = vpack.c.b16 %v476, %v475
      %v499 = vpack.c.b16 %v477, %v477
      %v502 = vunpack.c.l.b16 %v386
      %v503 = vunpack.c.l.b16 %v387
      %v504 = vpack.c.b16 %v503, %v502
      %vm506 = vcmask 130048
      %v508 = vsel %vm506, %v478, 0
      %v511 = vsel %vm506, %v479, 0
      %v514 = vsel %vm506, %v480, 0
      %v517 = vsel %vm506, %v481, 0
      %v520 = vsel %vm506, %v482, 0
      %v523 = vsel %vm506, %v483, 0
      %v526 = vsel %vm506, %v484, 0
      %v529 = vsel %vm506, %v485, 0
      %v532 = vsel %vm506, %v486, 0
      %v535 = vsel %vm506, %v487, 0
      %v538 = vsel %vm506, %v488, 0
      %v541 = vsel %vm506, %v489, 0
      %v544 = vsel %vm506, %v490, 0
      %v547 = vsel %vm506, %v491, 0
      %v550 = vsel %vm506, %v492, 0
      %v553 = vsel %vm506, %v493, 0
      %v556 = vsel %vm506, %v494, 0
      %v559 = vsel %vm506, %v495, 0
      %v562 = vsel %vm506, %v496, 0
      %v565 = vsel %vm506, %v497, 0
      %v568 = vsel %vm506, %v498, 0
      %v571 = vsel %vm506, %v499, 0
      %573 = vmatpush.bf16.msra.mxu0 0
      %574 = vmatpush.bf16.msra.mxu0 0
      %575 = vmatpush.bf16.msra.mxu0 0
      %576 = vmatpush.bf16.msra.mxu0 0
      %577 = vmatpush.bf16.msra.mxu0 0
      %578 = vmatpush.bf16.msra.mxu0 0
      %579 = vmatpush.bf16.msra.mxu0 0
      %580 = vmatpush.bf16.msra.mxu0 %v504
      %581 = vmatmul.bf16.gmra.mxu0 %v508
      %v582 = vpop.f32.mrf.mxu0
      %v583 = vadd.f32 %v390, %v582
      %v584 = vpop.f32.mrf.mxu0
      %v585 = vadd.f32 %v390, %v584
      %586 = vmatmul.bf16.gmra.mxu0 %v511
      %v587 = vpop.f32.mrf.mxu0
      %v588 = vadd.f32 %v390, %v587
      %v589 = vpop.f32.mrf.mxu0
      %v590 = vadd.f32 %v390, %v589
      %591 = vmatmul.bf16.gmra.mxu0 %v514
      %v592 = vpop.f32.mrf.mxu0
      %v593 = vadd.f32 %v390, %v592
      %v594 = vpop.f32.mrf.mxu0
      %v595 = vadd.f32 %v390, %v594
      %596 = vmatmul.bf16.gmra.mxu0 %v517
      %v597 = vpop.f32.mrf.mxu0
      %v598 = vadd.f32 %v390, %v597
      %v599 = vpop.f32.mrf.mxu0
      %v600 = vadd.f32 %v390, %v599
      %601 = vmatmul.bf16.gmra.mxu0 %v520
      %v602 = vpop.f32.mrf.mxu0
      %v603 = vadd.f32 %v390, %v602
      %v604 = vpop.f32.mrf.mxu0
      %v605 = vadd.f32 %v390, %v604
      %606 = vmatmul.bf16.gmra.mxu0 %v523
      %v607 = vpop.f32.mrf.mxu0
      %v608 = vadd.f32 %v390, %v607
      %v609 = vpop.f32.mrf.mxu0
      %v610 = vadd.f32 %v390, %v609
      %611 = vmatmul.bf16.gmra.mxu0 %v526
      %v612 = vpop.f32.mrf.mxu0
      %v613 = vadd.f32 %v390, %v612
      %v614 = vpop.f32.mrf.mxu0
      %v615 = vadd.f32 %v390, %v614
      %616 = vmatmul.bf16.gmra.mxu0 %v529
      %v617 = vpop.f32.mrf.mxu0
      %v618 = vadd.f32 %v390, %v617
      %v619 = vpop.f32.mrf.mxu0
      %v620 = vadd.f32 %v390, %v619
      %621 = vmatmul.bf16.gmra.mxu0 %v532
      %v622 = vpop.f32.mrf.mxu0
      %v623 = vadd.f32 %v390, %v622
      %v624 = vpop.f32.mrf.mxu0
      %v625 = vadd.f32 %v390, %v624
      %626 = vmatmul.bf16.gmra.mxu0 %v535
      %v627 = vpop.f32.mrf.mxu0
      %v628 = vadd.f32 %v390, %v627
      %v629 = vpop.f32.mrf.mxu0
      %v630 = vadd.f32 %v390, %v629
      %631 = vmatmul.bf16.gmra.mxu0 %v538
      %v632 = vpop.f32.mrf.mxu0
      %v633 = vadd.f32 %v390, %v632
      %v634 = vpop.f32.mrf.mxu0
      %v635 = vadd.f32 %v390, %v634
      %636 = vmatmul.bf16.gmra.mxu0 %v541
      %v637 = vpop.f32.mrf.mxu0
      %v638 = vadd.f32 %v390, %v637
      %v639 = vpop.f32.mrf.mxu0
      %v640 = vadd.f32 %v390, %v639
      %641 = vmatmul.bf16.gmra.mxu0 %v544
      %v642 = vpop.f32.mrf.mxu0
      %v643 = vadd.f32 %v390, %v642
      %v644 = vpop.f32.mrf.mxu0
      %v645 = vadd.f32 %v390, %v644
      %646 = vmatmul.bf16.gmra.mxu0 %v547
      %v647 = vpop.f32.mrf.mxu0
      %v648 = vadd.f32 %v390, %v647
      %v649 = vpop.f32.mrf.mxu0
      %v650 = vadd.f32 %v390, %v649
      %651 = vmatmul.bf16.gmra.mxu0 %v550
      %v652 = vpop.f32.mrf.mxu0
      %v653 = vadd.f32 %v390, %v652
      %v654 = vpop.f32.mrf.mxu0
      %v655 = vadd.f32 %v390, %v654
      %656 = vmatmul.bf16.gmra.mxu0 %v553
      %v657 = vpop.f32.mrf.mxu0
      %v658 = vadd.f32 %v390, %v657
      %v659 = vpop.f32.mrf.mxu0
      %v660 = vadd.f32 %v390, %v659
      %661 = vmatmul.bf16.gmra.mxu0 %v556
      %v662 = vpop.f32.mrf.mxu0
      %v663 = vadd.f32 %v390, %v662
      %v664 = vpop.f32.mrf.mxu0
      %v665 = vadd.f32 %v390, %v664
      %666 = vmatmul.bf16.gmra.mxu0 %v559
      %v667 = vpop.f32.mrf.mxu0
      %v668 = vadd.f32 %v390, %v667
      %v669 = vpop.f32.mrf.mxu0
      %v670 = vadd.f32 %v390, %v669
      %671 = vmatmul.bf16.gmra.mxu0 %v562
      %v672 = vpop.f32.mrf.mxu0
      %v673 = vadd.f32 %v390, %v672
      %v674 = vpop.f32.mrf.mxu0
      %v675 = vadd.f32 %v390, %v674
      %676 = vmatmul.bf16.gmra.mxu0 %v565
      %v677 = vpop.f32.mrf.mxu0
      %v678 = vadd.f32 %v390, %v677
      %v679 = vpop.f32.mrf.mxu0
      %v680 = vadd.f32 %v390, %v679
      %681 = vmatmul.bf16.gmra.mxu0 %v568
      %v682 = vpop.f32.mrf.mxu0
      %v683 = vadd.f32 %v390, %v682
      %v684 = vpop.f32.mrf.mxu0
      %685 = vmatmul.bf16.gmra.mxu0 %v571
      %v686 = vpop.f32.mrf.mxu0
      %v687 = vpop.f32.mrf.mxu0
      %688 = vdwg.mxu0
      %v689 = vxor.u32 %v583, 2147483648
      %v690 = vxor.u32 %v585, 2147483648
      %v691 = vxor.u32 %v588, 2147483648
      %v692 = vxor.u32 %v590, 2147483648
      %v693 = vxor.u32 %v593, 2147483648
      %v694 = vxor.u32 %v595, 2147483648
      %v695 = vxor.u32 %v598, 2147483648
      %v696 = vxor.u32 %v600, 2147483648
      %v697 = vxor.u32 %v603, 2147483648
      %v698 = vxor.u32 %v605, 2147483648
      %v699 = vxor.u32 %v608, 2147483648
      %v700 = vxor.u32 %v610, 2147483648
      %v701 = vxor.u32 %v613, 2147483648
      %v702 = vxor.u32 %v615, 2147483648
      %v703 = vxor.u32 %v618, 2147483648
      %v704 = vxor.u32 %v620, 2147483648
      %v705 = vxor.u32 %v623, 2147483648
      %v706 = vxor.u32 %v625, 2147483648
      %v707 = vxor.u32 %v628, 2147483648
      %v708 = vxor.u32 %v630, 2147483648
      %v709 = vxor.u32 %v633, 2147483648
      %v710 = vxor.u32 %v635, 2147483648
      %v711 = vxor.u32 %v638, 2147483648
      %v712 = vxor.u32 %v640, 2147483648
      %v713 = vxor.u32 %v643, 2147483648
      %v714 = vxor.u32 %v645, 2147483648
      %v715 = vxor.u32 %v648, 2147483648
      %v716 = vxor.u32 %v650, 2147483648
      %v717 = vxor.u32 %v653, 2147483648
      %v718 = vxor.u32 %v655, 2147483648
      %v719 = vxor.u32 %v658, 2147483648
      %v720 = vxor.u32 %v660, 2147483648
      %v721 = vxor.u32 %v663, 2147483648
      %v722 = vxor.u32 %v665, 2147483648
      %v723 = vxor.u32 %v668, 2147483648
      %v724 = vxor.u32 %v670, 2147483648
      %v725 = vxor.u32 %v673, 2147483648
      %v726 = vxor.u32 %v675, 2147483648
      %v727 = vxor.u32 %v678, 2147483648
      %v728 = vxor.u32 %v680, 2147483648
      %v729 = vxor.u32 %v683, 2147483648
      %v730 = vmul.f32 %v689, 1.442695
      %v731 = vpow.pop %v730
      %v732 = vmul.f32 %v690, 1.442695
      %v733 = vpow.pop %v732
      %v734 = vmul.f32 %v691, 1.442695
      %v735 = vpow.pop %v734
      %v736 = vmul.f32 %v692, 1.442695
      %v737 = vpow.pop %v736
      %v738 = vmul.f32 %v693, 1.442695
      %v739 = vpow.pop %v738
      %v740 = vmul.f32 %v694, 1.442695
      %v741 = vpow.pop %v740
      %v742 = vmul.f32 %v695, 1.442695
      %v743 = vpow.pop %v742
      %v744 = vmul.f32 %v696, 1.442695
      %v745 = vpow.pop %v744
      %v746 = vmul.f32 %v697, 1.442695
      %v747 = vpow.pop %v746
      %v748 = vmul.f32 %v698, 1.442695
      %v749 = vpow.pop %v748
      %v750 = vmul.f32 %v699, 1.442695
      %v751 = vpow.pop %v750
      %v752 = vmul.f32 %v700, 1.442695
      %v753 = vpow.pop %v752
      %v754 = vmul.f32 %v701, 1.442695
      %v755 = vpow.pop %v754
      %v756 = vmul.f32 %v702, 1.442695
      %v757 = vpow.pop %v756
      %v758 = vmul.f32 %v703, 1.442695
      %v759 = vpow.pop %v758
      %v760 = vmul.f32 %v704, 1.442695
      %v761 = vpow.pop %v760
      %v762 = vmul.f32 %v705, 1.442695
      %v763 = vpow.pop %v762
      %v764 = vmul.f32 %v706, 1.442695
      %v765 = vpow.pop %v764
      %v766 = vmul.f32 %v707, 1.442695
      %v767 = vpow.pop %v766
      %v768 = vmul.f32 %v708, 1.442695
      %v769 = vpow.pop %v768
      %v770 = vmul.f32 %v709, 1.442695
      %v771 = vpow.pop %v770
      %v772 = vmul.f32 %v710, 1.442695
      %v773 = vpow.pop %v772
      %v774 = vmul.f32 %v711, 1.442695
      %v775 = vpow.pop %v774
      %v776 = vmul.f32 %v712, 1.442695
      %v777 = vpow.pop %v776
      %v778 = vmul.f32 %v713, 1.442695
      %v779 = vpow.pop %v778
      %v780 = vmul.f32 %v714, 1.442695
      %v781 = vpow.pop %v780
      %v782 = vmul.f32 %v715, 1.442695
      %v783 = vpow.pop %v782
      %v784 = vmul.f32 %v716, 1.442695
      %v785 = vpow.pop %v784
      %v786 = vmul.f32 %v717, 1.442695
      %v787 = vpow.pop %v786
      %v788 = vmul.f32 %v718, 1.442695
      %v789 = vpow.pop %v788
      %v790 = vmul.f32 %v719, 1.442695
      %v791 = vpow.pop %v790
      %v792 = vmul.f32 %v720, 1.442695
      %v793 = vpow.pop %v792
      %v794 = vmul.f32 %v721, 1.442695
      %v795 = vpow.pop %v794
      %v796 = vmul.f32 %v722, 1.442695
      %v797 = vpow.pop %v796
      %v798 = vmul.f32 %v723, 1.442695
      %v799 = vpow.pop %v798
      %v800 = vmul.f32 %v724, 1.442695
      %v801 = vpow.pop %v800
      %v802 = vmul.f32 %v725, 1.442695
      %v803 = vpow.pop %v802
      %v804 = vmul.f32 %v726, 1.442695
      %v805 = vpow.pop %v804
      %v806 = vmul.f32 %v727, 1.442695
      %v807 = vpow.pop %v806
      %v808 = vmul.f32 %v728, 1.442695
      %v809 = vpow.pop %v808
      %v810 = vmul.f32 %v729, 1.442695
      %v811 = vpow.pop %v810
      %v812 = vadd.f32 %v731, 1.0
      %v813 = vadd.f32 %v733, 1.0
      %v814 = vadd.f32 %v735, 1.0
      %v815 = vadd.f32 %v737, 1.0
      %v816 = vadd.f32 %v739, 1.0
      %v817 = vadd.f32 %v741, 1.0
      %v818 = vadd.f32 %v743, 1.0
      %v819 = vadd.f32 %v745, 1.0
      %v820 = vadd.f32 %v747, 1.0
      %v821 = vadd.f32 %v749, 1.0
      %v822 = vadd.f32 %v751, 1.0
      %v823 = vadd.f32 %v753, 1.0
      %v824 = vadd.f32 %v755, 1.0
      %v825 = vadd.f32 %v757, 1.0
      %v826 = vadd.f32 %v759, 1.0
      %v827 = vadd.f32 %v761, 1.0
      %v828 = vadd.f32 %v763, 1.0
      %v829 = vadd.f32 %v765, 1.0
      %v830 = vadd.f32 %v767, 1.0
      %v831 = vadd.f32 %v769, 1.0
      %v832 = vadd.f32 %v771, 1.0
      %v833 = vadd.f32 %v773, 1.0
      %v834 = vadd.f32 %v775, 1.0
      %v835 = vadd.f32 %v777, 1.0
      %v836 = vadd.f32 %v779, 1.0
      %v837 = vadd.f32 %v781, 1.0
      %v838 = vadd.f32 %v783, 1.0
      %v839 = vadd.f32 %v785, 1.0
      %v840 = vadd.f32 %v787, 1.0
      %v841 = vadd.f32 %v789, 1.0
      %v842 = vadd.f32 %v791, 1.0
      %v843 = vadd.f32 %v793, 1.0
      %v844 = vadd.f32 %v795, 1.0
      %v845 = vadd.f32 %v797, 1.0
      %v846 = vadd.f32 %v799, 1.0
      %v847 = vadd.f32 %v801, 1.0
      %v848 = vadd.f32 %v803, 1.0
      %v849 = vadd.f32 %v805, 1.0
      %v850 = vadd.f32 %v807, 1.0
      %v851 = vadd.f32 %v809, 1.0
      %v852 = vadd.f32 %v811, 1.0
      %v853 = vrcp.pop %v812
      %v854 = vmul.f32 %v812, %v853
      %v855 = vsub.f32 1.0, %v854
      %v856 = vmul.f32 %v853, %v855
      %v857 = vadd.f32 %v853, %v856
      %vm858 = vweird.f32 %v812
      %vm859 = vweird.f32 %v853
      %vm860 = vmor %vm858, %vm859
      %v861 = vsel %vm860, %v853, %v857
      %v862 = vand.u32 2147483647, %v812
      %vm863 = vcmp.eq.f32.partialorder %v862, 8.507059e+37
      %v864 = vand.u32 %v812, 2147483648
      %v865 = vor.u32 1.1754944e-38, %v864
      %v866 = vsel %vm863, %v865, %v861
      %v867 = vmul.f32 1.0, %v866
      %v868 = vrcp.pop %v813
      %v869 = vmul.f32 %v813, %v868
      %v870 = vsub.f32 1.0, %v869
      %v871 = vmul.f32 %v868, %v870
      %v872 = vadd.f32 %v868, %v871
      %vm873 = vweird.f32 %v813
      %vm874 = vweird.f32 %v868
      %vm875 = vmor %vm873, %vm874
      %v876 = vsel %vm875, %v868, %v872
      %v877 = vand.u32 2147483647, %v813
      %vm878 = vcmp.eq.f32.partialorder %v877, 8.507059e+37
      %v879 = vand.u32 %v813, 2147483648
      %v880 = vor.u32 1.1754944e-38, %v879
      %v881 = vsel %vm878, %v880, %v876
      %v882 = vmul.f32 1.0, %v881
      %v883 = vrcp.pop %v814
      %v884 = vmul.f32 %v814, %v883
      %v885 = vsub.f32 1.0, %v884
      %v886 = vmul.f32 %v883, %v885
      %v887 = vadd.f32 %v883, %v886
      %vm888 = vweird.f32 %v814
      %vm889 = vweird.f32 %v883
      %vm890 = vmor %vm888, %vm889
      %v891 = vsel %vm890, %v883, %v887
      %v892 = vand.u32 2147483647, %v814
      %vm893 = vcmp.eq.f32.partialorder %v892, 8.507059e+37
      %v894 = vand.u32 %v814, 2147483648
      %v895 = vor.u32 1.1754944e-38, %v894
      %v896 = vsel %vm893, %v895, %v891
      %v897 = vmul.f32 1.0, %v896
      %v898 = vrcp.pop %v815
      %v899 = vmul.f32 %v815, %v898
      %v900 = vsub.f32 1.0, %v899
      %v901 = vmul.f32 %v898, %v900
      %v902 = vadd.f32 %v898, %v901
      %vm903 = vweird.f32 %v815
      %vm904 = vweird.f32 %v898
      %vm905 = vmor %vm903, %vm904
      %v906 = vsel %vm905, %v898, %v902
      %v907 = vand.u32 2147483647, %v815
      %vm908 = vcmp.eq.f32.partialorder %v907, 8.507059e+37
      %v909 = vand.u32 %v815, 2147483648
      %v910 = vor.u32 1.1754944e-38, %v909
      %v911 = vsel %vm908, %v910, %v906
      %v912 = vmul.f32 1.0, %v911
      %v913 = vrcp.pop %v816
      %v914 = vmul.f32 %v816, %v913
      %v915 = vsub.f32 1.0, %v914
      %v916 = vmul.f32 %v913, %v915
      %v917 = vadd.f32 %v913, %v916
      %vm918 = vweird.f32 %v816
      %vm919 = vweird.f32 %v913
      %vm920 = vmor %vm918, %vm919
      %v921 = vsel %vm920, %v913, %v917
      %v922 = vand.u32 2147483647, %v816
      %vm923 = vcmp.eq.f32.partialorder %v922, 8.507059e+37
      %v924 = vand.u32 %v816, 2147483648
      %v925 = vor.u32 1.1754944e-38, %v924
      %v926 = vsel %vm923, %v925, %v921
      %v927 = vmul.f32 1.0, %v926
      %v928 = vrcp.pop %v817
      %v929 = vmul.f32 %v817, %v928
      %v930 = vsub.f32 1.0, %v929
      %v931 = vmul.f32 %v928, %v930
      %v932 = vadd.f32 %v928, %v931
      %vm933 = vweird.f32 %v817
      %vm934 = vweird.f32 %v928
      %vm935 = vmor %vm933, %vm934
      %v936 = vsel %vm935, %v928, %v932
      %v937 = vand.u32 2147483647, %v817
      %vm938 = vcmp.eq.f32.partialorder %v937, 8.507059e+37
      %v939 = vand.u32 %v817, 2147483648
      %v940 = vor.u32 1.1754944e-38, %v939
      %v941 = vsel %vm938, %v940, %v936
      %v942 = vmul.f32 1.0, %v941
      %v943 = vrcp.pop %v818
      %v944 = vmul.f32 %v818, %v943
      %v945 = vsub.f32 1.0, %v944
      %v946 = vmul.f32 %v943, %v945
      %v947 = vadd.f32 %v943, %v946
      %vm948 = vweird.f32 %v818
      %vm949 = vweird.f32 %v943
      %vm950 = vmor %vm948, %vm949
      %v951 = vsel %vm950, %v943, %v947
      %v952 = vand.u32 2147483647, %v818
      %vm953 = vcmp.eq.f32.partialorder %v952, 8.507059e+37
      %v954 = vand.u32 %v818, 2147483648
      %v955 = vor.u32 1.1754944e-38, %v954
      %v956 = vsel %vm953, %v955, %v951
      %v957 = vmul.f32 1.0, %v956
      %v958 = vrcp.pop %v819
      %v959 = vmul.f32 %v819, %v958
      %v960 = vsub.f32 1.0, %v959
      %v961 = vmul.f32 %v958, %v960
      %v962 = vadd.f32 %v958, %v961
      %vm963 = vweird.f32 %v819
      %vm964 = vweird.f32 %v958
      %vm965 = vmor %vm963, %vm964
      %v966 = vsel %vm965, %v958, %v962
      %v967 = vand.u32 2147483647, %v819
      %vm968 = vcmp.eq.f32.partialorder %v967, 8.507059e+37
      %v969 = vand.u32 %v819, 2147483648
      %v970 = vor.u32 1.1754944e-38, %v969
      %v971 = vsel %vm968, %v970, %v966
      %v972 = vmul.f32 1.0, %v971
      %v973 = vrcp.pop %v820
      %v974 = vmul.f32 %v820, %v973
      %v975 = vsub.f32 1.0, %v974
      %v976 = vmul.f32 %v973, %v975
      %v977 = vadd.f32 %v973, %v976
      %vm978 = vweird.f32 %v820
      %vm979 = vweird.f32 %v973
      %vm980 = vmor %vm978, %vm979
      %v981 = vsel %vm980, %v973, %v977
      %v982 = vand.u32 2147483647, %v820
      %vm983 = vcmp.eq.f32.partialorder %v982, 8.507059e+37
      %v984 = vand.u32 %v820, 2147483648
      %v985 = vor.u32 1.1754944e-38, %v984
      %v986 = vsel %vm983, %v985, %v981
      %v987 = vmul.f32 1.0, %v986
      %v988 = vrcp.pop %v821
      %v989 = vmul.f32 %v821, %v988
      %v990 = vsub.f32 1.0, %v989
      %v991 = vmul.f32 %v988, %v990
      %v992 = vadd.f32 %v988, %v991
      %vm993 = vweird.f32 %v821
      %vm994 = vweird.f32 %v988
      %vm995 = vmor %vm993, %vm994
      %v996 = vsel %vm995, %v988, %v992
      %v997 = vand.u32 2147483647, %v821
      %vm998 = vcmp.eq.f32.partialorder %v997, 8.507059e+37
      %v999 = vand.u32 %v821, 2147483648
      %v1000 = vor.u32 1.1754944e-38, %v999
      %v1001 = vsel %vm998, %v1000, %v996
      %v1002 = vmul.f32 1.0, %v1001
      %v1003 = vrcp.pop %v822
      %v1004 = vmul.f32 %v822, %v1003
      %v1005 = vsub.f32 1.0, %v1004
      %v1006 = vmul.f32 %v1003, %v1005
      %v1007 = vadd.f32 %v1003, %v1006
      %vm1008 = vweird.f32 %v822
      %vm1009 = vweird.f32 %v1003
      %vm1010 = vmor %vm1008, %vm1009
      %v1011 = vsel %vm1010, %v1003, %v1007
      %v1012 = vand.u32 2147483647, %v822
      %vm1013 = vcmp.eq.f32.partialorder %v1012, 8.507059e+37
      %v1014 = vand.u32 %v822, 2147483648
      %v1015 = vor.u32 1.1754944e-38, %v1014
      %v1016 = vsel %vm1013, %v1015, %v1011
      %v1017 = vmul.f32 1.0, %v1016
      %v1018 = vrcp.pop %v823
      %v1019 = vmul.f32 %v823, %v1018
      %v1020 = vsub.f32 1.0, %v1019
      %v1021 = vmul.f32 %v1018, %v1020
      %v1022 = vadd.f32 %v1018, %v1021
      %vm1023 = vweird.f32 %v823
      %vm1024 = vweird.f32 %v1018
      %vm1025 = vmor %vm1023, %vm1024
      %v1026 = vsel %vm1025, %v1018, %v1022
      %v1027 = vand.u32 2147483647, %v823
      %vm1028 = vcmp.eq.f32.partialorder %v1027, 8.507059e+37
      %v1029 = vand.u32 %v823, 2147483648
      %v1030 = vor.u32 1.1754944e-38, %v1029
      %v1031 = vsel %vm1028, %v1030, %v1026
      %v1032 = vmul.f32 1.0, %v1031
      %v1033 = vrcp.pop %v824
      %v1034 = vmul.f32 %v824, %v1033
      %v1035 = vsub.f32 1.0, %v1034
      %v1036 = vmul.f32 %v1033, %v1035
      %v1037 = vadd.f32 %v1033, %v1036
      %vm1038 = vweird.f32 %v824
      %vm1039 = vweird.f32 %v1033
      %vm1040 = vmor %vm1038, %vm1039
      %v1041 = vsel %vm1040, %v1033, %v1037
      %v1042 = vand.u32 2147483647, %v824
      %vm1043 = vcmp.eq.f32.partialorder %v1042, 8.507059e+37
      %v1044 = vand.u32 %v824, 2147483648
      %v1045 = vor.u32 1.1754944e-38, %v1044
      %v1046 = vsel %vm1043, %v1045, %v1041
      %v1047 = vmul.f32 1.0, %v1046
      %v1048 = vrcp.pop %v825
      %v1049 = vmul.f32 %v825, %v1048
      %v1050 = vsub.f32 1.0, %v1049
      %v1051 = vmul.f32 %v1048, %v1050
      %v1052 = vadd.f32 %v1048, %v1051
      %vm1053 = vweird.f32 %v825
      %vm1054 = vweird.f32 %v1048
      %vm1055 = vmor %vm1053, %vm1054
      %v1056 = vsel %vm1055, %v1048, %v1052
      %v1057 = vand.u32 2147483647, %v825
      %vm1058 = vcmp.eq.f32.partialorder %v1057, 8.507059e+37
      %v1059 = vand.u32 %v825, 2147483648
      %v1060 = vor.u32 1.1754944e-38, %v1059
      %v1061 = vsel %vm1058, %v1060, %v1056
      %v1062 = vmul.f32 1.0, %v1061
      %v1063 = vrcp.pop %v826
      %v1064 = vmul.f32 %v826, %v1063
      %v1065 = vsub.f32 1.0, %v1064
      %v1066 = vmul.f32 %v1063, %v1065
      %v1067 = vadd.f32 %v1063, %v1066
      %vm1068 = vweird.f32 %v826
      %vm1069 = vweird.f32 %v1063
      %vm1070 = vmor %vm1068, %vm1069
      %v1071 = vsel %vm1070, %v1063, %v1067
      %v1072 = vand.u32 2147483647, %v826
      %vm1073 = vcmp.eq.f32.partialorder %v1072, 8.507059e+37
      %v1074 = vand.u32 %v826, 2147483648
      %v1075 = vor.u32 1.1754944e-38, %v1074
      %v1076 = vsel %vm1073, %v1075, %v1071
      %v1077 = vmul.f32 1.0, %v1076
      %v1078 = vrcp.pop %v827
      %v1079 = vmul.f32 %v827, %v1078
      %v1080 = vsub.f32 1.0, %v1079
      %v1081 = vmul.f32 %v1078, %v1080
      %v1082 = vadd.f32 %v1078, %v1081
      %vm1083 = vweird.f32 %v827
      %vm1084 = vweird.f32 %v1078
      %vm1085 = vmor %vm1083, %vm1084
      %v1086 = vsel %vm1085, %v1078, %v1082
      %v1087 = vand.u32 2147483647, %v827
      %vm1088 = vcmp.eq.f32.partialorder %v1087, 8.507059e+37
      %v1089 = vand.u32 %v827, 2147483648
      %v1090 = vor.u32 1.1754944e-38, %v1089
      %v1091 = vsel %vm1088, %v1090, %v1086
      %v1092 = vmul.f32 1.0, %v1091
      %v1093 = vrcp.pop %v828
      %v1094 = vmul.f32 %v828, %v1093
      %v1095 = vsub.f32 1.0, %v1094
      %v1096 = vmul.f32 %v1093, %v1095
      %v1097 = vadd.f32 %v1093, %v1096
      %vm1098 = vweird.f32 %v828
      %vm1099 = vweird.f32 %v1093
      %vm1100 = vmor %vm1098, %vm1099
      %v1101 = vsel %vm1100, %v1093, %v1097
      %v1102 = vand.u32 2147483647, %v828
      %vm1103 = vcmp.eq.f32.partialorder %v1102, 8.507059e+37
      %v1104 = vand.u32 %v828, 2147483648
      %v1105 = vor.u32 1.1754944e-38, %v1104
      %v1106 = vsel %vm1103, %v1105, %v1101
      %v1107 = vmul.f32 1.0, %v1106
      %v1108 = vrcp.pop %v829
      %v1109 = vmul.f32 %v829, %v1108
      %v1110 = vsub.f32 1.0, %v1109
      %v1111 = vmul.f32 %v1108, %v1110
      %v1112 = vadd.f32 %v1108, %v1111
      %vm1113 = vweird.f32 %v829
      %vm1114 = vweird.f32 %v1108
      %vm1115 = vmor %vm1113, %vm1114
      %v1116 = vsel %vm1115, %v1108, %v1112
      %v1117 = vand.u32 2147483647, %v829
      %vm1118 = vcmp.eq.f32.partialorder %v1117, 8.507059e+37
      %v1119 = vand.u32 %v829, 2147483648
      %v1120 = vor.u32 1.1754944e-38, %v1119
      %v1121 = vsel %vm1118, %v1120, %v1116
      %v1122 = vmul.f32 1.0, %v1121
      %v1123 = vrcp.pop %v830
      %v1124 = vmul.f32 %v830, %v1123
      %v1125 = vsub.f32 1.0, %v1124
      %v1126 = vmul.f32 %v1123, %v1125
      %v1127 = vadd.f32 %v1123, %v1126
      %vm1128 = vweird.f32 %v830
      %vm1129 = vweird.f32 %v1123
      %vm1130 = vmor %vm1128, %vm1129
      %v1131 = vsel %vm1130, %v1123, %v1127
      %v1132 = vand.u32 2147483647, %v830
      %vm1133 = vcmp.eq.f32.partialorder %v1132, 8.507059e+37
      %v1134 = vand.u32 %v830, 2147483648
      %v1135 = vor.u32 1.1754944e-38, %v1134
      %v1136 = vsel %vm1133, %v1135, %v1131
      %v1137 = vmul.f32 1.0, %v1136
      %v1138 = vrcp.pop %v831
      %v1139 = vmul.f32 %v831, %v1138
      %v1140 = vsub.f32 1.0, %v1139
      %v1141 = vmul.f32 %v1138, %v1140
      %v1142 = vadd.f32 %v1138, %v1141
      %vm1143 = vweird.f32 %v831
      %vm1144 = vweird.f32 %v1138
      %vm1145 = vmor %vm1143, %vm1144
      %v1146 = vsel %vm1145, %v1138, %v1142
      %v1147 = vand.u32 2147483647, %v831
      %vm1148 = vcmp.eq.f32.partialorder %v1147, 8.507059e+37
      %v1149 = vand.u32 %v831, 2147483648
      %v1150 = vor.u32 1.1754944e-38, %v1149
      %v1151 = vsel %vm1148, %v1150, %v1146
      %v1152 = vmul.f32 1.0, %v1151
      %v1153 = vrcp.pop %v832
      %v1154 = vmul.f32 %v832, %v1153
      %v1155 = vsub.f32 1.0, %v1154
      %v1156 = vmul.f32 %v1153, %v1155
      %v1157 = vadd.f32 %v1153, %v1156
      %vm1158 = vweird.f32 %v832
      %vm1159 = vweird.f32 %v1153
      %vm1160 = vmor %vm1158, %vm1159
      %v1161 = vsel %vm1160, %v1153, %v1157
      %v1162 = vand.u32 2147483647, %v832
      %vm1163 = vcmp.eq.f32.partialorder %v1162, 8.507059e+37
      %v1164 = vand.u32 %v832, 2147483648
      %v1165 = vor.u32 1.1754944e-38, %v1164
      %v1166 = vsel %vm1163, %v1165, %v1161
      %v1167 = vmul.f32 1.0, %v1166
      %v1168 = vrcp.pop %v833
      %v1169 = vmul.f32 %v833, %v1168
      %v1170 = vsub.f32 1.0, %v1169
      %v1171 = vmul.f32 %v1168, %v1170
      %v1172 = vadd.f32 %v1168, %v1171
      %vm1173 = vweird.f32 %v833
      %vm1174 = vweird.f32 %v1168
      %vm1175 = vmor %vm1173, %vm1174
      %v1176 = vsel %vm1175, %v1168, %v1172
      %v1177 = vand.u32 2147483647, %v833
      %vm1178 = vcmp.eq.f32.partialorder %v1177, 8.507059e+37
      %v1179 = vand.u32 %v833, 2147483648
      %v1180 = vor.u32 1.1754944e-38, %v1179
      %v1181 = vsel %vm1178, %v1180, %v1176
      %v1182 = vmul.f32 1.0, %v1181
      %v1183 = vrcp.pop %v834
      %v1184 = vmul.f32 %v834, %v1183
      %v1185 = vsub.f32 1.0, %v1184
      %v1186 = vmul.f32 %v1183, %v1185
      %v1187 = vadd.f32 %v1183, %v1186
      %vm1188 = vweird.f32 %v834
      %vm1189 = vweird.f32 %v1183
      %vm1190 = vmor %vm1188, %vm1189
      %v1191 = vsel %vm1190, %v1183, %v1187
      %v1192 = vand.u32 2147483647, %v834
      %vm1193 = vcmp.eq.f32.partialorder %v1192, 8.507059e+37
      %v1194 = vand.u32 %v834, 2147483648
      %v1195 = vor.u32 1.1754944e-38, %v1194
      %v1196 = vsel %vm1193, %v1195, %v1191
      %v1197 = vmul.f32 1.0, %v1196
      %v1198 = vrcp.pop %v835
      %v1199 = vmul.f32 %v835, %v1198
      %v1200 = vsub.f32 1.0, %v1199
      %v1201 = vmul.f32 %v1198, %v1200
      %v1202 = vadd.f32 %v1198, %v1201
      %vm1203 = vweird.f32 %v835
      %vm1204 = vweird.f32 %v1198
      %vm1205 = vmor %vm1203, %vm1204
      %v1206 = vsel %vm1205, %v1198, %v1202
      %v1207 = vand.u32 2147483647, %v835
      %vm1208 = vcmp.eq.f32.partialorder %v1207, 8.507059e+37
      %v1209 = vand.u32 %v835, 2147483648
      %v1210 = vor.u32 1.1754944e-38, %v1209
      %v1211 = vsel %vm1208, %v1210, %v1206
      %v1212 = vmul.f32 1.0, %v1211
      %v1213 = vrcp.pop %v836
      %v1214 = vmul.f32 %v836, %v1213
      %v1215 = vsub.f32 1.0, %v1214
      %v1216 = vmul.f32 %v1213, %v1215
      %v1217 = vadd.f32 %v1213, %v1216
      %vm1218 = vweird.f32 %v836
      %vm1219 = vweird.f32 %v1213
      %vm1220 = vmor %vm1218, %vm1219
      %v1221 = vsel %vm1220, %v1213, %v1217
      %v1222 = vand.u32 2147483647, %v836
      %vm1223 = vcmp.eq.f32.partialorder %v1222, 8.507059e+37
      %v1224 = vand.u32 %v836, 2147483648
      %v1225 = vor.u32 1.1754944e-38, %v1224
      %v1226 = vsel %vm1223, %v1225, %v1221
      %v1227 = vmul.f32 1.0, %v1226
      %v1228 = vrcp.pop %v837
      %v1229 = vmul.f32 %v837, %v1228
      %v1230 = vsub.f32 1.0, %v1229
      %v1231 = vmul.f32 %v1228, %v1230
      %v1232 = vadd.f32 %v1228, %v1231
      %vm1233 = vweird.f32 %v837
      %vm1234 = vweird.f32 %v1228
      %vm1235 = vmor %vm1233, %vm1234
      %v1236 = vsel %vm1235, %v1228, %v1232
      %v1237 = vand.u32 2147483647, %v837
      %vm1238 = vcmp.eq.f32.partialorder %v1237, 8.507059e+37
      %v1239 = vand.u32 %v837, 2147483648
      %v1240 = vor.u32 1.1754944e-38, %v1239
      %v1241 = vsel %vm1238, %v1240, %v1236
      %v1242 = vmul.f32 1.0, %v1241
      %v1243 = vrcp.pop %v838
      %v1244 = vmul.f32 %v838, %v1243
      %v1245 = vsub.f32 1.0, %v1244
      %v1246 = vmul.f32 %v1243, %v1245
      %v1247 = vadd.f32 %v1243, %v1246
      %vm1248 = vweird.f32 %v838
      %vm1249 = vweird.f32 %v1243
      %vm1250 = vmor %vm1248, %vm1249
      %v1251 = vsel %vm1250, %v1243, %v1247
      %v1252 = vand.u32 2147483647, %v838
      %vm1253 = vcmp.eq.f32.partialorder %v1252, 8.507059e+37
      %v1254 = vand.u32 %v838, 2147483648
      %v1255 = vor.u32 1.1754944e-38, %v1254
      %v1256 = vsel %vm1253, %v1255, %v1251
      %v1257 = vmul.f32 1.0, %v1256
      %v1258 = vrcp.pop %v839
      %v1259 = vmul.f32 %v839, %v1258
      %v1260 = vsub.f32 1.0, %v1259
      %v1261 = vmul.f32 %v1258, %v1260
      %v1262 = vadd.f32 %v1258, %v1261
      %vm1263 = vweird.f32 %v839
      %vm1264 = vweird.f32 %v1258
      %vm1265 = vmor %vm1263, %vm1264
      %v1266 = vsel %vm1265, %v1258, %v1262
      %v1267 = vand.u32 2147483647, %v839
      %vm1268 = vcmp.eq.f32.partialorder %v1267, 8.507059e+37
      %v1269 = vand.u32 %v839, 2147483648
      %v1270 = vor.u32 1.1754944e-38, %v1269
      %v1271 = vsel %vm1268, %v1270, %v1266
      %v1272 = vmul.f32 1.0, %v1271
      %v1273 = vrcp.pop %v840
      %v1274 = vmul.f32 %v840, %v1273
      %v1275 = vsub.f32 1.0, %v1274
      %v1276 = vmul.f32 %v1273, %v1275
      %v1277 = vadd.f32 %v1273, %v1276
      %vm1278 = vweird.f32 %v840
      %vm1279 = vweird.f32 %v1273
      %vm1280 = vmor %vm1278, %vm1279
      %v1281 = vsel %vm1280, %v1273, %v1277
      %v1282 = vand.u32 2147483647, %v840
      %vm1283 = vcmp.eq.f32.partialorder %v1282, 8.507059e+37
      %v1284 = vand.u32 %v840, 2147483648
      %v1285 = vor.u32 1.1754944e-38, %v1284
      %v1286 = vsel %vm1283, %v1285, %v1281
      %v1287 = vmul.f32 1.0, %v1286
      %v1288 = vrcp.pop %v841
      %v1289 = vmul.f32 %v841, %v1288
      %v1290 = vsub.f32 1.0, %v1289
      %v1291 = vmul.f32 %v1288, %v1290
      %v1292 = vadd.f32 %v1288, %v1291
      %vm1293 = vweird.f32 %v841
      %vm1294 = vweird.f32 %v1288
      %vm1295 = vmor %vm1293, %vm1294
      %v1296 = vsel %vm1295, %v1288, %v1292
      %v1297 = vand.u32 2147483647, %v841
      %vm1298 = vcmp.eq.f32.partialorder %v1297, 8.507059e+37
      %v1299 = vand.u32 %v841, 2147483648
      %v1300 = vor.u32 1.1754944e-38, %v1299
      %v1301 = vsel %vm1298, %v1300, %v1296
      %v1302 = vmul.f32 1.0, %v1301
      %v1303 = vrcp.pop %v842
      %v1304 = vmul.f32 %v842, %v1303
      %v1305 = vsub.f32 1.0, %v1304
      %v1306 = vmul.f32 %v1303, %v1305
      %v1307 = vadd.f32 %v1303, %v1306
      %vm1308 = vweird.f32 %v842
      %vm1309 = vweird.f32 %v1303
      %vm1310 = vmor %vm1308, %vm1309
      %v1311 = vsel %vm1310, %v1303, %v1307
      %v1312 = vand.u32 2147483647, %v842
      %vm1313 = vcmp.eq.f32.partialorder %v1312, 8.507059e+37
      %v1314 = vand.u32 %v842, 2147483648
      %v1315 = vor.u32 1.1754944e-38, %v1314
      %v1316 = vsel %vm1313, %v1315, %v1311
      %v1317 = vmul.f32 1.0, %v1316
      %v1318 = vrcp.pop %v843
      %v1319 = vmul.f32 %v843, %v1318
      %v1320 = vsub.f32 1.0, %v1319
      %v1321 = vmul.f32 %v1318, %v1320
      %v1322 = vadd.f32 %v1318, %v1321
      %vm1323 = vweird.f32 %v843
      %vm1324 = vweird.f32 %v1318
      %vm1325 = vmor %vm1323, %vm1324
      %v1326 = vsel %vm1325, %v1318, %v1322
      %v1327 = vand.u32 2147483647, %v843
      %vm1328 = vcmp.eq.f32.partialorder %v1327, 8.507059e+37
      %v1329 = vand.u32 %v843, 2147483648
      %v1330 = vor.u32 1.1754944e-38, %v1329
      %v1331 = vsel %vm1328, %v1330, %v1326
      %v1332 = vmul.f32 1.0, %v1331
      %v1333 = vrcp.pop %v844
      %v1334 = vmul.f32 %v844, %v1333
      %v1335 = vsub.f32 1.0, %v1334
      %v1336 = vmul.f32 %v1333, %v1335
      %v1337 = vadd.f32 %v1333, %v1336
      %vm1338 = vweird.f32 %v844
      %vm1339 = vweird.f32 %v1333
      %vm1340 = vmor %vm1338, %vm1339
      %v1341 = vsel %vm1340, %v1333, %v1337
      %v1342 = vand.u32 2147483647, %v844
      %vm1343 = vcmp.eq.f32.partialorder %v1342, 8.507059e+37
      %v1344 = vand.u32 %v844, 2147483648
      %v1345 = vor.u32 1.1754944e-38, %v1344
      %v1346 = vsel %vm1343, %v1345, %v1341
      %v1347 = vmul.f32 1.0, %v1346
      %v1348 = vrcp.pop %v845
      %v1349 = vmul.f32 %v845, %v1348
      %v1350 = vsub.f32 1.0, %v1349
      %v1351 = vmul.f32 %v1348, %v1350
      %v1352 = vadd.f32 %v1348, %v1351
      %vm1353 = vweird.f32 %v845
      %vm1354 = vweird.f32 %v1348
      %vm1355 = vmor %vm1353, %vm1354
      %v1356 = vsel %vm1355, %v1348, %v1352
      %v1357 = vand.u32 2147483647, %v845
      %vm1358 = vcmp.eq.f32.partialorder %v1357, 8.507059e+37
      %v1359 = vand.u32 %v845, 2147483648
      %v1360 = vor.u32 1.1754944e-38, %v1359
      %v1361 = vsel %vm1358, %v1360, %v1356
      %v1362 = vmul.f32 1.0, %v1361
      %v1363 = vrcp.pop %v846
      %v1364 = vmul.f32 %v846, %v1363
      %v1365 = vsub.f32 1.0, %v1364
      %v1366 = vmul.f32 %v1363, %v1365
      %v1367 = vadd.f32 %v1363, %v1366
      %vm1368 = vweird.f32 %v846
      %vm1369 = vweird.f32 %v1363
      %vm1370 = vmor %vm1368, %vm1369
      %v1371 = vsel %vm1370, %v1363, %v1367
      %v1372 = vand.u32 2147483647, %v846
      %vm1373 = vcmp.eq.f32.partialorder %v1372, 8.507059e+37
      %v1374 = vand.u32 %v846, 2147483648
      %v1375 = vor.u32 1.1754944e-38, %v1374
      %v1376 = vsel %vm1373, %v1375, %v1371
      %v1377 = vmul.f32 1.0, %v1376
      %v1378 = vrcp.pop %v847
      %v1379 = vmul.f32 %v847, %v1378
      %v1380 = vsub.f32 1.0, %v1379
      %v1381 = vmul.f32 %v1378, %v1380
      %v1382 = vadd.f32 %v1378, %v1381
      %vm1383 = vweird.f32 %v847
      %vm1384 = vweird.f32 %v1378
      %vm1385 = vmor %vm1383, %vm1384
      %v1386 = vsel %vm1385, %v1378, %v1382
      %v1387 = vand.u32 2147483647, %v847
      %vm1388 = vcmp.eq.f32.partialorder %v1387, 8.507059e+37
      %v1389 = vand.u32 %v847, 2147483648
      %v1390 = vor.u32 1.1754944e-38, %v1389
      %v1391 = vsel %vm1388, %v1390, %v1386
      %v1392 = vmul.f32 1.0, %v1391
      %v1393 = vrcp.pop %v848
      %v1394 = vmul.f32 %v848, %v1393
      %v1395 = vsub.f32 1.0, %v1394
      %v1396 = vmul.f32 %v1393, %v1395
      %v1397 = vadd.f32 %v1393, %v1396
      %vm1398 = vweird.f32 %v848
      %vm1399 = vweird.f32 %v1393
      %vm1400 = vmor %vm1398, %vm1399
      %v1401 = vsel %vm1400, %v1393, %v1397
      %v1402 = vand.u32 2147483647, %v848
      %vm1403 = vcmp.eq.f32.partialorder %v1402, 8.507059e+37
      %v1404 = vand.u32 %v848, 2147483648
      %v1405 = vor.u32 1.1754944e-38, %v1404
      %v1406 = vsel %vm1403, %v1405, %v1401
      %v1407 = vmul.f32 1.0, %v1406
      %v1408 = vrcp.pop %v849
      %v1409 = vmul.f32 %v849, %v1408
      %v1410 = vsub.f32 1.0, %v1409
      %v1411 = vmul.f32 %v1408, %v1410
      %v1412 = vadd.f32 %v1408, %v1411
      %vm1413 = vweird.f32 %v849
      %vm1414 = vweird.f32 %v1408
      %vm1415 = vmor %vm1413, %vm1414
      %v1416 = vsel %vm1415, %v1408, %v1412
      %v1417 = vand.u32 2147483647, %v849
      %vm1418 = vcmp.eq.f32.partialorder %v1417, 8.507059e+37
      %v1419 = vand.u32 %v849, 2147483648
      %v1420 = vor.u32 1.1754944e-38, %v1419
      %v1421 = vsel %vm1418, %v1420, %v1416
      %v1422 = vmul.f32 1.0, %v1421
      %v1423 = vrcp.pop %v850
      %v1424 = vmul.f32 %v850, %v1423
      %v1425 = vsub.f32 1.0, %v1424
      %v1426 = vmul.f32 %v1423, %v1425
      %v1427 = vadd.f32 %v1423, %v1426
      %vm1428 = vweird.f32 %v850
      %vm1429 = vweird.f32 %v1423
      %vm1430 = vmor %vm1428, %vm1429
      %v1431 = vsel %vm1430, %v1423, %v1427
      %v1432 = vand.u32 2147483647, %v850
      %vm1433 = vcmp.eq.f32.partialorder %v1432, 8.507059e+37
      %v1434 = vand.u32 %v850, 2147483648
      %v1435 = vor.u32 1.1754944e-38, %v1434
      %v1436 = vsel %vm1433, %v1435, %v1431
      %v1437 = vmul.f32 1.0, %v1436
      %v1438 = vrcp.pop %v851
      %v1439 = vmul.f32 %v851, %v1438
      %v1440 = vsub.f32 1.0, %v1439
      %v1441 = vmul.f32 %v1438, %v1440
      %v1442 = vadd.f32 %v1438, %v1441
      %vm1443 = vweird.f32 %v851
      %vm1444 = vweird.f32 %v1438
      %vm1445 = vmor %vm1443, %vm1444
      %v1446 = vsel %vm1445, %v1438, %v1442
      %v1447 = vand.u32 2147483647, %v851
      %vm1448 = vcmp.eq.f32.partialorder %v1447, 8.507059e+37
      %v1449 = vand.u32 %v851, 2147483648
      %v1450 = vor.u32 1.1754944e-38, %v1449
      %v1451 = vsel %vm1448, %v1450, %v1446
      %v1452 = vmul.f32 1.0, %v1451
      %v1453 = vrcp.pop %v852
      %v1454 = vmul.f32 %v852, %v1453
      %v1455 = vsub.f32 1.0, %v1454
      %v1456 = vmul.f32 %v1453, %v1455
      %v1457 = vadd.f32 %v1453, %v1456
      %vm1458 = vweird.f32 %v852
      %vm1459 = vweird.f32 %v1453
      %vm1460 = vmor %vm1458, %vm1459
      %v1461 = vsel %vm1460, %v1453, %v1457
      %v1462 = vand.u32 2147483647, %v852
      %vm1463 = vcmp.eq.f32.partialorder %v1462, 8.507059e+37
      %v1464 = vand.u32 %v852, 2147483648
      %v1465 = vor.u32 1.1754944e-38, %v1464
      %v1466 = vsel %vm1463, %v1465, %v1461
      %v1467 = vmul.f32 1.0, %v1466
      %v1468 = vmul.f32 %v583, %v867
      %v1469 = vmul.f32 %v585, %v882
      %v1470 = vmul.f32 %v588, %v897
      %v1471 = vmul.f32 %v590, %v912
      %v1472 = vmul.f32 %v593, %v927
      %v1473 = vmul.f32 %v595, %v942
      %v1474 = vmul.f32 %v598, %v957
      %v1475 = vmul.f32 %v600, %v972
      %v1476 = vmul.f32 %v603, %v987
      %v1477 = vmul.f32 %v605, %v1002
      %v1478 = vmul.f32 %v608, %v1017
      %v1479 = vmul.f32 %v610, %v1032
      %v1480 = vmul.f32 %v613, %v1047
      %v1481 = vmul.f32 %v615, %v1062
      %v1482 = vmul.f32 %v618, %v1077
      %v1483 = vmul.f32 %v620, %v1092
      %v1484 = vmul.f32 %v623, %v1107
      %v1485 = vmul.f32 %v625, %v1122
      %v1486 = vmul.f32 %v628, %v1137
      %v1487 = vmul.f32 %v630, %v1152
      %v1488 = vmul.f32 %v633, %v1167
      %v1489 = vmul.f32 %v635, %v1182
      %v1490 = vmul.f32 %v638, %v1197
      %v1491 = vmul.f32 %v640, %v1212
      %v1492 = vmul.f32 %v643, %v1227
      %v1493 = vmul.f32 %v645, %v1242
      %v1494 = vmul.f32 %v648, %v1257
      %v1495 = vmul.f32 %v650, %v1272
      %v1496 = vmul.f32 %v653, %v1287
      %v1497 = vmul.f32 %v655, %v1302
      %v1498 = vmul.f32 %v658, %v1317
      %v1499 = vmul.f32 %v660, %v1332
      %v1500 = vmul.f32 %v663, %v1347
      %v1501 = vmul.f32 %v665, %v1362
      %v1502 = vmul.f32 %v668, %v1377
      %v1503 = vmul.f32 %v670, %v1392
      %v1504 = vmul.f32 %v673, %v1407
      %v1505 = vmul.f32 %v675, %v1422
      %v1506 = vmul.f32 %v678, %v1437
      %v1507 = vmul.f32 %v680, %v1452
      %v1508 = vmul.f32 %v683, %v1467
      %v1509 = vld [vmem:[%s3] sm:$0xff]
      %v1510 = vld [vmem:[%s3 + $0x8] sm:$0xff]
      %v1511 = vld [vmem:[%s3 + $0x10] sm:$0xff]
      %v1512 = vld [vmem:[%s3 + $0x18] sm:$0xff]
      %v1513 = vld [vmem:[%s3 + $0x20] sm:$0xff]
      %v1514 = vld [vmem:[%s3 + $0x28] sm:$0xff]
      %v1515 = vld [vmem:[%s3 + $0x30] sm:$0xff]
      %v1516 = vld [vmem:[%s3 + $0x38] sm:$0xff]
      %v1517 = vld [vmem:[%s3 + $0x40] sm:$0xff]
      %v1518 = vld [vmem:[%s3 + $0x48] sm:$0xff]
      %v1519 = vld [vmem:[%s3 + $0x50] sm:$0xff]
      %v1520 = vld [vmem:[%s3 + $0x58] sm:$0xff]
      %v1521 = vld [vmem:[%s3 + $0x60] sm:$0xff]
      %v1522 = vld [vmem:[%s3 + $0x68] sm:$0xff]
      %v1523 = vld [vmem:[%s3 + $0x70] sm:$0xff]
      %v1524 = vld [vmem:[%s3 + $0x78] sm:$0xff]
      %v1525 = vld [vmem:[%s3 + $0x80] sm:$0xff]
      %v1526 = vld [vmem:[%s3 + $0x88] sm:$0xff]
      %v1527 = vld [vmem:[%s3 + $0x90] sm:$0xff]
      %v1528 = vld [vmem:[%s3 + $0x98] sm:$0xff]
      %v1529 = vld [vmem:[%s3 + $0xa0] sm:$0xff]
      %v1530 = vld [vmem:[%s3 + $0xa8] sm:$0xff]
      %v1531 = vld [vmem:[%s3 + $0xb0] sm:$0xff]
      %v1532 = vld [vmem:[%s3 + $0xb8] sm:$0xff]
      %v1533 = vld [vmem:[%s3 + $0xc0] sm:$0xff]
      %v1534 = vld [vmem:[%s3 + $0xc8] sm:$0xff]
      %v1535 = vld [vmem:[%s3 + $0xd0] sm:$0xff]
      %v1536 = vld [vmem:[%s3 + $0xd8] sm:$0xff]
      %v1537 = vld [vmem:[%s3 + $0xe0] sm:$0xff]
      %v1538 = vld [vmem:[%s3 + $0xe8] sm:$0xff]
      %v1539 = vld [vmem:[%s3 + $0xf0] sm:$0xff]
      %v1540 = vld [vmem:[%s3 + $0xf8] sm:$0xff]
      %v1541 = vld [vmem:[%s3 + $0x100] sm:$0xff]
      %v1542 = vld [vmem:[%s3 + $0x108] sm:$0xff]
      %v1543 = vld [vmem:[%s3 + $0x110] sm:$0xff]
      %v1544 = vld [vmem:[%s3 + $0x118] sm:$0xff]
      %v1545 = vld [vmem:[%s3 + $0x120] sm:$0xff]
      %v1546 = vld [vmem:[%s3 + $0x128] sm:$0xff]
      %v1547 = vld [vmem:[%s3 + $0x130] sm:$0xff]
      %v1548 = vld [vmem:[%s3 + $0x138] sm:$0xff]
      %v1549 = vld [vmem:[%s3 + $0x140] sm:$0xff]
      %1551 = vset.pattern.permute.xlu0 0
      %1552 = vperm.xlu0 %1551, %v1509
      %v1553 = vpop.permute.xlu0 %1552
      %1556 = vset.pattern.permute.xlu0 0
      %1557 = vperm.xlu0 %1556, %v1510
      %v1558 = vpop.permute.xlu0 %1557
      %1561 = vset.pattern.permute.xlu0 0
      %1562 = vperm.xlu0 %1561, %v1511
      %v1563 = vpop.permute.xlu0 %1562
      %1566 = vset.pattern.permute.xlu0 0
      %1567 = vperm.xlu0 %1566, %v1512
      %v1568 = vpop.permute.xlu0 %1567
      %1571 = vset.pattern.permute.xlu0 0
      %1572 = vperm.xlu0 %1571, %v1513
      %v1573 = vpop.permute.xlu0 %1572
      %1576 = vset.pattern.permute.xlu0 0
      %1577 = vperm.xlu0 %1576, %v1514
      %v1578 = vpop.permute.xlu0 %1577
      %1581 = vset.pattern.permute.xlu0 0
      %1582 = vperm.xlu0 %1581, %v1515
      %v1583 = vpop.permute.xlu0 %1582
      %1586 = vset.pattern.permute.xlu0 0
      %1587 = vperm.xlu0 %1586, %v1516
      %v1588 = vpop.permute.xlu0 %1587
      %1591 = vset.pattern.permute.xlu0 0
      %1592 = vperm.xlu0 %1591, %v1517
      %v1593 = vpop.permute.xlu0 %1592
      %1596 = vset.pattern.permute.xlu0 0
      %1597 = vperm.xlu0 %1596, %v1518
      %v1598 = vpop.permute.xlu0 %1597
      %1601 = vset.pattern.permute.xlu0 0
      %1602 = vperm.xlu0 %1601, %v1519
      %v1603 = vpop.permute.xlu0 %1602
      %1606 = vset.pattern.permute.xlu0 0
      %1607 = vperm.xlu0 %1606, %v1520
      %v1608 = vpop.permute.xlu0 %1607
      %1611 = vset.pattern.permute.xlu0 0
      %1612 = vperm.xlu0 %1611, %v1521
      %v1613 = vpop.permute.xlu0 %1612
      %1616 = vset.pattern.permute.xlu0 0
      %1617 = vperm.xlu0 %1616, %v1522
      %v1618 = vpop.permute.xlu0 %1617
      %1621 = vset.pattern.permute.xlu0 0
      %1622 = vperm.xlu0 %1621, %v1523
      %v1623 = vpop.permute.xlu0 %1622
      %1626 = vset.pattern.permute.xlu0 0
      %1627 = vperm.xlu0 %1626, %v1524
      %v1628 = vpop.permute.xlu0 %1627
      %1631 = vset.pattern.permute.xlu0 0
      %1632 = vperm.xlu0 %1631, %v1525
      %v1633 = vpop.permute.xlu0 %1632
      %1636 = vset.pattern.permute.xlu0 0
      %1637 = vperm.xlu0 %1636, %v1526
      %v1638 = vpop.permute.xlu0 %1637
      %1641 = vset.pattern.permute.xlu0 0
      %1642 = vperm.xlu0 %1641, %v1527
      %v1643 = vpop.permute.xlu0 %1642
      %1646 = vset.pattern.permute.xlu0 0
      %1647 = vperm.xlu0 %1646, %v1528
      %v1648 = vpop.permute.xlu0 %1647
      %1651 = vset.pattern.permute.xlu0 0
      %1652 = vperm.xlu0 %1651, %v1529
      %v1653 = vpop.permute.xlu0 %1652
      %1656 = vset.pattern.permute.xlu0 0
      %1657 = vperm.xlu0 %1656, %v1530
      %v1658 = vpop.permute.xlu0 %1657
      %1661 = vset.pattern.permute.xlu0 0
      %1662 = vperm.xlu0 %1661, %v1531
      %v1663 = vpop.permute.xlu0 %1662
      %1666 = vset.pattern.permute.xlu0 0
      %1667 = vperm.xlu0 %1666, %v1532
      %v1668 = vpop.permute.xlu0 %1667
      %1671 = vset.pattern.permute.xlu0 0
      %1672 = vperm.xlu0 %1671, %v1533
      %v1673 = vpop.permute.xlu0 %1672
      %1676 = vset.pattern.permute.xlu0 0
      %1677 = vperm.xlu0 %1676, %v1534
      %v1678 = vpop.permute.xlu0 %1677
      %1681 = vset.pattern.permute.xlu0 0
      %1682 = vperm.xlu0 %1681, %v1535
      %v1683 = vpop.permute.xlu0 %1682
      %1686 = vset.pattern.permute.xlu0 0
      %1687 = vperm.xlu0 %1686, %v1536
      %v1688 = vpop.permute.xlu0 %1687
      %1691 = vset.pattern.permute.xlu0 0
      %1692 = vperm.xlu0 %1691, %v1537
      %v1693 = vpop.permute.xlu0 %1692
      %1696 = vset.pattern.permute.xlu0 0
      %1697 = vperm.xlu0 %1696, %v1538
      %v1698 = vpop.permute.xlu0 %1697
      %1701 = vset.pattern.permute.xlu0 0
      %1702 = vperm.xlu0 %1701, %v1539
      %v1703 = vpop.permute.xlu0 %1702
      %1706 = vset.pattern.permute.xlu0 0
      %1707 = vperm.xlu0 %1706, %v1540
      %v1708 = vpop.permute.xlu0 %1707
      %1711 = vset.pattern.permute.xlu0 0
      %1712 = vperm.xlu0 %1711, %v1541
      %v1713 = vpop.permute.xlu0 %1712
      %1716 = vset.pattern.permute.xlu0 0
      %1717 = vperm.xlu0 %1716, %v1542
      %v1718 = vpop.permute.xlu0 %1717
      %1721 = vset.pattern.permute.xlu0 0
      %1722 = vperm.xlu0 %1721, %v1543
      %v1723 = vpop.permute.xlu0 %1722
      %1726 = vset.pattern.permute.xlu0 0
      %1727 = vperm.xlu0 %1726, %v1544
      %v1728 = vpop.permute.xlu0 %1727
      %1731 = vset.pattern.permute.xlu0 0
      %1732 = vperm.xlu0 %1731, %v1545
      %v1733 = vpop.permute.xlu0 %1732
      %1736 = vset.pattern.permute.xlu0 0
      %1737 = vperm.xlu0 %1736, %v1546
      %v1738 = vpop.permute.xlu0 %1737
      %1741 = vset.pattern.permute.xlu0 0
      %1742 = vperm.xlu0 %1741, %v1547
      %v1743 = vpop.permute.xlu0 %1742
      %1746 = vset.pattern.permute.xlu0 0
      %1747 = vperm.xlu0 %1746, %v1548
      %v1748 = vpop.permute.xlu0 %1747
      %1751 = vset.pattern.permute.xlu0 0
      %1752 = vperm.xlu0 %1751, %v1549
      %v1753 = vpop.permute.xlu0 %1752
      %v1755 = vmul.f32 %v1468, %v1553
      %v1756 = vmul.f32 %v1469, %v1558
      %v1757 = vmul.f32 %v1470, %v1563
      %v1758 = vmul.f32 %v1471, %v1568
      %v1759 = vmul.f32 %v1472, %v1573
      %v1760 = vmul.f32 %v1473, %v1578
      %v1761 = vmul.f32 %v1474, %v1583
      %v1762 = vmul.f32 %v1475, %v1588
      %v1763 = vmul.f32 %v1476, %v1593
      %v1764 = vmul.f32 %v1477, %v1598
      %v1765 = vmul.f32 %v1478, %v1603
      %v1766 = vmul.f32 %v1479, %v1608
      %v1767 = vmul.f32 %v1480, %v1613
      %v1768 = vmul.f32 %v1481, %v1618
      %v1769 = vmul.f32 %v1482, %v1623
      %v1770 = vmul.f32 %v1483, %v1628
      %v1771 = vmul.f32 %v1484, %v1633
      %v1772 = vmul.f32 %v1485, %v1638
      %v1773 = vmul.f32 %v1486, %v1643
      %v1774 = vmul.f32 %v1487, %v1648
      %v1775 = vmul.f32 %v1488, %v1653
      %v1776 = vmul.f32 %v1489, %v1658
      %v1777 = vmul.f32 %v1490, %v1663
      %v1778 = vmul.f32 %v1491, %v1668
      %v1779 = vmul.f32 %v1492, %v1673
      %v1780 = vmul.f32 %v1493, %v1678
      %v1781 = vmul.f32 %v1494, %v1683
      %v1782 = vmul.f32 %v1495, %v1688
      %v1783 = vmul.f32 %v1496, %v1693
      %v1784 = vmul.f32 %v1497, %v1698
      %v1785 = vmul.f32 %v1498, %v1703
      %v1786 = vmul.f32 %v1499, %v1708
      %v1787 = vmul.f32 %v1500, %v1713
      %v1788 = vmul.f32 %v1501, %v1718
      %v1789 = vmul.f32 %v1502, %v1723
      %v1790 = vmul.f32 %v1503, %v1728
      %v1791 = vmul.f32 %v1504, %v1733
      %v1792 = vmul.f32 %v1505, %v1738
      %v1793 = vmul.f32 %v1506, %v1743
      %v1794 = vmul.f32 %v1507, %v1748
      %v1795 = vmul.f32 %v1508, %v1753
      %v1796 = vpack.c.bf16 %v1755, %v1755
      %v1797 = vpack.c.bf16 %v1756, %v1756
      %v1798 = vpack.c.bf16 %v1757, %v1757
      %v1799 = vpack.c.bf16 %v1758, %v1758
      %v1800 = vpack.c.bf16 %v1759, %v1759
      %v1801 = vpack.c.bf16 %v1760, %v1760
      %v1802 = vpack.c.bf16 %v1761, %v1761
      %v1803 = vpack.c.bf16 %v1762, %v1762
      %v1804 = vpack.c.bf16 %v1763, %v1763
      %v1805 = vpack.c.bf16 %v1764, %v1764
      %v1806 = vpack.c.bf16 %v1765, %v1765
      %v1807 = vpack.c.bf16 %v1766, %v1766
      %v1808 = vpack.c.bf16 %v1767, %v1767
      %v1809 = vpack.c.bf16 %v1768, %v1768
      %v1810 = vpack.c.bf16 %v1769, %v1769
      %v1811 = vpack.c.bf16 %v1770, %v1770
      %v1812 = vpack.c.bf16 %v1771, %v1771
      %v1813 = vpack.c.bf16 %v1772, %v1772
      %v1814 = vpack.c.bf16 %v1773, %v1773
      %v1815 = vpack.c.bf16 %v1774, %v1774
      %v1816 = vpack.c.bf16 %v1775, %v1775
      %v1817 = vpack.c.bf16 %v1776, %v1776
      %v1818 = vpack.c.bf16 %v1777, %v1777
      %v1819 = vpack.c.bf16 %v1778, %v1778
      %v1820 = vpack.c.bf16 %v1779, %v1779
      %v1821 = vpack.c.bf16 %v1780, %v1780
      %v1822 = vpack.c.bf16 %v1781, %v1781
      %v1823 = vpack.c.bf16 %v1782, %v1782
      %v1824 = vpack.c.bf16 %v1783, %v1783
      %v1825 = vpack.c.bf16 %v1784, %v1784
      %v1826 = vpack.c.bf16 %v1785, %v1785
      %v1827 = vpack.c.bf16 %v1786, %v1786
      %v1828 = vpack.c.bf16 %v1787, %v1787
      %v1829 = vpack.c.bf16 %v1788, %v1788
      %v1830 = vpack.c.bf16 %v1789, %v1789
      %v1831 = vpack.c.bf16 %v1790, %v1790
      %v1832 = vpack.c.bf16 %v1791, %v1791
      %v1833 = vpack.c.bf16 %v1792, %v1792
      %v1834 = vpack.c.bf16 %v1793, %v1793
      %v1835 = vpack.c.bf16 %v1794, %v1794
      %v1836 = vpack.c.bf16 %v1795, %v1795
      %v1837 = vld [vmem:[%s4] sm:$0xf]
      %v1838 = vld [vmem:[%s5] sm:$0x1]
      %v1840 = vperm.slane %v1838, 0
      %v1878 = vunpack.c.l.b16 %v1796
      %v1879 = vunpack.c.l.b16 %v1797
      %v1880 = vunpack.c.l.b16 %v1798
      %v1881 = vunpack.c.l.b16 %v1799
      %v1882 = vunpack.c.l.b16 %v1800
      %v1883 = vunpack.c.l.b16 %v1801
      %v1884 = vunpack.c.l.b16 %v1802
      %v1885 = vunpack.c.l.b16 %v1803
      %v1886 = vunpack.c.l.b16 %v1804
      %v1887 = vunpack.c.l.b16 %v1805
      %v1888 = vunpack.c.l.b16 %v1806
      %v1889 = vunpack.c.l.b16 %v1807
      %v1890 = vunpack.c.l.b16 %v1808
      %v1891 = vunpack.c.l.b16 %v1809
      %v1892 = vunpack.c.l.b16 %v1810
      %v1893 = vunpack.c.l.b16 %v1811
      %v1894 = vunpack.c.l.b16 %v1812
      %v1895 = vunpack.c.l.b16 %v1813
      %v1896 = vunpack.c.l.b16 %v1814
      %v1897 = vunpack.c.l.b16 %v1815
      %v1898 = vunpack.c.l.b16 %v1816
      %v1899 = vunpack.c.l.b16 %v1817
      %v1900 = vunpack.c.l.b16 %v1818
      %v1901 = vunpack.c.l.b16 %v1819
      %v1902 = vunpack.c.l.b16 %v1820
      %v1903 = vunpack.c.l.b16 %v1821
      %v1904 = vunpack.c.l.b16 %v1822
      %v1905 = vunpack.c.l.b16 %v1823
      %v1906 = vunpack.c.l.b16 %v1824
      %v1907 = vunpack.c.l.b16 %v1825
      %v1908 = vunpack.c.l.b16 %v1826
      %v1909 = vunpack.c.l.b16 %v1827
      %v1910 = vunpack.c.l.b16 %v1828
      %v1911 = vunpack.c.l.b16 %v1829
      %v1912 = vunpack.c.l.b16 %v1830
      %v1913 = vunpack.c.l.b16 %v1831
      %v1914 = vpack.c.b16 %v1879, %v1878
      %v1915 = vpack.c.b16 %v1881, %v1880
      %v1916 = vpack.c.b16 %v1883, %v1882
      %v1917 = vpack.c.b16 %v1885, %v1884
      %v1918 = vpack.c.b16 %v1887, %v1886
      %v1919 = vpack.c.b16 %v1889, %v1888
      %v1920 = vpack.c.b16 %v1891, %v1890
      %v1921 = vpack.c.b16 %v1893, %v1892
      %v1922 = vpack.c.b16 %v1895, %v1894
      %v1923 = vpack.c.b16 %v1897, %v1896
      %v1924 = vpack.c.b16 %v1899, %v1898
      %v1925 = vpack.c.b16 %v1901, %v1900
      %v1926 = vpack.c.b16 %v1903, %v1902
      %v1927 = vpack.c.b16 %v1905, %v1904
      %v1928 = vpack.c.b16 %v1907, %v1906
      %v1929 = vpack.c.b16 %v1909, %v1908
      %v1930 = vpack.c.b16 %v1911, %v1910
      %v1931 = vpack.c.b16 %v1913, %v1912
      %vm1932 = vcmask 64512
      %v1934 = vsel %vm1932, %v1914, 0
      %v1937 = vsel %vm1932, %v1915, 0
      %v1940 = vsel %vm1932, %v1916, 0
      %v1943 = vsel %vm1932, %v1917, 0
      %v1946 = vsel %vm1932, %v1918, 0
      %v1949 = vsel %vm1932, %v1919, 0
      %v1952 = vsel %vm1932, %v1920, 0
      %v1955 = vsel %vm1932, %v1921, 0
      %v1958 = vsel %vm1932, %v1922, 0
      %v1961 = vsel %vm1932, %v1923, 0
      %v1964 = vsel %vm1932, %v1924, 0
      %v1967 = vsel %vm1932, %v1925, 0
      %v1970 = vsel %vm1932, %v1926, 0
      %v1973 = vsel %vm1932, %v1927, 0
      %v1976 = vsel %vm1932, %v1928, 0
      %v1979 = vsel %vm1932, %v1929, 0
      %v1982 = vsel %vm1932, %v1930, 0
      %v1985 = vsel %vm1932, %v1931, 0
      %vm1987 = vcmask 1043456
      %v1989 = vsel %vm1987, %v1837, 0
      %1991 = vmatpush.bf16.msra.mxu0 0
      %1992 = vmatpush.bf16.msra.mxu0 0
      %1993 = vmatpush.bf16.msra.mxu0 0
      %1994 = vmatpush.bf16.msra.mxu0 0
      %1995 = vmatpush.bf16.msra.mxu0 0
      %1996 = vmatpush.bf16.msra.mxu0 0
      %1997 = vmatpush.bf16.msra.mxu0 0
      %1998 = vmatpush.bf16.msra.mxu0 %v1989
      %1999 = vmatmul.bf16.gmra.mxu0 %v1934
      %v2000 = vpop.f32.mrf.mxu0
      %v2001 = vadd.f32 %v1840, %v2000
      %v2002 = vpop.f32.mrf.mxu0
      %v2003 = vadd.f32 %v1840, %v2002
      %2004 = vmatmul.bf16.gmra.mxu0 %v1937
      %v2005 = vpop.f32.mrf.mxu0
      %v2006 = vadd.f32 %v1840, %v2005
      %v2007 = vpop.f32.mrf.mxu0
      %v2008 = vadd.f32 %v1840, %v2007
      %2009 = vmatmul.bf16.gmra.mxu0 %v1940
      %v2010 = vpop.f32.mrf.mxu0
      %v2011 = vadd.f32 %v1840, %v2010
      %v2012 = vpop.f32.mrf.mxu0
      %v2013 = vadd.f32 %v1840, %v2012
      %2014 = vmatmul.bf16.gmra.mxu0 %v1943
      %v2015 = vpop.f32.mrf.mxu0
      %v2016 = vadd.f32 %v1840, %v2015
      %v2017 = vpop.f32.mrf.mxu0
      %v2018 = vadd.f32 %v1840, %v2017
      %2019 = vmatmul.bf16.gmra.mxu0 %v1946
      %v2020 = vpop.f32.mrf.mxu0
      %v2021 = vadd.f32 %v1840, %v2020
      %v2022 = vpop.f32.mrf.mxu0
      %v2023 = vadd.f32 %v1840, %v2022
      %2024 = vmatmul.bf16.gmra.mxu0 %v1949
      %v2025 = vpop.f32.mrf.mxu0
      %v2026 = vadd.f32 %v1840, %v2025
      %v2027 = vpop.f32.mrf.mxu0
      %v2028 = vadd.f32 %v1840, %v2027
      %2029 = vmatmul.bf16.gmra.mxu0 %v1952
      %v2030 = vpop.f32.mrf.mxu0
      %v2031 = vadd.f32 %v1840, %v2030
      %v2032 = vpop.f32.mrf.mxu0
      %v2033 = vadd.f32 %v1840, %v2032
      %2034 = vmatmul.bf16.gmra.mxu0 %v1955
      %v2035 = vpop.f32.mrf.mxu0
      %v2036 = vadd.f32 %v1840, %v2035
      %v2037 = vpop.f32.mrf.mxu0
      %v2038 = vadd.f32 %v1840, %v2037
      %2039 = vmatmul.bf16.gmra.mxu0 %v1958
      %v2040 = vpop.f32.mrf.mxu0
      %v2041 = vadd.f32 %v1840, %v2040
      %v2042 = vpop.f32.mrf.mxu0
      %v2043 = vadd.f32 %v1840, %v2042
      %2044 = vmatmul.bf16.gmra.mxu0 %v1961
      %v2045 = vpop.f32.mrf.mxu0
      %v2046 = vadd.f32 %v1840, %v2045
      %v2047 = vpop.f32.mrf.mxu0
      %v2048 = vadd.f32 %v1840, %v2047
      %2049 = vmatmul.bf16.gmra.mxu0 %v1964
      %v2050 = vpop.f32.mrf.mxu0
      %v2051 = vadd.f32 %v1840, %v2050
      %v2052 = vpop.f32.mrf.mxu0
      %v2053 = vadd.f32 %v1840, %v2052
      %2054 = vmatmul.bf16.gmra.mxu0 %v1967
      %v2055 = vpop.f32.mrf.mxu0
      %v2056 = vadd.f32 %v1840, %v2055
      %v2057 = vpop.f32.mrf.mxu0
      %v2058 = vadd.f32 %v1840, %v2057
      %2059 = vmatmul.bf16.gmra.mxu0 %v1970
      %v2060 = vpop.f32.mrf.mxu0
      %v2061 = vadd.f32 %v1840, %v2060
      %v2062 = vpop.f32.mrf.mxu0
      %v2063 = vadd.f32 %v1840, %v2062
      %2064 = vmatmul.bf16.gmra.mxu0 %v1973
      %v2065 = vpop.f32.mrf.mxu0
      %v2066 = vadd.f32 %v1840, %v2065
      %v2067 = vpop.f32.mrf.mxu0
      %v2068 = vadd.f32 %v1840, %v2067
      %2069 = vmatmul.bf16.gmra.mxu0 %v1976
      %v2070 = vpop.f32.mrf.mxu0
      %v2071 = vadd.f32 %v1840, %v2070
      %v2072 = vpop.f32.mrf.mxu0
      %v2073 = vadd.f32 %v1840, %v2072
      %2074 = vmatmul.bf16.gmra.mxu0 %v1979
      %v2075 = vpop.f32.mrf.mxu0
      %v2076 = vadd.f32 %v1840, %v2075
      %v2077 = vpop.f32.mrf.mxu0
      %v2078 = vadd.f32 %v1840, %v2077
      %2079 = vmatmul.bf16.gmra.mxu0 %v1982
      %v2080 = vpop.f32.mrf.mxu0
      %v2081 = vadd.f32 %v1840, %v2080
      %v2082 = vpop.f32.mrf.mxu0
      %v2083 = vadd.f32 %v1840, %v2082
      %2084 = vmatmul.bf16.gmra.mxu0 %v1985
      %v2085 = vpop.f32.mrf.mxu0
      %v2086 = vadd.f32 %v1840, %v2085
      %v2087 = vpop.f32.mrf.mxu0
      %v2088 = vadd.f32 %v1840, %v2087
      %2089 = vdwg.mxu0
      %v2090 = vld [vmem:[%s4 + $0x4] sm:$0xf]
      %v2092 = vunpack.c.l.b16 %v1832
      %v2093 = vpack.c.b16 %v2092, %v2092
      %vm2094 = vsmask.f32 7424
      %v2095 = vshrl.u32 %v1914, 16
      %v2097 = vshll.u32 %v1914, 16
      %v2099 = vrot.slane %v2097, 1
      %v2100 = vor.u32 %v2095, %v2099
      %v2101 = vshll.u32 %v1915, 16
      %v2103 = vrot.slane %v2101, 1
      %v2104 = vsel %vm2094, %v2100, %v2103
      %v2105 = vshrl.u32 %v1915, 16
      %v2107 = vor.u32 %v2105, %v2103
      %v2108 = vshll.u32 %v1916, 16
      %v2110 = vrot.slane %v2108, 1
      %v2111 = vsel %vm2094, %v2107, %v2110
      %v2112 = vshrl.u32 %v1916, 16
      %v2114 = vor.u32 %v2112, %v2110
      %v2115 = vshll.u32 %v1917, 16
      %v2117 = vrot.slane %v2115, 1
      %v2118 = vsel %vm2094, %v2114, %v2117
      %v2119 = vshrl.u32 %v1917, 16
      %v2121 = vor.u32 %v2119, %v2117
      %v2122 = vshll.u32 %v1918, 16
      %v2124 = vrot.slane %v2122, 1
      %v2125 = vsel %vm2094, %v2121, %v2124
      %v2126 = vshrl.u32 %v1918, 16
      %v2128 = vor.u32 %v2126, %v2124
      %v2129 = vshll.u32 %v1919, 16
      %v2131 = vrot.slane %v2129, 1
      %v2132 = vsel %vm2094, %v2128, %v2131
      %v2133 = vshrl.u32 %v1919, 16
      %v2135 = vor.u32 %v2133, %v2131
      %v2136 = vshll.u32 %v1920, 16
      %v2138 = vrot.slane %v2136, 1
      %v2139 = vsel %vm2094, %v2135, %v2138
      %v2140 = vshrl.u32 %v1920, 16
      %v2142 = vor.u32 %v2140, %v2138
      %v2143 = vshll.u32 %v1921, 16
      %v2145 = vrot.slane %v2143, 1
      %v2146 = vsel %vm2094, %v2142, %v2145
      %v2147 = vshrl.u32 %v1921, 16
      %v2149 = vor.u32 %v2147, %v2145
      %v2150 = vshll.u32 %v1922, 16
      %v2152 = vrot.slane %v2150, 1
      %v2153 = vsel %vm2094, %v2149, %v2152
      %v2154 = vshrl.u32 %v1922, 16
      %v2156 = vor.u32 %v2154, %v2152
      %v2157 = vshll.u32 %v1923, 16
      %v2159 = vrot.slane %v2157, 1
      %v2160 = vsel %vm2094, %v2156, %v2159
      %v2161 = vshrl.u32 %v1923, 16
      %v2163 = vor.u32 %v2161, %v2159
      %v2164 = vshll.u32 %v1924, 16
      %v2166 = vrot.slane %v2164, 1
      %v2167 = vsel %vm2094, %v2163, %v2166
      %v2168 = vshrl.u32 %v1924, 16
      %v2170 = vor.u32 %v2168, %v2166
      %v2171 = vshll.u32 %v1925, 16
      %v2173 = vrot.slane %v2171, 1
      %v2174 = vsel %vm2094, %v2170, %v2173
      %v2175 = vshrl.u32 %v1925, 16
      %v2177 = vor.u32 %v2175, %v2173
      %v2178 = vshll.u32 %v1926, 16
      %v2180 = vrot.slane %v2178, 1
      %v2181 = vsel %vm2094, %v2177, %v2180
      %v2182 = vshrl.u32 %v1926, 16
      %v2184 = vor.u32 %v2182, %v2180
      %v2185 = vshll.u32 %v1927, 16
      %v2187 = vrot.slane %v2185, 1
      %v2188 = vsel %vm2094, %v2184, %v2187
      %v2189 = vshrl.u32 %v1927, 16
      %v2191 = vor.u32 %v2189, %v2187
      %v2192 = vshll.u32 %v1928, 16
      %v2194 = vrot.slane %v2192, 1
      %v2195 = vsel %vm2094, %v2191, %v2194
      %v2196 = vshrl.u32 %v1928, 16
      %v2198 = vor.u32 %v2196, %v2194
      %v2199 = vshll.u32 %v1929, 16
      %v2201 = vrot.slane %v2199, 1
      %v2202 = vsel %vm2094, %v2198, %v2201
      %v2203 = vshrl.u32 %v1929, 16
      %v2205 = vor.u32 %v2203, %v2201
      %v2206 = vshll.u32 %v1930, 16
      %v2208 = vrot.slane %v2206, 1
      %v2209 = vsel %vm2094, %v2205, %v2208
      %v2210 = vshrl.u32 %v1930, 16
      %v2212 = vor.u32 %v2210, %v2208
      %v2213 = vshll.u32 %v1931, 16
      %v2215 = vrot.slane %v2213, 1
      %v2216 = vsel %vm2094, %v2212, %v2215
      %v2217 = vshrl.u32 %v1931, 16
      %v2219 = vor.u32 %v2217, %v2215
      %v2221 = vshll.u32 %v2093, 16
      %v2223 = vrot.slane %v2221, 1
      %v2224 = vsel %vm2094, %v2219, %v2223
      %v2226 = vsel %vm1932, %v2104, 0
      %v2229 = vsel %vm1932, %v2111, 0
      %v2232 = vsel %vm1932, %v2118, 0
      %v2235 = vsel %vm1932, %v2125, 0
      %v2238 = vsel %vm1932, %v2132, 0
      %v2241 = vsel %vm1932, %v2139, 0
      %v2244 = vsel %vm1932, %v2146, 0
      %v2247 = vsel %vm1932, %v2153, 0
      %v2250 = vsel %vm1932, %v2160, 0
      %v2253 = vsel %vm1932, %v2167, 0
      %v2256 = vsel %vm1932, %v2174, 0
      %v2259 = vsel %vm1932, %v2181, 0
      %v2262 = vsel %vm1932, %v2188, 0
      %v2265 = vsel %vm1932, %v2195, 0
      %v2268 = vsel %vm1932, %v2202, 0
      %v2271 = vsel %vm1932, %v2209, 0
      %v2274 = vsel %vm1932, %v2216, 0
      %v2277 = vsel %vm1932, %v2224, 0
      %v2280 = vsel %vm1987, %v2090, 0
      %2282 = vmatpush.bf16.msra.mxu0 0
      %2283 = vmatpush.bf16.msra.mxu0 0
      %2284 = vmatpush.bf16.msra.mxu0 0
      %2285 = vmatpush.bf16.msra.mxu0 0
      %2286 = vmatpush.bf16.msra.mxu0 0
      %2287 = vmatpush.bf16.msra.mxu0 0
      %2288 = vmatpush.bf16.msra.mxu0 0
      %2289 = vmatpush.bf16.msra.mxu0 %v2280
      %2290 = vmatmul.bf16.gmra.mxu0 %v2226
      %v2291 = vpop.f32.mrf.mxu0
      %v2292 = vadd.f32 0.0, %v2291
      %v2293 = vpop.f32.mrf.mxu0
      %v2294 = vadd.f32 0.0, %v2293
      %2295 = vmatmul.bf16.gmra.mxu0 %v2229
      %v2296 = vpop.f32.mrf.mxu0
      %v2297 = vadd.f32 0.0, %v2296
      %v2298 = vpop.f32.mrf.mxu0
      %v2299 = vadd.f32 0.0, %v2298
      %2300 = vmatmul.bf16.gmra.mxu0 %v2232
      %v2301 = vpop.f32.mrf.mxu0
      %v2302 = vadd.f32 0.0, %v2301
      %v2303 = vpop.f32.mrf.mxu0
      %v2304 = vadd.f32 0.0, %v2303
      %2305 = vmatmul.bf16.gmra.mxu0 %v2235
      %v2306 = vpop.f32.mrf.mxu0
      %v2307 = vadd.f32 0.0, %v2306
      %v2308 = vpop.f32.mrf.mxu0
      %v2309 = vadd.f32 0.0, %v2308
      %2310 = vmatmul.bf16.gmra.mxu0 %v2238
      %v2311 = vpop.f32.mrf.mxu0
      %v2312 = vadd.f32 0.0, %v2311
      %v2313 = vpop.f32.mrf.mxu0
      %v2314 = vadd.f32 0.0, %v2313
      %2315 = vmatmul.bf16.gmra.mxu0 %v2241
      %v2316 = vpop.f32.mrf.mxu0
      %v2317 = vadd.f32 0.0, %v2316
      %v2318 = vpop.f32.mrf.mxu0
      %v2319 = vadd.f32 0.0, %v2318
      %2320 = vmatmul.bf16.gmra.mxu0 %v2244
      %v2321 = vpop.f32.mrf.mxu0
      %v2322 = vadd.f32 0.0, %v2321
      %v2323 = vpop.f32.mrf.mxu0
      %v2324 = vadd.f32 0.0, %v2323
      %2325 = vmatmul.bf16.gmra.mxu0 %v2247
      %v2326 = vpop.f32.mrf.mxu0
      %v2327 = vadd.f32 0.0, %v2326
      %v2328 = vpop.f32.mrf.mxu0
      %v2329 = vadd.f32 0.0, %v2328
      %2330 = vmatmul.bf16.gmra.mxu0 %v2250
      %v2331 = vpop.f32.mrf.mxu0
      %v2332 = vadd.f32 0.0, %v2331
      %v2333 = vpop.f32.mrf.mxu0
      %v2334 = vadd.f32 0.0, %v2333
      %2335 = vmatmul.bf16.gmra.mxu0 %v2253
      %v2336 = vpop.f32.mrf.mxu0
      %v2337 = vadd.f32 0.0, %v2336
      %v2338 = vpop.f32.mrf.mxu0
      %v2339 = vadd.f32 0.0, %v2338
      %2340 = vmatmul.bf16.gmra.mxu0 %v2256
      %v2341 = vpop.f32.mrf.mxu0
      %v2342 = vadd.f32 0.0, %v2341
      %v2343 = vpop.f32.mrf.mxu0
      %v2344 = vadd.f32 0.0, %v2343
      %2345 = vmatmul.bf16.gmra.mxu0 %v2259
      %v2346 = vpop.f32.mrf.mxu0
      %v2347 = vadd.f32 0.0, %v2346
      %v2348 = vpop.f32.mrf.mxu0
      %v2349 = vadd.f32 0.0, %v2348
      %2350 = vmatmul.bf16.gmra.mxu0 %v2262
      %v2351 = vpop.f32.mrf.mxu0
      %v2352 = vadd.f32 0.0, %v2351
      %v2353 = vpop.f32.mrf.mxu0
      %v2354 = vadd.f32 0.0, %v2353
      %2355 = vmatmul.bf16.gmra.mxu0 %v2265
      %v2356 = vpop.f32.mrf.mxu0
      %v2357 = vadd.f32 0.0, %v2356
      %v2358 = vpop.f32.mrf.mxu0
      %v2359 = vadd.f32 0.0, %v2358
      %2360 = vmatmul.bf16.gmra.mxu0 %v2268
      %v2361 = vpop.f32.mrf.mxu0
      %v2362 = vadd.f32 0.0, %v2361
      %v2363 = vpop.f32.mrf.mxu0
      %v2364 = vadd.f32 0.0, %v2363
      %2365 = vmatmul.bf16.gmra.mxu0 %v2271
      %v2366 = vpop.f32.mrf.mxu0
      %v2367 = vadd.f32 0.0, %v2366
      %v2368 = vpop.f32.mrf.mxu0
      %v2369 = vadd.f32 0.0, %v2368
      %2370 = vmatmul.bf16.gmra.mxu0 %v2274
      %v2371 = vpop.f32.mrf.mxu0
      %v2372 = vadd.f32 0.0, %v2371
      %v2373 = vpop.f32.mrf.mxu0
      %v2374 = vadd.f32 0.0, %v2373
      %2375 = vmatmul.bf16.gmra.mxu0 %v2277
      %v2376 = vpop.f32.mrf.mxu0
      %v2377 = vadd.f32 0.0, %v2376
      %v2378 = vpop.f32.mrf.mxu0
      %v2379 = vadd.f32 0.0, %v2378
      %2380 = vdwg.mxu0
      %v2381 = vadd.f32 %v2001, %v2292
      %v2382 = vadd.f32 %v2003, %v2294
      %v2383 = vadd.f32 %v2006, %v2297
      %v2384 = vadd.f32 %v2008, %v2299
      %v2385 = vadd.f32 %v2011, %v2302
      %v2386 = vadd.f32 %v2013, %v2304
      %v2387 = vadd.f32 %v2016, %v2307
      %v2388 = vadd.f32 %v2018, %v2309
      %v2389 = vadd.f32 %v2021, %v2312
      %v2390 = vadd.f32 %v2023, %v2314
      %v2391 = vadd.f32 %v2026, %v2317
      %v2392 = vadd.f32 %v2028, %v2319
      %v2393 = vadd.f32 %v2031, %v2322
      %v2394 = vadd.f32 %v2033, %v2324
      %v2395 = vadd.f32 %v2036, %v2327
      %v2396 = vadd.f32 %v2038, %v2329
      %v2397 = vadd.f32 %v2041, %v2332
      %v2398 = vadd.f32 %v2043, %v2334
      %v2399 = vadd.f32 %v2046, %v2337
      %v2400 = vadd.f32 %v2048, %v2339
      %v2401 = vadd.f32 %v2051, %v2342
      %v2402 = vadd.f32 %v2053, %v2344
      %v2403 = vadd.f32 %v2056, %v2347
      %v2404 = vadd.f32 %v2058, %v2349
      %v2405 = vadd.f32 %v2061, %v2352
      %v2406 = vadd.f32 %v2063, %v2354
      %v2407 = vadd.f32 %v2066, %v2357
      %v2408 = vadd.f32 %v2068, %v2359
      %v2409 = vadd.f32 %v2071, %v2362
      %v2410 = vadd.f32 %v2073, %v2364
      %v2411 = vadd.f32 %v2076, %v2367
      %v2412 = vadd.f32 %v2078, %v2369
      %v2413 = vadd.f32 %v2081, %v2372
      %v2414 = vadd.f32 %v2083, %v2374
      %v2415 = vadd.f32 %v2086, %v2377
      %v2416 = vadd.f32 %v2088, %v2379
      %v2417 = vld [vmem:[%s4 + $0x8] sm:$0xf]
      %vm2418 = vcmask 1046528
      %v2419 = vrot.slane %v1914, 1
      %v2420 = vrot.slane %v1915, 1
      %v2421 = vsel %vm2418, %v2419, %v2420
      %v2422 = vrot.slane %v1916, 1
      %v2423 = vsel %vm2418, %v2420, %v2422
      %v2424 = vrot.slane %v1917, 1
      %v2425 = vsel %vm2418, %v2422, %v2424
      %v2426 = vrot.slane %v1918, 1
      %v2427 = vsel %vm2418, %v2424, %v2426
      %v2428 = vrot.slane %v1919, 1
      %v2429 = vsel %vm2418, %v2426, %v2428
      %v2430 = vrot.slane %v1920, 1
      %v2431 = vsel %vm2418, %v2428, %v2430
      %v2432 = vrot.slane %v1921, 1
      %v2433 = vsel %vm2418, %v2430, %v2432
      %v2434 = vrot.slane %v1922, 1
      %v2435 = vsel %vm2418, %v2432, %v2434
      %v2436 = vrot.slane %v1923, 1
      %v2437 = vsel %vm2418, %v2434, %v2436
      %v2438 = vrot.slane %v1924, 1
      %v2439 = vsel %vm2418, %v2436, %v2438
      %v2440 = vrot.slane %v1925, 1
      %v2441 = vsel %vm2418, %v2438, %v2440
      %v2442 = vrot.slane %v1926, 1
      %v2443 = vsel %vm2418, %v2440, %v2442
      %v2444 = vrot.slane %v1927, 1
      %v2445 = vsel %vm2418, %v2442, %v2444
      %v2446 = vrot.slane %v1928, 1
      %v2447 = vsel %vm2418, %v2444, %v2446
      %v2448 = vrot.slane %v1929, 1
      %v2449 = vsel %vm2418, %v2446, %v2448
      %v2450 = vrot.slane %v1930, 1
      %v2451 = vsel %vm2418, %v2448, %v2450
      %v2452 = vrot.slane %v1931, 1
      %v2453 = vsel %vm2418, %v2450, %v2452
      %v2454 = vrot.slane %v2093, 1
      %v2455 = vsel %vm2418, %v2452, %v2454
      %v2457 = vsel %vm1932, %v2421, 0
      %v2460 = vsel %vm1932, %v2423, 0
      %v2463 = vsel %vm1932, %v2425, 0
      %v2466 = vsel %vm1932, %v2427, 0
      %v2469 = vsel %vm1932, %v2429, 0
      %v2472 = vsel %vm1932, %v2431, 0
      %v2475 = vsel %vm1932, %v2433, 0
      %v2478 = vsel %vm1932, %v2435, 0
      %v2481 = vsel %vm1932, %v2437, 0
      %v2484 = vsel %vm1932, %v2439, 0
      %v2487 = vsel %vm1932, %v2441, 0
      %v2490 = vsel %vm1932, %v2443, 0
      %v2493 = vsel %vm1932, %v2445, 0
      %v2496 = vsel %vm1932, %v2447, 0
      %v2499 = vsel %vm1932, %v2449, 0
      %v2502 = vsel %vm1932, %v2451, 0
      %v2505 = vsel %vm1932, %v2453, 0
      %v2508 = vsel %vm1932, %v2455, 0
      %v2511 = vsel %vm1987, %v2417, 0
      %2513 = vmatpush.bf16.msra.mxu0 0
      %2514 = vmatpush.bf16.msra.mxu0 0
      %2515 = vmatpush.bf16.msra.mxu0 0
      %2516 = vmatpush.bf16.msra.mxu0 0
      %2517 = vmatpush.bf16.msra.mxu0 0
      %2518 = vmatpush.bf16.msra.mxu0 0
      %2519 = vmatpush.bf16.msra.mxu0 0
      %2520 = vmatpush.bf16.msra.mxu0 %v2511
      %2521 = vmatmul.bf16.gmra.mxu0 %v2457
      %v2522 = vpop.f32.mrf.mxu0
      %v2523 = vadd.f32 0.0, %v2522
      %v2524 = vpop.f32.mrf.mxu0
      %v2525 = vadd.f32 0.0, %v2524
      %2526 = vmatmul.bf16.gmra.mxu0 %v2460
      %v2527 = vpop.f32.mrf.mxu0
      %v2528 = vadd.f32 0.0, %v2527
      %v2529 = vpop.f32.mrf.mxu0
      %v2530 = vadd.f32 0.0, %v2529
      %2531 = vmatmul.bf16.gmra.mxu0 %v2463
      %v2532 = vpop.f32.mrf.mxu0
      %v2533 = vadd.f32 0.0, %v2532
      %v2534 = vpop.f32.mrf.mxu0
      %v2535 = vadd.f32 0.0, %v2534
      %2536 = vmatmul.bf16.gmra.mxu0 %v2466
      %v2537 = vpop.f32.mrf.mxu0
      %v2538 = vadd.f32 0.0, %v2537
      %v2539 = vpop.f32.mrf.mxu0
      %v2540 = vadd.f32 0.0, %v2539
      %2541 = vmatmul.bf16.gmra.mxu0 %v2469
      %v2542 = vpop.f32.mrf.mxu0
      %v2543 = vadd.f32 0.0, %v2542
      %v2544 = vpop.f32.mrf.mxu0
      %v2545 = vadd.f32 0.0, %v2544
      %2546 = vmatmul.bf16.gmra.mxu0 %v2472
      %v2547 = vpop.f32.mrf.mxu0
      %v2548 = vadd.f32 0.0, %v2547
      %v2549 = vpop.f32.mrf.mxu0
      %v2550 = vadd.f32 0.0, %v2549
      %2551 = vmatmul.bf16.gmra.mxu0 %v2475
      %v2552 = vpop.f32.mrf.mxu0
      %v2553 = vadd.f32 0.0, %v2552
      %v2554 = vpop.f32.mrf.mxu0
      %v2555 = vadd.f32 0.0, %v2554
      %2556 = vmatmul.bf16.gmra.mxu0 %v2478
      %v2557 = vpop.f32.mrf.mxu0
      %v2558 = vadd.f32 0.0, %v2557
      %v2559 = vpop.f32.mrf.mxu0
      %v2560 = vadd.f32 0.0, %v2559
      %2561 = vmatmul.bf16.gmra.mxu0 %v2481
      %v2562 = vpop.f32.mrf.mxu0
      %v2563 = vadd.f32 0.0, %v2562
      %v2564 = vpop.f32.mrf.mxu0
      %v2565 = vadd.f32 0.0, %v2564
      %2566 = vmatmul.bf16.gmra.mxu0 %v2484
      %v2567 = vpop.f32.mrf.mxu0
      %v2568 = vadd.f32 0.0, %v2567
      %v2569 = vpop.f32.mrf.mxu0
      %v2570 = vadd.f32 0.0, %v2569
      %2571 = vmatmul.bf16.gmra.mxu0 %v2487
      %v2572 = vpop.f32.mrf.mxu0
      %v2573 = vadd.f32 0.0, %v2572
      %v2574 = vpop.f32.mrf.mxu0
      %v2575 = vadd.f32 0.0, %v2574
      %2576 = vmatmul.bf16.gmra.mxu0 %v2490
      %v2577 = vpop.f32.mrf.mxu0
      %v2578 = vadd.f32 0.0, %v2577
      %v2579 = vpop.f32.mrf.mxu0
      %v2580 = vadd.f32 0.0, %v2579
      %2581 = vmatmul.bf16.gmra.mxu0 %v2493
      %v2582 = vpop.f32.mrf.mxu0
      %v2583 = vadd.f32 0.0, %v2582
      %v2584 = vpop.f32.mrf.mxu0
      %v2585 = vadd.f32 0.0, %v2584
      %2586 = vmatmul.bf16.gmra.mxu0 %v2496
      %v2587 = vpop.f32.mrf.mxu0
      %v2588 = vadd.f32 0.0, %v2587
      %v2589 = vpop.f32.mrf.mxu0
      %v2590 = vadd.f32 0.0, %v2589
      %2591 = vmatmul.bf16.gmra.mxu0 %v2499
      %v2592 = vpop.f32.mrf.mxu0
      %v2593 = vadd.f32 0.0, %v2592
      %v2594 = vpop.f32.mrf.mxu0
      %v2595 = vadd.f32 0.0, %v2594
      %2596 = vmatmul.bf16.gmra.mxu0 %v2502
      %v2597 = vpop.f32.mrf.mxu0
      %v2598 = vadd.f32 0.0, %v2597
      %v2599 = vpop.f32.mrf.mxu0
      %v2600 = vadd.f32 0.0, %v2599
      %2601 = vmatmul.bf16.gmra.mxu0 %v2505
      %v2602 = vpop.f32.mrf.mxu0
      %v2603 = vadd.f32 0.0, %v2602
      %v2604 = vpop.f32.mrf.mxu0
      %v2605 = vadd.f32 0.0, %v2604
      %2606 = vmatmul.bf16.gmra.mxu0 %v2508
      %v2607 = vpop.f32.mrf.mxu0
      %v2608 = vadd.f32 0.0, %v2607
      %v2609 = vpop.f32.mrf.mxu0
      %v2610 = vadd.f32 0.0, %v2609
      %2611 = vdwg.mxu0
      %v2612 = vadd.f32 %v2381, %v2523
      %v2613 = vadd.f32 %v2382, %v2525
      %v2614 = vadd.f32 %v2383, %v2528
      %v2615 = vadd.f32 %v2384, %v2530
      %v2616 = vadd.f32 %v2385, %v2533
      %v2617 = vadd.f32 %v2386, %v2535
      %v2618 = vadd.f32 %v2387, %v2538
      %v2619 = vadd.f32 %v2388, %v2540
      %v2620 = vadd.f32 %v2389, %v2543
      %v2621 = vadd.f32 %v2390, %v2545
      %v2622 = vadd.f32 %v2391, %v2548
      %v2623 = vadd.f32 %v2392, %v2550
      %v2624 = vadd.f32 %v2393, %v2553
      %v2625 = vadd.f32 %v2394, %v2555
      %v2626 = vadd.f32 %v2395, %v2558
      %v2627 = vadd.f32 %v2396, %v2560
      %v2628 = vadd.f32 %v2397, %v2563
      %v2629 = vadd.f32 %v2398, %v2565
      %v2630 = vadd.f32 %v2399, %v2568
      %v2631 = vadd.f32 %v2400, %v2570
      %v2632 = vadd.f32 %v2401, %v2573
      %v2633 = vadd.f32 %v2402, %v2575
      %v2634 = vadd.f32 %v2403, %v2578
      %v2635 = vadd.f32 %v2404, %v2580
      %v2636 = vadd.f32 %v2405, %v2583
      %v2637 = vadd.f32 %v2406, %v2585
      %v2638 = vadd.f32 %v2407, %v2588
      %v2639 = vadd.f32 %v2408, %v2590
      %v2640 = vadd.f32 %v2409, %v2593
      %v2641 = vadd.f32 %v2410, %v2595
      %v2642 = vadd.f32 %v2411, %v2598
      %v2643 = vadd.f32 %v2412, %v2600
      %v2644 = vadd.f32 %v2413, %v2603
      %v2645 = vadd.f32 %v2414, %v2605
      %v2646 = vadd.f32 %v2415, %v2608
      %v2647 = vadd.f32 %v2416, %v2610
      %v2648 = vld [vmem:[%s4 + $0xc] sm:$0xf]
      %v2651 = vunpack.c.l.b16 %v1833
      %v2652 = vunpack.c.l.b16 %v1834
      %v2653 = vpack.c.b16 %v2651, %v2092
      %v2654 = vpack.c.b16 %v2652, %v2652
      %v2655 = vrot.slane %v2653, 1
      %v2656 = vsel %vm2418, %v2452, %v2655
      %v2657 = vrot.slane %v2654, 1
      %v2658 = vsel %vm2418, %v2655, %v2657
      %v2660 = vsel %vm1932, %v2656, 0
      %v2663 = vsel %vm1932, %v2658, 0
      %v2666 = vsel %vm1987, %v2648, 0
      %2668 = vmatpush.bf16.msra.mxu0 0
      %2669 = vmatpush.bf16.msra.mxu0 0
      %2670 = vmatpush.bf16.msra.mxu0 0
      %2671 = vmatpush.bf16.msra.mxu0 0
      %2672 = vmatpush.bf16.msra.mxu0 0
      %2673 = vmatpush.bf16.msra.mxu0 0
      %2674 = vmatpush.bf16.msra.mxu0 0
      %2675 = vmatpush.bf16.msra.mxu0 %v2666
      %2676 = vmatmul.bf16.gmra.mxu0 %v2460
      %v2677 = vpop.f32.mrf.mxu0
      %v2678 = vadd.f32 0.0, %v2677
      %v2679 = vpop.f32.mrf.mxu0
      %v2680 = vadd.f32 0.0, %v2679
      %2681 = vmatmul.bf16.gmra.mxu0 %v2463
      %v2682 = vpop.f32.mrf.mxu0
      %v2683 = vadd.f32 0.0, %v2682
      %v2684 = vpop.f32.mrf.mxu0
      %v2685 = vadd.f32 0.0, %v2684
      %2686 = vmatmul.bf16.gmra.mxu0 %v2466
      %v2687 = vpop.f32.mrf.mxu0
      %v2688 = vadd.f32 0.0, %v2687
      %v2689 = vpop.f32.mrf.mxu0
      %v2690 = vadd.f32 0.0, %v2689
      %2691 = vmatmul.bf16.gmra.mxu0 %v2469
      %v2692 = vpop.f32.mrf.mxu0
      %v2693 = vadd.f32 0.0, %v2692
      %v2694 = vpop.f32.mrf.mxu0
      %v2695 = vadd.f32 0.0, %v2694
      %2696 = vmatmul.bf16.gmra.mxu0 %v2472
      %v2697 = vpop.f32.mrf.mxu0
      %v2698 = vadd.f32 0.0, %v2697
      %v2699 = vpop.f32.mrf.mxu0
      %v2700 = vadd.f32 0.0, %v2699
      %2701 = vmatmul.bf16.gmra.mxu0 %v2475
      %v2702 = vpop.f32.mrf.mxu0
      %v2703 = vadd.f32 0.0, %v2702
      %v2704 = vpop.f32.mrf.mxu0
      %v2705 = vadd.f32 0.0, %v2704
      %2706 = vmatmul.bf16.gmra.mxu0 %v2478
      %v2707 = vpop.f32.mrf.mxu0
      %v2708 = vadd.f32 0.0, %v2707
      %v2709 = vpop.f32.mrf.mxu0
      %v2710 = vadd.f32 0.0, %v2709
      %2711 = vmatmul.bf16.gmra.mxu0 %v2481
      %v2712 = vpop.f32.mrf.mxu0
      %v2713 = vadd.f32 0.0, %v2712
      %v2714 = vpop.f32.mrf.mxu0
      %v2715 = vadd.f32 0.0, %v2714
      %2716 = vmatmul.bf16.gmra.mxu0 %v2484
      %v2717 = vpop.f32.mrf.mxu0
      %v2718 = vadd.f32 0.0, %v2717
      %v2719 = vpop.f32.mrf.mxu0
      %v2720 = vadd.f32 0.0, %v2719
      %2721 = vmatmul.bf16.gmra.mxu0 %v2487
      %v2722 = vpop.f32.mrf.mxu0
      %v2723 = vadd.f32 0.0, %v2722
      %v2724 = vpop.f32.mrf.mxu0
      %v2725 = vadd.f32 0.0, %v2724
      %2726 = vmatmul.bf16.gmra.mxu0 %v2490
      %v2727 = vpop.f32.mrf.mxu0
      %v2728 = vadd.f32 0.0, %v2727
      %v2729 = vpop.f32.mrf.mxu0
      %v2730 = vadd.f32 0.0, %v2729
      %2731 = vmatmul.bf16.gmra.mxu0 %v2493
      %v2732 = vpop.f32.mrf.mxu0
      %v2733 = vadd.f32 0.0, %v2732
      %v2734 = vpop.f32.mrf.mxu0
      %v2735 = vadd.f32 0.0, %v2734
      %2736 = vmatmul.bf16.gmra.mxu0 %v2496
      %v2737 = vpop.f32.mrf.mxu0
      %v2738 = vadd.f32 0.0, %v2737
      %v2739 = vpop.f32.mrf.mxu0
      %v2740 = vadd.f32 0.0, %v2739
      %2741 = vmatmul.bf16.gmra.mxu0 %v2499
      %v2742 = vpop.f32.mrf.mxu0
      %v2743 = vadd.f32 0.0, %v2742
      %v2744 = vpop.f32.mrf.mxu0
      %v2745 = vadd.f32 0.0, %v2744
      %2746 = vmatmul.bf16.gmra.mxu0 %v2502
      %v2747 = vpop.f32.mrf.mxu0
      %v2748 = vadd.f32 0.0, %v2747
      %v2749 = vpop.f32.mrf.mxu0
      %v2750 = vadd.f32 0.0, %v2749
      %2751 = vmatmul.bf16.gmra.mxu0 %v2505
      %v2752 = vpop.f32.mrf.mxu0
      %v2753 = vadd.f32 0.0, %v2752
      %v2754 = vpop.f32.mrf.mxu0
      %v2755 = vadd.f32 0.0, %v2754
      %2756 = vmatmul.bf16.gmra.mxu0 %v2660
      %v2757 = vpop.f32.mrf.mxu0
      %v2758 = vadd.f32 0.0, %v2757
      %v2759 = vpop.f32.mrf.mxu0
      %v2760 = vadd.f32 0.0, %v2759
      %2761 = vmatmul.bf16.gmra.mxu0 %v2663
      %v2762 = vpop.f32.mrf.mxu0
      %v2763 = vadd.f32 0.0, %v2762
      %v2764 = vpop.f32.mrf.mxu0
      %v2765 = vadd.f32 0.0, %v2764
      %2766 = vdwg.mxu0
      %v2767 = vadd.f32 %v2612, %v2678
      %v2768 = vadd.f32 %v2613, %v2680
      %v2769 = vadd.f32 %v2614, %v2683
      %v2770 = vadd.f32 %v2615, %v2685
      %v2771 = vadd.f32 %v2616, %v2688
      %v2772 = vadd.f32 %v2617, %v2690
      %v2773 = vadd.f32 %v2618, %v2693
      %v2774 = vadd.f32 %v2619, %v2695
      %v2775 = vadd.f32 %v2620, %v2698
      %v2776 = vadd.f32 %v2621, %v2700
      %v2777 = vadd.f32 %v2622, %v2703
      %v2778 = vadd.f32 %v2623, %v2705
      %v2779 = vadd.f32 %v2624, %v2708
      %v2780 = vadd.f32 %v2625, %v2710
      %v2781 = vadd.f32 %v2626, %v2713
      %v2782 = vadd.f32 %v2627, %v2715
      %v2783 = vadd.f32 %v2628, %v2718
      %v2784 = vadd.f32 %v2629, %v2720
      %v2785 = vadd.f32 %v2630, %v2723
      %v2786 = vadd.f32 %v2631, %v2725
      %v2787 = vadd.f32 %v2632, %v2728
      %v2788 = vadd.f32 %v2633, %v2730
      %v2789 = vadd.f32 %v2634, %v2733
      %v2790 = vadd.f32 %v2635, %v2735
      %v2791 = vadd.f32 %v2636, %v2738
      %v2792 = vadd.f32 %v2637, %v2740
      %v2793 = vadd.f32 %v2638, %v2743
      %v2794 = vadd.f32 %v2639, %v2745
      %v2795 = vadd.f32 %v2640, %v2748
      %v2796 = vadd.f32 %v2641, %v2750
      %v2797 = vadd.f32 %v2642, %v2753
      %v2798 = vadd.f32 %v2643, %v2755
      %v2799 = vadd.f32 %v2644, %v2758
      %v2800 = vadd.f32 %v2645, %v2760
      %v2801 = vadd.f32 %v2646, %v2763
      %v2802 = vadd.f32 %v2647, %v2765
      %v2803 = vld [vmem:[%s4 + $0x10] sm:$0xf]
      %vm2804 = vsmask.f32 6400
      %v2805 = vrot.slane %v2105, 1
      %v2806 = vrot.slane %v2101, 2
      %v2807 = vor.u32 %v2805, %v2806
      %v2808 = vrot.slane %v2112, 1
      %v2809 = vrot.slane %v2108, 2
      %v2810 = vor.u32 %v2808, %v2809
      %v2811 = vsel %vm2804, %v2807, %v2810
      %v2812 = vrot.slane %v2119, 1
      %v2813 = vrot.slane %v2115, 2
      %v2814 = vor.u32 %v2812, %v2813
      %v2815 = vsel %vm2804, %v2810, %v2814
      %v2816 = vrot.slane %v2126, 1
      %v2817 = vrot.slane %v2122, 2
      %v2818 = vor.u32 %v2816, %v2817
      %v2819 = vsel %vm2804, %v2814, %v2818
      %v2820 = vrot.slane %v2133, 1
      %v2821 = vrot.slane %v2129, 2
      %v2822 = vor.u32 %v2820, %v2821
      %v2823 = vsel %vm2804, %v2818, %v2822
      %v2824 = vrot.slane %v2140, 1
      %v2825 = vrot.slane %v2136, 2
      %v2826 = vor.u32 %v2824, %v2825
      %v2827 = vsel %vm2804, %v2822, %v2826
      %v2828 = vrot.slane %v2147, 1
      %v2829 = vrot.slane %v2143, 2
      %v2830 = vor.u32 %v2828, %v2829
      %v2831 = vsel %vm2804, %v2826, %v2830
      %v2832 = vrot.slane %v2154, 1
      %v2833 = vrot.slane %v2150, 2
      %v2834 = vor.u32 %v2832, %v2833
      %v2835 = vsel %vm2804, %v2830, %v2834
      %v2836 = vrot.slane %v2161, 1
      %v2837 = vrot.slane %v2157, 2
      %v2838 = vor.u32 %v2836, %v2837
      %v2839 = vsel %vm2804, %v2834, %v2838
      %v2840 = vrot.slane %v2168, 1
      %v2841 = vrot.slane %v2164, 2
      %v2842 = vor.u32 %v2840, %v2841
      %v2843 = vsel %vm2804, %v2838, %v2842
      %v2844 = vrot.slane %v2175, 1
      %v2845 = vrot.slane %v2171, 2
      %v2846 = vor.u32 %v2844, %v2845
      %v2847 = vsel %vm2804, %v2842, %v2846
      %v2848 = vrot.slane %v2182, 1
      %v2849 = vrot.slane %v2178, 2
      %v2850 = vor.u32 %v2848, %v2849
      %v2851 = vsel %vm2804, %v2846, %v2850
      %v2852 = vrot.slane %v2189, 1
      %v2853 = vrot.slane %v2185, 2
      %v2854 = vor.u32 %v2852, %v2853
      %v2855 = vsel %vm2804, %v2850, %v2854
      %v2856 = vrot.slane %v2196, 1
      %v2857 = vrot.slane %v2192, 2
      %v2858 = vor.u32 %v2856, %v2857
      %v2859 = vsel %vm2804, %v2854, %v2858
      %v2860 = vrot.slane %v2203, 1
      %v2861 = vrot.slane %v2199, 2
      %v2862 = vor.u32 %v2860, %v2861
      %v2863 = vsel %vm2804, %v2858, %v2862
      %v2864 = vrot.slane %v2210, 1
      %v2865 = vrot.slane %v2206, 2
      %v2866 = vor.u32 %v2864, %v2865
      %v2867 = vsel %vm2804, %v2862, %v2866
      %v2868 = vrot.slane %v2217, 1
      %v2869 = vrot.slane %v2213, 2
      %v2870 = vor.u32 %v2868, %v2869
      %v2871 = vsel %vm2804, %v2866, %v2870
      %v2873 = vshrl.u32 %v2653, 16
      %v2875 = vrot.slane %v2873, 1
      %v2876 = vshll.u32 %v2653, 16
      %v2878 = vrot.slane %v2876, 2
      %v2879 = vor.u32 %v2875, %v2878
      %v2880 = vsel %vm2804, %v2870, %v2879
      %v2882 = vshrl.u32 %v2654, 16
      %v2884 = vrot.slane %v2882, 1
      %v2885 = vshll.u32 %v2654, 16
      %v2887 = vrot.slane %v2885, 2
      %v2888 = vor.u32 %v2884, %v2887
      %v2889 = vsel %vm2804, %v2879, %v2888
      %v2891 = vsel %vm1932, %v2811, 0
      %v2894 = vsel %vm1932, %v2815, 0
      %v2897 = vsel %vm1932, %v2819, 0
      %v2900 = vsel %vm1932, %v2823, 0
      %v2903 = vsel %vm1932, %v2827, 0
      %v2906 = vsel %vm1932, %v2831, 0
      %v2909 = vsel %vm1932, %v2835, 0
      %v2912 = vsel %vm1932, %v2839, 0
      %v2915 = vsel %vm1932, %v2843, 0
      %v2918 = vsel %vm1932, %v2847, 0
      %v2921 = vsel %vm1932, %v2851, 0
      %v2924 = vsel %vm1932, %v2855, 0
      %v2927 = vsel %vm1932, %v2859, 0
      %v2930 = vsel %vm1932, %v2863, 0
      %v2933 = vsel %vm1932, %v2867, 0
      %v2936 = vsel %vm1932, %v2871, 0
      %v2939 = vsel %vm1932, %v2880, 0
      %v2942 = vsel %vm1932, %v2889, 0
      %v2945 = vsel %vm1987, %v2803, 0
      %2947 = vmatpush.bf16.msra.mxu0 0
      %2948 = vmatpush.bf16.msra.mxu0 0
      %2949 = vmatpush.bf16.msra.mxu0 0
      %2950 = vmatpush.bf16.msra.mxu0 0
      %2951 = vmatpush.bf16.msra.mxu0 0
      %2952 = vmatpush.bf16.msra.mxu0 0
      %2953 = vmatpush.bf16.msra.mxu0 0
      %2954 = vmatpush.bf16.msra.mxu0 %v2945
      %2955 = vmatmul.bf16.gmra.mxu0 %v2891
      %v2956 = vpop.f32.mrf.mxu0
      %v2957 = vadd.f32 0.0, %v2956
      %v2958 = vpop.f32.mrf.mxu0
      %v2959 = vadd.f32 0.0, %v2958
      %2960 = vmatmul.bf16.gmra.mxu0 %v2894
      %v2961 = vpop.f32.mrf.mxu0
      %v2962 = vadd.f32 0.0, %v2961
      %v2963 = vpop.f32.mrf.mxu0
      %v2964 = vadd.f32 0.0, %v2963
      %2965 = vmatmul.bf16.gmra.mxu0 %v2897
      %v2966 = vpop.f32.mrf.mxu0
      %v2967 = vadd.f32 0.0, %v2966
      %v2968 = vpop.f32.mrf.mxu0
      %v2969 = vadd.f32 0.0, %v2968
      %2970 = vmatmul.bf16.gmra.mxu0 %v2900
      %v2971 = vpop.f32.mrf.mxu0
      %v2972 = vadd.f32 0.0, %v2971
      %v2973 = vpop.f32.mrf.mxu0
      %v2974 = vadd.f32 0.0, %v2973
      %2975 = vmatmul.bf16.gmra.mxu0 %v2903
      %v2976 = vpop.f32.mrf.mxu0
      %v2977 = vadd.f32 0.0, %v2976
      %v2978 = vpop.f32.mrf.mxu0
      %v2979 = vadd.f32 0.0, %v2978
      %2980 = vmatmul.bf16.gmra.mxu0 %v2906
      %v2981 = vpop.f32.mrf.mxu0
      %v2982 = vadd.f32 0.0, %v2981
      %v2983 = vpop.f32.mrf.mxu0
      %v2984 = vadd.f32 0.0, %v2983
      %2985 = vmatmul.bf16.gmra.mxu0 %v2909
      %v2986 = vpop.f32.mrf.mxu0
      %v2987 = vadd.f32 0.0, %v2986
      %v2988 = vpop.f32.mrf.mxu0
      %v2989 = vadd.f32 0.0, %v2988
      %2990 = vmatmul.bf16.gmra.mxu0 %v2912
      %v2991 = vpop.f32.mrf.mxu0
      %v2992 = vadd.f32 0.0, %v2991
      %v2993 = vpop.f32.mrf.mxu0
      %v2994 = vadd.f32 0.0, %v2993
      %2995 = vmatmul.bf16.gmra.mxu0 %v2915
      %v2996 = vpop.f32.mrf.mxu0
      %v2997 = vadd.f32 0.0, %v2996
      %v2998 = vpop.f32.mrf.mxu0
      %v2999 = vadd.f32 0.0, %v2998
      %3000 = vmatmul.bf16.gmra.mxu0 %v2918
      %v3001 = vpop.f32.mrf.mxu0
      %v3002 = vadd.f32 0.0, %v3001
      %v3003 = vpop.f32.mrf.mxu0
      %v3004 = vadd.f32 0.0, %v3003
      %3005 = vmatmul.bf16.gmra.mxu0 %v2921
      %v3006 = vpop.f32.mrf.mxu0
      %v3007 = vadd.f32 0.0, %v3006
      %v3008 = vpop.f32.mrf.mxu0
      %v3009 = vadd.f32 0.0, %v3008
      %3010 = vmatmul.bf16.gmra.mxu0 %v2924
      %v3011 = vpop.f32.mrf.mxu0
      %v3012 = vadd.f32 0.0, %v3011
      %v3013 = vpop.f32.mrf.mxu0
      %v3014 = vadd.f32 0.0, %v3013
      %3015 = vmatmul.bf16.gmra.mxu0 %v2927
      %v3016 = vpop.f32.mrf.mxu0
      %v3017 = vadd.f32 0.0, %v3016
      %v3018 = vpop.f32.mrf.mxu0
      %v3019 = vadd.f32 0.0, %v3018
      %3020 = vmatmul.bf16.gmra.mxu0 %v2930
      %v3021 = vpop.f32.mrf.mxu0
      %v3022 = vadd.f32 0.0, %v3021
      %v3023 = vpop.f32.mrf.mxu0
      %v3024 = vadd.f32 0.0, %v3023
      %3025 = vmatmul.bf16.gmra.mxu0 %v2933
      %v3026 = vpop.f32.mrf.mxu0
      %v3027 = vadd.f32 0.0, %v3026
      %v3028 = vpop.f32.mrf.mxu0
      %v3029 = vadd.f32 0.0, %v3028
      %3030 = vmatmul.bf16.gmra.mxu0 %v2936
      %v3031 = vpop.f32.mrf.mxu0
      %v3032 = vadd.f32 0.0, %v3031
      %v3033 = vpop.f32.mrf.mxu0
      %v3034 = vadd.f32 0.0, %v3033
      %3035 = vmatmul.bf16.gmra.mxu0 %v2939
      %v3036 = vpop.f32.mrf.mxu0
      %v3037 = vadd.f32 0.0, %v3036
      %v3038 = vpop.f32.mrf.mxu0
      %v3039 = vadd.f32 0.0, %v3038
      %3040 = vmatmul.bf16.gmra.mxu0 %v2942
      %v3041 = vpop.f32.mrf.mxu0
      %v3042 = vadd.f32 0.0, %v3041
      %v3043 = vpop.f32.mrf.mxu0
      %v3044 = vadd.f32 0.0, %v3043
      %3045 = vdwg.mxu0
      %v3046 = vadd.f32 %v2767, %v2957
      %v3047 = vadd.f32 %v2768, %v2959
      %v3048 = vadd.f32 %v2769, %v2962
      %v3049 = vadd.f32 %v2770, %v2964
      %v3050 = vadd.f32 %v2771, %v2967
      %v3051 = vadd.f32 %v2772, %v2969
      %v3052 = vadd.f32 %v2773, %v2972
      %v3053 = vadd.f32 %v2774, %v2974
      %v3054 = vadd.f32 %v2775, %v2977
      %v3055 = vadd.f32 %v2776, %v2979
      %v3056 = vadd.f32 %v2777, %v2982
      %v3057 = vadd.f32 %v2778, %v2984
      %v3058 = vadd.f32 %v2779, %v2987
      %v3059 = vadd.f32 %v2780, %v2989
      %v3060 = vadd.f32 %v2781, %v2992
      %v3061 = vadd.f32 %v2782, %v2994
      %v3062 = vadd.f32 %v2783, %v2997
      %v3063 = vadd.f32 %v2784, %v2999
      %v3064 = vadd.f32 %v2785, %v3002
      %v3065 = vadd.f32 %v2786, %v3004
      %v3066 = vadd.f32 %v2787, %v3007
      %v3067 = vadd.f32 %v2788, %v3009
      %v3068 = vadd.f32 %v2789, %v3012
      %v3069 = vadd.f32 %v2790, %v3014
      %v3070 = vadd.f32 %v2791, %v3017
      %v3071 = vadd.f32 %v2792, %v3019
      %v3072 = vadd.f32 %v2793, %v3022
      %v3073 = vadd.f32 %v2794, %v3024
      %v3074 = vadd.f32 %v2795, %v3027
      %v3075 = vadd.f32 %v2796, %v3029
      %v3076 = vadd.f32 %v2797, %v3032
      %v3077 = vadd.f32 %v2798, %v3034
      %v3078 = vadd.f32 %v2799, %v3037
      %v3079 = vadd.f32 %v2800, %v3039
      %v3080 = vadd.f32 %v2801, %v3042
      %v3081 = vadd.f32 %v2802, %v3044
      %v3082 = vld [vmem:[%s4 + $0x14] sm:$0xf]
      %vm3083 = vcmask 1045504
      %v3084 = vrot.slane %v1915, 2
      %v3085 = vrot.slane %v1916, 2
      %v3086 = vsel %vm3083, %v3084, %v3085
      %v3087 = vrot.slane %v1917, 2
      %v3088 = vsel %vm3083, %v3085, %v3087
      %v3089 = vrot.slane %v1918, 2
      %v3090 = vsel %vm3083, %v3087, %v3089
      %v3091 = vrot.slane %v1919, 2
      %v3092 = vsel %vm3083, %v3089, %v3091
      %v3093 = vrot.slane %v1920, 2
      %v3094 = vsel %vm3083, %v3091, %v3093
      %v3095 = vrot.slane %v1921, 2
      %v3096 = vsel %vm3083, %v3093, %v3095
      %v3097 = vrot.slane %v1922, 2
      %v3098 = vsel %vm3083, %v3095, %v3097
      %v3099 = vrot.slane %v1923, 2
      %v3100 = vsel %vm3083, %v3097, %v3099
      %v3101 = vrot.slane %v1924, 2
      %v3102 = vsel %vm3083, %v3099, %v3101
      %v3103 = vrot.slane %v1925, 2
      %v3104 = vsel %vm3083, %v3101, %v3103
      %v3105 = vrot.slane %v1926, 2
      %v3106 = vsel %vm3083, %v3103, %v3105
      %v3107 = vrot.slane %v1927, 2
      %v3108 = vsel %vm3083, %v3105, %v3107
      %v3109 = vrot.slane %v1928, 2
      %v3110 = vsel %vm3083, %v3107, %v3109
      %v3111 = vrot.slane %v1929, 2
      %v3112 = vsel %vm3083, %v3109, %v3111
      %v3113 = vrot.slane %v1930, 2
      %v3114 = vsel %vm3083, %v3111, %v3113
      %v3115 = vrot.slane %v1931, 2
      %v3116 = vsel %vm3083, %v3113, %v3115
      %v3117 = vrot.slane %v2653, 2
      %v3118 = vsel %vm3083, %v3115, %v3117
      %v3119 = vrot.slane %v2654, 2
      %v3120 = vsel %vm3083, %v3117, %v3119
      %v3122 = vsel %vm1932, %v3086, 0
      %v3125 = vsel %vm1932, %v3088, 0
      %v3128 = vsel %vm1932, %v3090, 0
      %v3131 = vsel %vm1932, %v3092, 0
      %v3134 = vsel %vm1932, %v3094, 0
      %v3137 = vsel %vm1932, %v3096, 0
      %v3140 = vsel %vm1932, %v3098, 0
      %v3143 = vsel %vm1932, %v3100, 0
      %v3146 = vsel %vm1932, %v3102, 0
      %v3149 = vsel %vm1932, %v3104, 0
      %v3152 = vsel %vm1932, %v3106, 0
      %v3155 = vsel %vm1932, %v3108, 0
      %v3158 = vsel %vm1932, %v3110, 0
      %v3161 = vsel %vm1932, %v3112, 0
      %v3164 = vsel %vm1932, %v3114, 0
      %v3167 = vsel %vm1932, %v3116, 0
      %v3170 = vsel %vm1932, %v3118, 0
      %v3173 = vsel %vm1932, %v3120, 0
      %v3176 = vsel %vm1987, %v3082, 0
      %3178 = vmatpush.bf16.msra.mxu0 0
      %3179 = vmatpush.bf16.msra.mxu0 0
      %3180 = vmatpush.bf16.msra.mxu0 0
      %3181 = vmatpush.bf16.msra.mxu0 0
      %3182 = vmatpush.bf16.msra.mxu0 0
      %3183 = vmatpush.bf16.msra.mxu0 0
      %3184 = vmatpush.bf16.msra.mxu0 0
      %3185 = vmatpush.bf16.msra.mxu0 %v3176
      %3186 = vmatmul.bf16.gmra.mxu0 %v3122
      %v3187 = vpop.f32.mrf.mxu0
      %v3188 = vadd.f32 0.0, %v3187
      %v3189 = vpop.f32.mrf.mxu0
      %v3190 = vadd.f32 0.0, %v3189
      %3191 = vmatmul.bf16.gmra.mxu0 %v3125
      %v3192 = vpop.f32.mrf.mxu0
      %v3193 = vadd.f32 0.0, %v3192
      %v3194 = vpop.f32.mrf.mxu0
      %v3195 = vadd.f32 0.0, %v3194
      %3196 = vmatmul.bf16.gmra.mxu0 %v3128
      %v3197 = vpop.f32.mrf.mxu0
      %v3198 = vadd.f32 0.0, %v3197
      %v3199 = vpop.f32.mrf.mxu0
      %v3200 = vadd.f32 0.0, %v3199
      %3201 = vmatmul.bf16.gmra.mxu0 %v3131
      %v3202 = vpop.f32.mrf.mxu0
      %v3203 = vadd.f32 0.0, %v3202
      %v3204 = vpop.f32.mrf.mxu0
      %v3205 = vadd.f32 0.0, %v3204
      %3206 = vmatmul.bf16.gmra.mxu0 %v3134
      %v3207 = vpop.f32.mrf.mxu0
      %v3208 = vadd.f32 0.0, %v3207
      %v3209 = vpop.f32.mrf.mxu0
      %v3210 = vadd.f32 0.0, %v3209
      %3211 = vmatmul.bf16.gmra.mxu0 %v3137
      %v3212 = vpop.f32.mrf.mxu0
      %v3213 = vadd.f32 0.0, %v3212
      %v3214 = vpop.f32.mrf.mxu0
      %v3215 = vadd.f32 0.0, %v3214
      %3216 = vmatmul.bf16.gmra.mxu0 %v3140
      %v3217 = vpop.f32.mrf.mxu0
      %v3218 = vadd.f32 0.0, %v3217
      %v3219 = vpop.f32.mrf.mxu0
      %v3220 = vadd.f32 0.0, %v3219
      %3221 = vmatmul.bf16.gmra.mxu0 %v3143
      %v3222 = vpop.f32.mrf.mxu0
      %v3223 = vadd.f32 0.0, %v3222
      %v3224 = vpop.f32.mrf.mxu0
      %v3225 = vadd.f32 0.0, %v3224
      %3226 = vmatmul.bf16.gmra.mxu0 %v3146
      %v3227 = vpop.f32.mrf.mxu0
      %v3228 = vadd.f32 0.0, %v3227
      %v3229 = vpop.f32.mrf.mxu0
      %v3230 = vadd.f32 0.0, %v3229
      %3231 = vmatmul.bf16.gmra.mxu0 %v3149
      %v3232 = vpop.f32.mrf.mxu0
      %v3233 = vadd.f32 0.0, %v3232
      %v3234 = vpop.f32.mrf.mxu0
      %v3235 = vadd.f32 0.0, %v3234
      %3236 = vmatmul.bf16.gmra.mxu0 %v3152
      %v3237 = vpop.f32.mrf.mxu0
      %v3238 = vadd.f32 0.0, %v3237
      %v3239 = vpop.f32.mrf.mxu0
      %v3240 = vadd.f32 0.0, %v3239
      %3241 = vmatmul.bf16.gmra.mxu0 %v3155
      %v3242 = vpop.f32.mrf.mxu0
      %v3243 = vadd.f32 0.0, %v3242
      %v3244 = vpop.f32.mrf.mxu0
      %v3245 = vadd.f32 0.0, %v3244
      %3246 = vmatmul.bf16.gmra.mxu0 %v3158
      %v3247 = vpop.f32.mrf.mxu0
      %v3248 = vadd.f32 0.0, %v3247
      %v3249 = vpop.f32.mrf.mxu0
      %v3250 = vadd.f32 0.0, %v3249
      %3251 = vmatmul.bf16.gmra.mxu0 %v3161
      %v3252 = vpop.f32.mrf.mxu0
      %v3253 = vadd.f32 0.0, %v3252
      %v3254 = vpop.f32.mrf.mxu0
      %v3255 = vadd.f32 0.0, %v3254
      %3256 = vmatmul.bf16.gmra.mxu0 %v3164
      %v3257 = vpop.f32.mrf.mxu0
      %v3258 = vadd.f32 0.0, %v3257
      %v3259 = vpop.f32.mrf.mxu0
      %v3260 = vadd.f32 0.0, %v3259
      %3261 = vmatmul.bf16.gmra.mxu0 %v3167
      %v3262 = vpop.f32.mrf.mxu0
      %v3263 = vadd.f32 0.0, %v3262
      %v3264 = vpop.f32.mrf.mxu0
      %v3265 = vadd.f32 0.0, %v3264
      %3266 = vmatmul.bf16.gmra.mxu0 %v3170
      %v3267 = vpop.f32.mrf.mxu0
      %v3268 = vadd.f32 0.0, %v3267
      %v3269 = vpop.f32.mrf.mxu0
      %v3270 = vadd.f32 0.0, %v3269
      %3271 = vmatmul.bf16.gmra.mxu0 %v3173
      %v3272 = vpop.f32.mrf.mxu0
      %v3273 = vadd.f32 0.0, %v3272
      %v3274 = vpop.f32.mrf.mxu0
      %v3275 = vadd.f32 0.0, %v3274
      %3276 = vdwg.mxu0
      %v3277 = vadd.f32 %v3046, %v3188
      %v3278 = vadd.f32 %v3047, %v3190
      %v3279 = vadd.f32 %v3048, %v3193
      %v3280 = vadd.f32 %v3049, %v3195
      %v3281 = vadd.f32 %v3050, %v3198
      %v3282 = vadd.f32 %v3051, %v3200
      %v3283 = vadd.f32 %v3052, %v3203
      %v3284 = vadd.f32 %v3053, %v3205
      %v3285 = vadd.f32 %v3054, %v3208
      %v3286 = vadd.f32 %v3055, %v3210
      %v3287 = vadd.f32 %v3056, %v3213
      %v3288 = vadd.f32 %v3057, %v3215
      %v3289 = vadd.f32 %v3058, %v3218
      %v3290 = vadd.f32 %v3059, %v3220
      %v3291 = vadd.f32 %v3060, %v3223
      %v3292 = vadd.f32 %v3061, %v3225
      %v3293 = vadd.f32 %v3062, %v3228
      %v3294 = vadd.f32 %v3063, %v3230
      %v3295 = vadd.f32 %v3064, %v3233
      %v3296 = vadd.f32 %v3065, %v3235
      %v3297 = vadd.f32 %v3066, %v3238
      %v3298 = vadd.f32 %v3067, %v3240
      %v3299 = vadd.f32 %v3068, %v3243
      %v3300 = vadd.f32 %v3069, %v3245
      %v3301 = vadd.f32 %v3070, %v3248
      %v3302 = vadd.f32 %v3071, %v3250
      %v3303 = vadd.f32 %v3072, %v3253
      %v3304 = vadd.f32 %v3073, %v3255
      %v3305 = vadd.f32 %v3074, %v3258
      %v3306 = vadd.f32 %v3075, %v3260
      %v3307 = vadd.f32 %v3076, %v3263
      %v3308 = vadd.f32 %v3077, %v3265
      %v3309 = vadd.f32 %v3078, %v3268
      %v3310 = vadd.f32 %v3079, %v3270
      %v3311 = vadd.f32 %v3080, %v3273
      %v3312 = vadd.f32 %v3081, %v3275
      %v3313 = vld [vmem:[%s4 + $0x18] sm:$0xf]
      %v3316 = vunpack.c.l.b16 %v1835
      %v3317 = vunpack.c.l.b16 %v1836
      %v3318 = vpack.c.b16 %v3316, %v2652
      %v3319 = vpack.c.b16 %v3317, %v3317
      %v3320 = vrot.slane %v3318, 2
      %v3321 = vsel %vm3083, %v3117, %v3320
      %v3322 = vrot.slane %v3319, 2
      %v3323 = vsel %vm3083, %v3320, %v3322
      %v3325 = vsel %vm1932, %v3321, 0
      %v3328 = vsel %vm1932, %v3323, 0
      %v3331 = vsel %vm1987, %v3313, 0
      %3333 = vmatpush.bf16.msra.mxu0 0
      %3334 = vmatpush.bf16.msra.mxu0 0
      %3335 = vmatpush.bf16.msra.mxu0 0
      %3336 = vmatpush.bf16.msra.mxu0 0
      %3337 = vmatpush.bf16.msra.mxu0 0
      %3338 = vmatpush.bf16.msra.mxu0 0
      %3339 = vmatpush.bf16.msra.mxu0 0
      %3340 = vmatpush.bf16.msra.mxu0 %v3331
      %3341 = vmatmul.bf16.gmra.mxu0 %v3125
      %v3342 = vpop.f32.mrf.mxu0
      %v3343 = vadd.f32 0.0, %v3342
      %v3344 = vpop.f32.mrf.mxu0
      %v3345 = vadd.f32 0.0, %v3344
      %3346 = vmatmul.bf16.gmra.mxu0 %v3128
      %v3347 = vpop.f32.mrf.mxu0
      %v3348 = vadd.f32 0.0, %v3347
      %v3349 = vpop.f32.mrf.mxu0
      %v3350 = vadd.f32 0.0, %v3349
      %3351 = vmatmul.bf16.gmra.mxu0 %v3131
      %v3352 = vpop.f32.mrf.mxu0
      %v3353 = vadd.f32 0.0, %v3352
      %v3354 = vpop.f32.mrf.mxu0
      %v3355 = vadd.f32 0.0, %v3354
      %3356 = vmatmul.bf16.gmra.mxu0 %v3134
      %v3357 = vpop.f32.mrf.mxu0
      %v3358 = vadd.f32 0.0, %v3357
      %v3359 = vpop.f32.mrf.mxu0
      %v3360 = vadd.f32 0.0, %v3359
      %3361 = vmatmul.bf16.gmra.mxu0 %v3137
      %v3362 = vpop.f32.mrf.mxu0
      %v3363 = vadd.f32 0.0, %v3362
      %v3364 = vpop.f32.mrf.mxu0
      %v3365 = vadd.f32 0.0, %v3364
      %3366 = vmatmul.bf16.gmra.mxu0 %v3140
      %v3367 = vpop.f32.mrf.mxu0
      %v3368 = vadd.f32 0.0, %v3367
      %v3369 = vpop.f32.mrf.mxu0
      %v3370 = vadd.f32 0.0, %v3369
      %3371 = vmatmul.bf16.gmra.mxu0 %v3143
      %v3372 = vpop.f32.mrf.mxu0
      %v3373 = vadd.f32 0.0, %v3372
      %v3374 = vpop.f32.mrf.mxu0
      %v3375 = vadd.f32 0.0, %v3374
      %3376 = vmatmul.bf16.gmra.mxu0 %v3146
      %v3377 = vpop.f32.mrf.mxu0
      %v3378 = vadd.f32 0.0, %v3377
      %v3379 = vpop.f32.mrf.mxu0
      %v3380 = vadd.f32 0.0, %v3379
      %3381 = vmatmul.bf16.gmra.mxu0 %v3149
      %v3382 = vpop.f32.mrf.mxu0
      %v3383 = vadd.f32 0.0, %v3382
      %v3384 = vpop.f32.mrf.mxu0
      %v3385 = vadd.f32 0.0, %v3384
      %3386 = vmatmul.bf16.gmra.mxu0 %v3152
      %v3387 = vpop.f32.mrf.mxu0
      %v3388 = vadd.f32 0.0, %v3387
      %v3389 = vpop.f32.mrf.mxu0
      %v3390 = vadd.f32 0.0, %v3389
      %3391 = vmatmul.bf16.gmra.mxu0 %v3155
      %v3392 = vpop.f32.mrf.mxu0
      %v3393 = vadd.f32 0.0, %v3392
      %v3394 = vpop.f32.mrf.mxu0
      %v3395 = vadd.f32 0.0, %v3394
      %3396 = vmatmul.bf16.gmra.mxu0 %v3158
      %v3397 = vpop.f32.mrf.mxu0
      %v3398 = vadd.f32 0.0, %v3397
      %v3399 = vpop.f32.mrf.mxu0
      %v3400 = vadd.f32 0.0, %v3399
      %3401 = vmatmul.bf16.gmra.mxu0 %v3161
      %v3402 = vpop.f32.mrf.mxu0
      %v3403 = vadd.f32 0.0, %v3402
      %v3404 = vpop.f32.mrf.mxu0
      %v3405 = vadd.f32 0.0, %v3404
      %3406 = vmatmul.bf16.gmra.mxu0 %v3164
      %v3407 = vpop.f32.mrf.mxu0
      %v3408 = vadd.f32 0.0, %v3407
      %v3409 = vpop.f32.mrf.mxu0
      %v3410 = vadd.f32 0.0, %v3409
      %3411 = vmatmul.bf16.gmra.mxu0 %v3167
      %v3412 = vpop.f32.mrf.mxu0
      %v3413 = vadd.f32 0.0, %v3412
      %v3414 = vpop.f32.mrf.mxu0
      %v3415 = vadd.f32 0.0, %v3414
      %3416 = vmatmul.bf16.gmra.mxu0 %v3170
      %v3417 = vpop.f32.mrf.mxu0
      %v3418 = vadd.f32 0.0, %v3417
      %v3419 = vpop.f32.mrf.mxu0
      %v3420 = vadd.f32 0.0, %v3419
      %3421 = vmatmul.bf16.gmra.mxu0 %v3325
      %v3422 = vpop.f32.mrf.mxu0
      %v3423 = vadd.f32 0.0, %v3422
      %v3424 = vpop.f32.mrf.mxu0
      %v3425 = vadd.f32 0.0, %v3424
      %3426 = vmatmul.bf16.gmra.mxu0 %v3328
      %v3427 = vpop.f32.mrf.mxu0
      %v3428 = vadd.f32 0.0, %v3427
      %v3429 = vpop.f32.mrf.mxu0
      %v3430 = vadd.f32 0.0, %v3429
      %3431 = vdwg.mxu0
      %v3432 = vadd.f32 %v3277, %v3343
      %v3433 = vadd.f32 %v3278, %v3345
      %v3434 = vadd.f32 %v3279, %v3348
      %v3435 = vadd.f32 %v3280, %v3350
      %v3436 = vadd.f32 %v3281, %v3353
      %v3437 = vadd.f32 %v3282, %v3355
      %v3438 = vadd.f32 %v3283, %v3358
      %v3439 = vadd.f32 %v3284, %v3360
      %v3440 = vadd.f32 %v3285, %v3363
      %v3441 = vadd.f32 %v3286, %v3365
      %v3442 = vadd.f32 %v3287, %v3368
      %v3443 = vadd.f32 %v3288, %v3370
      %v3444 = vadd.f32 %v3289, %v3373
      %v3445 = vadd.f32 %v3290, %v3375
      %v3446 = vadd.f32 %v3291, %v3378
      %v3447 = vadd.f32 %v3292, %v3380
      %v3448 = vadd.f32 %v3293, %v3383
      %v3449 = vadd.f32 %v3294, %v3385
      %v3450 = vadd.f32 %v3295, %v3388
      %v3451 = vadd.f32 %v3296, %v3390
      %v3452 = vadd.f32 %v3297, %v3393
      %v3453 = vadd.f32 %v3298, %v3395
      %v3454 = vadd.f32 %v3299, %v3398
      %v3455 = vadd.f32 %v3300, %v3400
      %v3456 = vadd.f32 %v3301, %v3403
      %v3457 = vadd.f32 %v3302, %v3405
      %v3458 = vadd.f32 %v3303, %v3408
      %v3459 = vadd.f32 %v3304, %v3410
      %v3460 = vadd.f32 %v3305, %v3413
      %v3461 = vadd.f32 %v3306, %v3415
      %v3462 = vadd.f32 %v3307, %v3418
      %v3463 = vadd.f32 %v3308, %v3420
      %v3464 = vadd.f32 %v3309, %v3423
      %v3465 = vadd.f32 %v3310, %v3425
      %v3466 = vadd.f32 %v3311, %v3428
      %v3467 = vadd.f32 %v3312, %v3430
      %v3468 = vld [vmem:[%s4 + $0x1c] sm:$0xf]
      %vm3469 = vsmask.f32 5376
      %v3470 = vrot.slane %v2112, 2
      %v3471 = vrot.slane %v2108, 3
      %v3472 = vor.u32 %v3470, %v3471
      %v3473 = vrot.slane %v2119, 2
      %v3474 = vrot.slane %v2115, 3
      %v3475 = vor.u32 %v3473, %v3474
      %v3476 = vsel %vm3469, %v3472, %v3475
      %v3477 = vrot.slane %v2126, 2
      %v3478 = vrot.slane %v2122, 3
      %v3479 = vor.u32 %v3477, %v3478
      %v3480 = vsel %vm3469, %v3475, %v3479
      %v3481 = vrot.slane %v2133, 2
      %v3482 = vrot.slane %v2129, 3
      %v3483 = vor.u32 %v3481, %v3482
      %v3484 = vsel %vm3469, %v3479, %v3483
      %v3485 = vrot.slane %v2140, 2
      %v3486 = vrot.slane %v2136, 3
      %v3487 = vor.u32 %v3485, %v3486
      %v3488 = vsel %vm3469, %v3483, %v3487
      %v3489 = vrot.slane %v2147, 2
      %v3490 = vrot.slane %v2143, 3
      %v3491 = vor.u32 %v3489, %v3490
      %v3492 = vsel %vm3469, %v3487, %v3491
      %v3493 = vrot.slane %v2154, 2
      %v3494 = vrot.slane %v2150, 3
      %v3495 = vor.u32 %v3493, %v3494
      %v3496 = vsel %vm3469, %v3491, %v3495
      %v3497 = vrot.slane %v2161, 2
      %v3498 = vrot.slane %v2157, 3
      %v3499 = vor.u32 %v3497, %v3498
      %v3500 = vsel %vm3469, %v3495, %v3499
      %v3501 = vrot.slane %v2168, 2
      %v3502 = vrot.slane %v2164, 3
      %v3503 = vor.u32 %v3501, %v3502
      %v3504 = vsel %vm3469, %v3499, %v3503
      %v3505 = vrot.slane %v2175, 2
      %v3506 = vrot.slane %v2171, 3
      %v3507 = vor.u32 %v3505, %v3506
      %v3508 = vsel %vm3469, %v3503, %v3507
      %v3509 = vrot.slane %v2182, 2
      %v3510 = vrot.slane %v2178, 3
      %v3511 = vor.u32 %v3509, %v3510
      %v3512 = vsel %vm3469, %v3507, %v3511
      %v3513 = vrot.slane %v2189, 2
      %v3514 = vrot.slane %v2185, 3
      %v3515 = vor.u32 %v3513, %v3514
      %v3516 = vsel %vm3469, %v3511, %v3515
      %v3517 = vrot.slane %v2196, 2
      %v3518 = vrot.slane %v2192, 3
      %v3519 = vor.u32 %v3517, %v3518
      %v3520 = vsel %vm3469, %v3515, %v3519
      %v3521 = vrot.slane %v2203, 2
      %v3522 = vrot.slane %v2199, 3
      %v3523 = vor.u32 %v3521, %v3522
      %v3524 = vsel %vm3469, %v3519, %v3523
      %v3525 = vrot.slane %v2210, 2
      %v3526 = vrot.slane %v2206, 3
      %v3527 = vor.u32 %v3525, %v3526
      %v3528 = vsel %vm3469, %v3523, %v3527
      %v3529 = vrot.slane %v2217, 2
      %v3530 = vrot.slane %v2213, 3
      %v3531 = vor.u32 %v3529, %v3530
      %v3532 = vsel %vm3469, %v3527, %v3531
      %v3533 = vrot.slane %v2873, 2
      %v3534 = vrot.slane %v2876, 3
      %v3535 = vor.u32 %v3533, %v3534
      %v3536 = vsel %vm3469, %v3531, %v3535
      %v3538 = vshrl.u32 %v3318, 16
      %v3540 = vrot.slane %v3538, 2
      %v3541 = vshll.u32 %v3318, 16
      %v3543 = vrot.slane %v3541, 3
      %v3544 = vor.u32 %v3540, %v3543
      %v3545 = vsel %vm3469, %v3535, %v3544
      %v3547 = vshrl.u32 %v3319, 16
      %v3549 = vrot.slane %v3547, 2
      %v3550 = vshll.u32 %v3319, 16
      %v3552 = vrot.slane %v3550, 3
      %v3553 = vor.u32 %v3549, %v3552
      %v3554 = vsel %vm3469, %v3544, %v3553
      %v3556 = vsel %vm1932, %v3476, 0
      %v3559 = vsel %vm1932, %v3480, 0
      %v3562 = vsel %vm1932, %v3484, 0
      %v3565 = vsel %vm1932, %v3488, 0
      %v3568 = vsel %vm1932, %v3492, 0
      %v3571 = vsel %vm1932, %v3496, 0
      %v3574 = vsel %vm1932, %v3500, 0
      %v3577 = vsel %vm1932, %v3504, 0
      %v3580 = vsel %vm1932, %v3508, 0
      %v3583 = vsel %vm1932, %v3512, 0
      %v3586 = vsel %vm1932, %v3516, 0
      %v3589 = vsel %vm1932, %v3520, 0
      %v3592 = vsel %vm1932, %v3524, 0
      %v3595 = vsel %vm1932, %v3528, 0
      %v3598 = vsel %vm1932, %v3532, 0
      %v3601 = vsel %vm1932, %v3536, 0
      %v3604 = vsel %vm1932, %v3545, 0
      %v3607 = vsel %vm1932, %v3554, 0
      %v3610 = vsel %vm1987, %v3468, 0
      %3612 = vmatpush.bf16.msra.mxu0 0
      %3613 = vmatpush.bf16.msra.mxu0 0
      %3614 = vmatpush.bf16.msra.mxu0 0
      %3615 = vmatpush.bf16.msra.mxu0 0
      %3616 = vmatpush.bf16.msra.mxu0 0
      %3617 = vmatpush.bf16.msra.mxu0 0
      %3618 = vmatpush.bf16.msra.mxu0 0
      %3619 = vmatpush.bf16.msra.mxu0 %v3610
      %3620 = vmatmul.bf16.gmra.mxu0 %v3556
      %v3621 = vpop.f32.mrf.mxu0
      %v3622 = vadd.f32 0.0, %v3621
      %v3623 = vpop.f32.mrf.mxu0
      %v3624 = vadd.f32 0.0, %v3623
      %3625 = vmatmul.bf16.gmra.mxu0 %v3559
      %v3626 = vpop.f32.mrf.mxu0
      %v3627 = vadd.f32 0.0, %v3626
      %v3628 = vpop.f32.mrf.mxu0
      %v3629 = vadd.f32 0.0, %v3628
      %3630 = vmatmul.bf16.gmra.mxu0 %v3562
      %v3631 = vpop.f32.mrf.mxu0
      %v3632 = vadd.f32 0.0, %v3631
      %v3633 = vpop.f32.mrf.mxu0
      %v3634 = vadd.f32 0.0, %v3633
      %3635 = vmatmul.bf16.gmra.mxu0 %v3565
      %v3636 = vpop.f32.mrf.mxu0
      %v3637 = vadd.f32 0.0, %v3636
      %v3638 = vpop.f32.mrf.mxu0
      %v3639 = vadd.f32 0.0, %v3638
      %3640 = vmatmul.bf16.gmra.mxu0 %v3568
      %v3641 = vpop.f32.mrf.mxu0
      %v3642 = vadd.f32 0.0, %v3641
      %v3643 = vpop.f32.mrf.mxu0
      %v3644 = vadd.f32 0.0, %v3643
      %3645 = vmatmul.bf16.gmra.mxu0 %v3571
      %v3646 = vpop.f32.mrf.mxu0
      %v3647 = vadd.f32 0.0, %v3646
      %v3648 = vpop.f32.mrf.mxu0
      %v3649 = vadd.f32 0.0, %v3648
      %3650 = vmatmul.bf16.gmra.mxu0 %v3574
      %v3651 = vpop.f32.mrf.mxu0
      %v3652 = vadd.f32 0.0, %v3651
      %v3653 = vpop.f32.mrf.mxu0
      %v3654 = vadd.f32 0.0, %v3653
      %3655 = vmatmul.bf16.gmra.mxu0 %v3577
      %v3656 = vpop.f32.mrf.mxu0
      %v3657 = vadd.f32 0.0, %v3656
      %v3658 = vpop.f32.mrf.mxu0
      %v3659 = vadd.f32 0.0, %v3658
      %3660 = vmatmul.bf16.gmra.mxu0 %v3580
      %v3661 = vpop.f32.mrf.mxu0
      %v3662 = vadd.f32 0.0, %v3661
      %v3663 = vpop.f32.mrf.mxu0
      %v3664 = vadd.f32 0.0, %v3663
      %3665 = vmatmul.bf16.gmra.mxu0 %v3583
      %v3666 = vpop.f32.mrf.mxu0
      %v3667 = vadd.f32 0.0, %v3666
      %v3668 = vpop.f32.mrf.mxu0
      %v3669 = vadd.f32 0.0, %v3668
      %3670 = vmatmul.bf16.gmra.mxu0 %v3586
      %v3671 = vpop.f32.mrf.mxu0
      %v3672 = vadd.f32 0.0, %v3671
      %v3673 = vpop.f32.mrf.mxu0
      %v3674 = vadd.f32 0.0, %v3673
      %3675 = vmatmul.bf16.gmra.mxu0 %v3589
      %v3676 = vpop.f32.mrf.mxu0
      %v3677 = vadd.f32 0.0, %v3676
      %v3678 = vpop.f32.mrf.mxu0
      %v3679 = vadd.f32 0.0, %v3678
      %3680 = vmatmul.bf16.gmra.mxu0 %v3592
      %v3681 = vpop.f32.mrf.mxu0
      %v3682 = vadd.f32 0.0, %v3681
      %v3683 = vpop.f32.mrf.mxu0
      %v3684 = vadd.f32 0.0, %v3683
      %3685 = vmatmul.bf16.gmra.mxu0 %v3595
      %v3686 = vpop.f32.mrf.mxu0
      %v3687 = vadd.f32 0.0, %v3686
      %v3688 = vpop.f32.mrf.mxu0
      %v3689 = vadd.f32 0.0, %v3688
      %3690 = vmatmul.bf16.gmra.mxu0 %v3598
      %v3691 = vpop.f32.mrf.mxu0
      %v3692 = vadd.f32 0.0, %v3691
      %v3693 = vpop.f32.mrf.mxu0
      %v3694 = vadd.f32 0.0, %v3693
      %3695 = vmatmul.bf16.gmra.mxu0 %v3601
      %v3696 = vpop.f32.mrf.mxu0
      %v3697 = vadd.f32 0.0, %v3696
      %v3698 = vpop.f32.mrf.mxu0
      %v3699 = vadd.f32 0.0, %v3698
      %3700 = vmatmul.bf16.gmra.mxu0 %v3604
      %v3701 = vpop.f32.mrf.mxu0
      %v3702 = vadd.f32 0.0, %v3701
      %v3703 = vpop.f32.mrf.mxu0
      %v3704 = vadd.f32 0.0, %v3703
      %3705 = vmatmul.bf16.gmra.mxu0 %v3607
      %v3706 = vpop.f32.mrf.mxu0
      %v3707 = vadd.f32 0.0, %v3706
      %v3708 = vpop.f32.mrf.mxu0
      %v3709 = vadd.f32 0.0, %v3708
      %3710 = vdwg.mxu0
      %v3711 = vadd.f32 %v3432, %v3622
      %v3712 = vadd.f32 %v3433, %v3624
      %v3713 = vadd.f32 %v3434, %v3627
      %v3714 = vadd.f32 %v3435, %v3629
      %v3715 = vadd.f32 %v3436, %v3632
      %v3716 = vadd.f32 %v3437, %v3634
      %v3717 = vadd.f32 %v3438, %v3637
      %v3718 = vadd.f32 %v3439, %v3639
      %v3719 = vadd.f32 %v3440, %v3642
      %v3720 = vadd.f32 %v3441, %v3644
      %v3721 = vadd.f32 %v3442, %v3647
      %v3722 = vadd.f32 %v3443, %v3649
      %v3723 = vadd.f32 %v3444, %v3652
      %v3724 = vadd.f32 %v3445, %v3654
      %v3725 = vadd.f32 %v3446, %v3657
      %v3726 = vadd.f32 %v3447, %v3659
      %v3727 = vadd.f32 %v3448, %v3662
      %v3728 = vadd.f32 %v3449, %v3664
      %v3729 = vadd.f32 %v3450, %v3667
      %v3730 = vadd.f32 %v3451, %v3669
      %v3731 = vadd.f32 %v3452, %v3672
      %v3732 = vadd.f32 %v3453, %v3674
      %v3733 = vadd.f32 %v3454, %v3677
      %v3734 = vadd.f32 %v3455, %v3679
      %v3735 = vadd.f32 %v3456, %v3682
      %v3736 = vadd.f32 %v3457, %v3684
      %v3737 = vadd.f32 %v3458, %v3687
      %v3738 = vadd.f32 %v3459, %v3689
      %v3739 = vadd.f32 %v3460, %v3692
      %v3740 = vadd.f32 %v3461, %v3694
      %v3741 = vadd.f32 %v3462, %v3697
      %v3742 = vadd.f32 %v3463, %v3699
      %v3743 = vadd.f32 %v3464, %v3702
      %v3744 = vadd.f32 %v3465, %v3704
      %v3745 = vadd.f32 %v3466, %v3707
      %v3746 = vadd.f32 %v3467, %v3709
      %v3747 = vld [vmem:[%s4 + $0x20] sm:$0xf]
      %vm3748 = vcmask 1044480
      %v3749 = vrot.slane %v1916, 3
      %v3750 = vrot.slane %v1917, 3
      %v3751 = vsel %vm3748, %v3749, %v3750
      %v3752 = vrot.slane %v1918, 3
      %v3753 = vsel %vm3748, %v3750, %v3752
      %v3754 = vrot.slane %v1919, 3
      %v3755 = vsel %vm3748, %v3752, %v3754
      %v3756 = vrot.slane %v1920, 3
      %v3757 = vsel %vm3748, %v3754, %v3756
      %v3758 = vrot.slane %v1921, 3
      %v3759 = vsel %vm3748, %v3756, %v3758
      %v3760 = vrot.slane %v1922, 3
      %v3761 = vsel %vm3748, %v3758, %v3760
      %v3762 = vrot.slane %v1923, 3
      %v3763 = vsel %vm3748, %v3760, %v3762
      %v3764 = vrot.slane %v1924, 3
      %v3765 = vsel %vm3748, %v3762, %v3764
      %v3766 = vrot.slane %v1925, 3
      %v3767 = vsel %vm3748, %v3764, %v3766
      %v3768 = vrot.slane %v1926, 3
      %v3769 = vsel %vm3748, %v3766, %v3768
      %v3770 = vrot.slane %v1927, 3
      %v3771 = vsel %vm3748, %v3768, %v3770
      %v3772 = vrot.slane %v1928, 3
      %v3773 = vsel %vm3748, %v3770, %v3772
      %v3774 = vrot.slane %v1929, 3
      %v3775 = vsel %vm3748, %v3772, %v3774
      %v3776 = vrot.slane %v1930, 3
      %v3777 = vsel %vm3748, %v3774, %v3776
      %v3778 = vrot.slane %v1931, 3
      %v3779 = vsel %vm3748, %v3776, %v3778
      %v3780 = vrot.slane %v2653, 3
      %v3781 = vsel %vm3748, %v3778, %v3780
      %v3782 = vrot.slane %v3318, 3
      %v3783 = vsel %vm3748, %v3780, %v3782
      %v3784 = vrot.slane %v3319, 3
      %v3785 = vsel %vm3748, %v3782, %v3784
      %v3787 = vsel %vm1932, %v3751, 0
      %v3790 = vsel %vm1932, %v3753, 0
      %v3793 = vsel %vm1932, %v3755, 0
      %v3796 = vsel %vm1932, %v3757, 0
      %v3799 = vsel %vm1932, %v3759, 0
      %v3802 = vsel %vm1932, %v3761, 0
      %v3805 = vsel %vm1932, %v3763, 0
      %v3808 = vsel %vm1932, %v3765, 0
      %v3811 = vsel %vm1932, %v3767, 0
      %v3814 = vsel %vm1932, %v3769, 0
      %v3817 = vsel %vm1932, %v3771, 0
      %v3820 = vsel %vm1932, %v3773, 0
      %v3823 = vsel %vm1932, %v3775, 0
      %v3826 = vsel %vm1932, %v3777, 0
      %v3829 = vsel %vm1932, %v3779, 0
      %v3832 = vsel %vm1932, %v3781, 0
      %v3835 = vsel %vm1932, %v3783, 0
      %v3838 = vsel %vm1932, %v3785, 0
      %v3841 = vsel %vm1987, %v3747, 0
      %3843 = vmatpush.bf16.msra.mxu0 0
      %3844 = vmatpush.bf16.msra.mxu0 0
      %3845 = vmatpush.bf16.msra.mxu0 0
      %3846 = vmatpush.bf16.msra.mxu0 0
      %3847 = vmatpush.bf16.msra.mxu0 0
      %3848 = vmatpush.bf16.msra.mxu0 0
      %3849 = vmatpush.bf16.msra.mxu0 0
      %3850 = vmatpush.bf16.msra.mxu0 %v3841
      %3851 = vmatmul.bf16.gmra.mxu0 %v3787
      %v3852 = vpop.f32.mrf.mxu0
      %v3853 = vadd.f32 0.0, %v3852
      %v3854 = vpop.f32.mrf.mxu0
      %v3855 = vadd.f32 0.0, %v3854
      %3856 = vmatmul.bf16.gmra.mxu0 %v3790
      %v3857 = vpop.f32.mrf.mxu0
      %v3858 = vadd.f32 0.0, %v3857
      %v3859 = vpop.f32.mrf.mxu0
      %v3860 = vadd.f32 0.0, %v3859
      %3861 = vmatmul.bf16.gmra.mxu0 %v3793
      %v3862 = vpop.f32.mrf.mxu0
      %v3863 = vadd.f32 0.0, %v3862
      %v3864 = vpop.f32.mrf.mxu0
      %v3865 = vadd.f32 0.0, %v3864
      %3866 = vmatmul.bf16.gmra.mxu0 %v3796
      %v3867 = vpop.f32.mrf.mxu0
      %v3868 = vadd.f32 0.0, %v3867
      %v3869 = vpop.f32.mrf.mxu0
      %v3870 = vadd.f32 0.0, %v3869
      %3871 = vmatmul.bf16.gmra.mxu0 %v3799
      %v3872 = vpop.f32.mrf.mxu0
      %v3873 = vadd.f32 0.0, %v3872
      %v3874 = vpop.f32.mrf.mxu0
      %v3875 = vadd.f32 0.0, %v3874
      %3876 = vmatmul.bf16.gmra.mxu0 %v3802
      %v3877 = vpop.f32.mrf.mxu0
      %v3878 = vadd.f32 0.0, %v3877
      %v3879 = vpop.f32.mrf.mxu0
      %v3880 = vadd.f32 0.0, %v3879
      %3881 = vmatmul.bf16.gmra.mxu0 %v3805
      %v3882 = vpop.f32.mrf.mxu0
      %v3883 = vadd.f32 0.0, %v3882
      %v3884 = vpop.f32.mrf.mxu0
      %v3885 = vadd.f32 0.0, %v3884
      %3886 = vmatmul.bf16.gmra.mxu0 %v3808
      %v3887 = vpop.f32.mrf.mxu0
      %v3888 = vadd.f32 0.0, %v3887
      %v3889 = vpop.f32.mrf.mxu0
      %v3890 = vadd.f32 0.0, %v3889
      %3891 = vmatmul.bf16.gmra.mxu0 %v3811
      %v3892 = vpop.f32.mrf.mxu0
      %v3893 = vadd.f32 0.0, %v3892
      %v3894 = vpop.f32.mrf.mxu0
      %v3895 = vadd.f32 0.0, %v3894
      %3896 = vmatmul.bf16.gmra.mxu0 %v3814
      %v3897 = vpop.f32.mrf.mxu0
      %v3898 = vadd.f32 0.0, %v3897
      %v3899 = vpop.f32.mrf.mxu0
      %v3900 = vadd.f32 0.0, %v3899
      %3901 = vmatmul.bf16.gmra.mxu0 %v3817
      %v3902 = vpop.f32.mrf.mxu0
      %v3903 = vadd.f32 0.0, %v3902
      %v3904 = vpop.f32.mrf.mxu0
      %v3905 = vadd.f32 0.0, %v3904
      %3906 = vmatmul.bf16.gmra.mxu0 %v3820
      %v3907 = vpop.f32.mrf.mxu0
      %v3908 = vadd.f32 0.0, %v3907
      %v3909 = vpop.f32.mrf.mxu0
      %v3910 = vadd.f32 0.0, %v3909
      %3911 = vmatmul.bf16.gmra.mxu0 %v3823
      %v3912 = vpop.f32.mrf.mxu0
      %v3913 = vadd.f32 0.0, %v3912
      %v3914 = vpop.f32.mrf.mxu0
      %v3915 = vadd.f32 0.0, %v3914
      %3916 = vmatmul.bf16.gmra.mxu0 %v3826
      %v3917 = vpop.f32.mrf.mxu0
      %v3918 = vadd.f32 0.0, %v3917
      %v3919 = vpop.f32.mrf.mxu0
      %v3920 = vadd.f32 0.0, %v3919
      %3921 = vmatmul.bf16.gmra.mxu0 %v3829
      %v3922 = vpop.f32.mrf.mxu0
      %v3923 = vadd.f32 0.0, %v3922
      %v3924 = vpop.f32.mrf.mxu0
      %v3925 = vadd.f32 0.0, %v3924
      %3926 = vmatmul.bf16.gmra.mxu0 %v3832
      %v3927 = vpop.f32.mrf.mxu0
      %v3928 = vadd.f32 0.0, %v3927
      %v3929 = vpop.f32.mrf.mxu0
      %v3930 = vadd.f32 0.0, %v3929
      %3931 = vmatmul.bf16.gmra.mxu0 %v3835
      %v3932 = vpop.f32.mrf.mxu0
      %v3933 = vadd.f32 0.0, %v3932
      %v3934 = vpop.f32.mrf.mxu0
      %v3935 = vadd.f32 0.0, %v3934
      %3936 = vmatmul.bf16.gmra.mxu0 %v3838
      %v3937 = vpop.f32.mrf.mxu0
      %v3938 = vadd.f32 0.0, %v3937
      %v3939 = vpop.f32.mrf.mxu0
      %v3940 = vadd.f32 0.0, %v3939
      %3941 = vdwg.mxu0
      %v3942 = vadd.f32 %v3711, %v3853
      %v3943 = vadd.f32 %v3712, %v3855
      %v3944 = vadd.f32 %v3713, %v3858
      %v3945 = vadd.f32 %v3714, %v3860
      %v3946 = vadd.f32 %v3715, %v3863
      %v3947 = vadd.f32 %v3716, %v3865
      %v3948 = vadd.f32 %v3717, %v3868
      %v3949 = vadd.f32 %v3718, %v3870
      %v3950 = vadd.f32 %v3719, %v3873
      %v3951 = vadd.f32 %v3720, %v3875
      %v3952 = vadd.f32 %v3721, %v3878
      %v3953 = vadd.f32 %v3722, %v3880
      %v3954 = vadd.f32 %v3723, %v3883
      %v3955 = vadd.f32 %v3724, %v3885
      %v3956 = vadd.f32 %v3725, %v3888
      %v3957 = vadd.f32 %v3726, %v3890
      %v3958 = vadd.f32 %v3727, %v3893
      %v3959 = vadd.f32 %v3728, %v3895
      %v3960 = vadd.f32 %v3729, %v3898
      %v3961 = vadd.f32 %v3730, %v3900
      %v3962 = vadd.f32 %v3731, %v3903
      %v3963 = vadd.f32 %v3732, %v3905
      %v3964 = vadd.f32 %v3733, %v3908
      %v3965 = vadd.f32 %v3734, %v3910
      %v3966 = vadd.f32 %v3735, %v3913
      %v3967 = vadd.f32 %v3736, %v3915
      %v3968 = vadd.f32 %v3737, %v3918
      %v3969 = vadd.f32 %v3738, %v3920
      %v3970 = vadd.f32 %v3739, %v3923
      %v3971 = vadd.f32 %v3740, %v3925
      %v3972 = vadd.f32 %v3741, %v3928
      %v3973 = vadd.f32 %v3742, %v3930
      %v3974 = vadd.f32 %v3743, %v3933
      %v3975 = vadd.f32 %v3744, %v3935
      %v3976 = vadd.f32 %v3745, %v3938
      %v3977 = vadd.f32 %v3746, %v3940
      %v3978 = vxor.u32 %v3942, 2147483648
      %v3979 = vxor.u32 %v3943, 2147483648
      %v3980 = vxor.u32 %v3944, 2147483648
      %v3981 = vxor.u32 %v3945, 2147483648
      %v3982 = vxor.u32 %v3946, 2147483648
      %v3983 = vxor.u32 %v3947, 2147483648
      %v3984 = vxor.u32 %v3948, 2147483648
      %v3985 = vxor.u32 %v3949, 2147483648
      %v3986 = vxor.u32 %v3950, 2147483648
      %v3987 = vxor.u32 %v3951, 2147483648
      %v3988 = vxor.u32 %v3952, 2147483648
      %v3989 = vxor.u32 %v3953, 2147483648
      %v3990 = vxor.u32 %v3954, 2147483648
      %v3991 = vxor.u32 %v3955, 2147483648
      %v3992 = vxor.u32 %v3956, 2147483648
      %v3993 = vxor.u32 %v3957, 2147483648
      %v3994 = vxor.u32 %v3958, 2147483648
      %v3995 = vxor.u32 %v3959, 2147483648
      %v3996 = vxor.u32 %v3960, 2147483648
      %v3997 = vxor.u32 %v3961, 2147483648
      %v3998 = vxor.u32 %v3962, 2147483648
      %v3999 = vxor.u32 %v3963, 2147483648
      %v4000 = vxor.u32 %v3964, 2147483648
      %v4001 = vxor.u32 %v3965, 2147483648
      %v4002 = vxor.u32 %v3966, 2147483648
      %v4003 = vxor.u32 %v3967, 2147483648
      %v4004 = vxor.u32 %v3968, 2147483648
      %v4005 = vxor.u32 %v3969, 2147483648
      %v4006 = vxor.u32 %v3970, 2147483648
      %v4007 = vxor.u32 %v3971, 2147483648
      %v4008 = vxor.u32 %v3972, 2147483648
      %v4009 = vxor.u32 %v3973, 2147483648
      %v4010 = vxor.u32 %v3974, 2147483648
      %v4011 = vxor.u32 %v3975, 2147483648
      %v4012 = vxor.u32 %v3976, 2147483648
      %v4013 = vxor.u32 %v3977, 2147483648
      %v4014 = vmul.f32 %v3978, 1.442695
      %v4015 = vpow.pop %v4014
      %v4016 = vmul.f32 %v3979, 1.442695
      %v4017 = vpow.pop %v4016
      %v4018 = vmul.f32 %v3980, 1.442695
      %v4019 = vpow.pop %v4018
      %v4020 = vmul.f32 %v3981, 1.442695
      %v4021 = vpow.pop %v4020
      %v4022 = vmul.f32 %v3982, 1.442695
      %v4023 = vpow.pop %v4022
      %v4024 = vmul.f32 %v3983, 1.442695
      %v4025 = vpow.pop %v4024
      %v4026 = vmul.f32 %v3984, 1.442695
      %v4027 = vpow.pop %v4026
      %v4028 = vmul.f32 %v3985, 1.442695
      %v4029 = vpow.pop %v4028
      %v4030 = vmul.f32 %v3986, 1.442695
      %v4031 = vpow.pop %v4030
      %v4032 = vmul.f32 %v3987, 1.442695
      %v4033 = vpow.pop %v4032
      %v4034 = vmul.f32 %v3988, 1.442695
      %v4035 = vpow.pop %v4034
      %v4036 = vmul.f32 %v3989, 1.442695
      %v4037 = vpow.pop %v4036
      %v4038 = vmul.f32 %v3990, 1.442695
      %v4039 = vpow.pop %v4038
      %v4040 = vmul.f32 %v3991, 1.442695
      %v4041 = vpow.pop %v4040
      %v4042 = vmul.f32 %v3992, 1.442695
      %v4043 = vpow.pop %v4042
      %v4044 = vmul.f32 %v3993, 1.442695
      %v4045 = vpow.pop %v4044
      %v4046 = vmul.f32 %v3994, 1.442695
      %v4047 = vpow.pop %v4046
      %v4048 = vmul.f32 %v3995, 1.442695
      %v4049 = vpow.pop %v4048
      %v4050 = vmul.f32 %v3996, 1.442695
      %v4051 = vpow.pop %v4050
      %v4052 = vmul.f32 %v3997, 1.442695
      %v4053 = vpow.pop %v4052
      %v4054 = vmul.f32 %v3998, 1.442695
      %v4055 = vpow.pop %v4054
      %v4056 = vmul.f32 %v3999, 1.442695
      %v4057 = vpow.pop %v4056
      %v4058 = vmul.f32 %v4000, 1.442695
      %v4059 = vpow.pop %v4058
      %v4060 = vmul.f32 %v4001, 1.442695
      %v4061 = vpow.pop %v4060
      %v4062 = vmul.f32 %v4002, 1.442695
      %v4063 = vpow.pop %v4062
      %v4064 = vmul.f32 %v4003, 1.442695
      %v4065 = vpow.pop %v4064
      %v4066 = vmul.f32 %v4004, 1.442695
      %v4067 = vpow.pop %v4066
      %v4068 = vmul.f32 %v4005, 1.442695
      %v4069 = vpow.pop %v4068
      %v4070 = vmul.f32 %v4006, 1.442695
      %v4071 = vpow.pop %v4070
      %v4072 = vmul.f32 %v4007, 1.442695
      %v4073 = vpow.pop %v4072
      %v4074 = vmul.f32 %v4008, 1.442695
      %v4075 = vpow.pop %v4074
      %v4076 = vmul.f32 %v4009, 1.442695
      %v4077 = vpow.pop %v4076
      %v4078 = vmul.f32 %v4010, 1.442695
      %v4079 = vpow.pop %v4078
      %v4080 = vmul.f32 %v4011, 1.442695
      %v4081 = vpow.pop %v4080
      %v4082 = vmul.f32 %v4012, 1.442695
      %v4083 = vpow.pop %v4082
      %v4084 = vmul.f32 %v4013, 1.442695
      %v4085 = vpow.pop %v4084
      %v4086 = vadd.f32 %v4015, 1.0
      %v4087 = vadd.f32 %v4017, 1.0
      %v4088 = vadd.f32 %v4019, 1.0
      %v4089 = vadd.f32 %v4021, 1.0
      %v4090 = vadd.f32 %v4023, 1.0
      %v4091 = vadd.f32 %v4025, 1.0
      %v4092 = vadd.f32 %v4027, 1.0
      %v4093 = vadd.f32 %v4029, 1.0
      %v4094 = vadd.f32 %v4031, 1.0
      %v4095 = vadd.f32 %v4033, 1.0
      %v4096 = vadd.f32 %v4035, 1.0
      %v4097 = vadd.f32 %v4037, 1.0
      %v4098 = vadd.f32 %v4039, 1.0
      %v4099 = vadd.f32 %v4041, 1.0
      %v4100 = vadd.f32 %v4043, 1.0
      %v4101 = vadd.f32 %v4045, 1.0
      %v4102 = vadd.f32 %v4047, 1.0
      %v4103 = vadd.f32 %v4049, 1.0
      %v4104 = vadd.f32 %v4051, 1.0
      %v4105 = vadd.f32 %v4053, 1.0
      %v4106 = vadd.f32 %v4055, 1.0
      %v4107 = vadd.f32 %v4057, 1.0
      %v4108 = vadd.f32 %v4059, 1.0
      %v4109 = vadd.f32 %v4061, 1.0
      %v4110 = vadd.f32 %v4063, 1.0
      %v4111 = vadd.f32 %v4065, 1.0
      %v4112 = vadd.f32 %v4067, 1.0
      %v4113 = vadd.f32 %v4069, 1.0
      %v4114 = vadd.f32 %v4071, 1.0
      %v4115 = vadd.f32 %v4073, 1.0
      %v4116 = vadd.f32 %v4075, 1.0
      %v4117 = vadd.f32 %v4077, 1.0
      %v4118 = vadd.f32 %v4079, 1.0
      %v4119 = vadd.f32 %v4081, 1.0
      %v4120 = vadd.f32 %v4083, 1.0
      %v4121 = vadd.f32 %v4085, 1.0
      %v4122 = vrcp.pop %v4086
      %v4123 = vmul.f32 %v4086, %v4122
      %v4124 = vsub.f32 1.0, %v4123
      %v4125 = vmul.f32 %v4122, %v4124
      %v4126 = vadd.f32 %v4122, %v4125
      %vm4127 = vweird.f32 %v4086
      %vm4128 = vweird.f32 %v4122
      %vm4129 = vmor %vm4127, %vm4128
      %v4130 = vsel %vm4129, %v4122, %v4126
      %v4131 = vand.u32 2147483647, %v4086
      %vm4132 = vcmp.eq.f32.partialorder %v4131, 8.507059e+37
      %v4133 = vand.u32 %v4086, 2147483648
      %v4134 = vor.u32 1.1754944e-38, %v4133
      %v4135 = vsel %vm4132, %v4134, %v4130
      %v4136 = vmul.f32 1.0, %v4135
      %v4137 = vrcp.pop %v4087
      %v4138 = vmul.f32 %v4087, %v4137
      %v4139 = vsub.f32 1.0, %v4138
      %v4140 = vmul.f32 %v4137, %v4139
      %v4141 = vadd.f32 %v4137, %v4140
      %vm4142 = vweird.f32 %v4087
      %vm4143 = vweird.f32 %v4137
      %vm4144 = vmor %vm4142, %vm4143
      %v4145 = vsel %vm4144, %v4137, %v4141
      %v4146 = vand.u32 2147483647, %v4087
      %vm4147 = vcmp.eq.f32.partialorder %v4146, 8.507059e+37
      %v4148 = vand.u32 %v4087, 2147483648
      %v4149 = vor.u32 1.1754944e-38, %v4148
      %v4150 = vsel %vm4147, %v4149, %v4145
      %v4151 = vmul.f32 1.0, %v4150
      %v4152 = vrcp.pop %v4088
      %v4153 = vmul.f32 %v4088, %v4152
      %v4154 = vsub.f32 1.0, %v4153
      %v4155 = vmul.f32 %v4152, %v4154
      %v4156 = vadd.f32 %v4152, %v4155
      %vm4157 = vweird.f32 %v4088
      %vm4158 = vweird.f32 %v4152
      %vm4159 = vmor %vm4157, %vm4158
      %v4160 = vsel %vm4159, %v4152, %v4156
      %v4161 = vand.u32 2147483647, %v4088
      %vm4162 = vcmp.eq.f32.partialorder %v4161, 8.507059e+37
      %v4163 = vand.u32 %v4088, 2147483648
      %v4164 = vor.u32 1.1754944e-38, %v4163
      %v4165 = vsel %vm4162, %v4164, %v4160
      %v4166 = vmul.f32 1.0, %v4165
      %v4167 = vrcp.pop %v4089
      %v4168 = vmul.f32 %v4089, %v4167
      %v4169 = vsub.f32 1.0, %v4168
      %v4170 = vmul.f32 %v4167, %v4169
      %v4171 = vadd.f32 %v4167, %v4170
      %vm4172 = vweird.f32 %v4089
      %vm4173 = vweird.f32 %v4167
      %vm4174 = vmor %vm4172, %vm4173
      %v4175 = vsel %vm4174, %v4167, %v4171
      %v4176 = vand.u32 2147483647, %v4089
      %vm4177 = vcmp.eq.f32.partialorder %v4176, 8.507059e+37
      %v4178 = vand.u32 %v4089, 2147483648
      %v4179 = vor.u32 1.1754944e-38, %v4178
      %v4180 = vsel %vm4177, %v4179, %v4175
      %v4181 = vmul.f32 1.0, %v4180
      %v4182 = vrcp.pop %v4090
      %v4183 = vmul.f32 %v4090, %v4182
      %v4184 = vsub.f32 1.0, %v4183
      %v4185 = vmul.f32 %v4182, %v4184
      %v4186 = vadd.f32 %v4182, %v4185
      %vm4187 = vweird.f32 %v4090
      %vm4188 = vweird.f32 %v4182
      %vm4189 = vmor %vm4187, %vm4188
      %v4190 = vsel %vm4189, %v4182, %v4186
      %v4191 = vand.u32 2147483647, %v4090
      %vm4192 = vcmp.eq.f32.partialorder %v4191, 8.507059e+37
      %v4193 = vand.u32 %v4090, 2147483648
      %v4194 = vor.u32 1.1754944e-38, %v4193
      %v4195 = vsel %vm4192, %v4194, %v4190
      %v4196 = vmul.f32 1.0, %v4195
      %v4197 = vrcp.pop %v4091
      %v4198 = vmul.f32 %v4091, %v4197
      %v4199 = vsub.f32 1.0, %v4198
      %v4200 = vmul.f32 %v4197, %v4199
      %v4201 = vadd.f32 %v4197, %v4200
      %vm4202 = vweird.f32 %v4091
      %vm4203 = vweird.f32 %v4197
      %vm4204 = vmor %vm4202, %vm4203
      %v4205 = vsel %vm4204, %v4197, %v4201
      %v4206 = vand.u32 2147483647, %v4091
      %vm4207 = vcmp.eq.f32.partialorder %v4206, 8.507059e+37
      %v4208 = vand.u32 %v4091, 2147483648
      %v4209 = vor.u32 1.1754944e-38, %v4208
      %v4210 = vsel %vm4207, %v4209, %v4205
      %v4211 = vmul.f32 1.0, %v4210
      %v4212 = vrcp.pop %v4092
      %v4213 = vmul.f32 %v4092, %v4212
      %v4214 = vsub.f32 1.0, %v4213
      %v4215 = vmul.f32 %v4212, %v4214
      %v4216 = vadd.f32 %v4212, %v4215
      %vm4217 = vweird.f32 %v4092
      %vm4218 = vweird.f32 %v4212
      %vm4219 = vmor %vm4217, %vm4218
      %v4220 = vsel %vm4219, %v4212, %v4216
      %v4221 = vand.u32 2147483647, %v4092
      %vm4222 = vcmp.eq.f32.partialorder %v4221, 8.507059e+37
      %v4223 = vand.u32 %v4092, 2147483648
      %v4224 = vor.u32 1.1754944e-38, %v4223
      %v4225 = vsel %vm4222, %v4224, %v4220
      %v4226 = vmul.f32 1.0, %v4225
      %v4227 = vrcp.pop %v4093
      %v4228 = vmul.f32 %v4093, %v4227
      %v4229 = vsub.f32 1.0, %v4228
      %v4230 = vmul.f32 %v4227, %v4229
      %v4231 = vadd.f32 %v4227, %v4230
      %vm4232 = vweird.f32 %v4093
      %vm4233 = vweird.f32 %v4227
      %vm4234 = vmor %vm4232, %vm4233
      %v4235 = vsel %vm4234, %v4227, %v4231
      %v4236 = vand.u32 2147483647, %v4093
      %vm4237 = vcmp.eq.f32.partialorder %v4236, 8.507059e+37
      %v4238 = vand.u32 %v4093, 2147483648
      %v4239 = vor.u32 1.1754944e-38, %v4238
      %v4240 = vsel %vm4237, %v4239, %v4235
      %v4241 = vmul.f32 1.0, %v4240
      %v4242 = vrcp.pop %v4094
      %v4243 = vmul.f32 %v4094, %v4242
      %v4244 = vsub.f32 1.0, %v4243
      %v4245 = vmul.f32 %v4242, %v4244
      %v4246 = vadd.f32 %v4242, %v4245
      %vm4247 = vweird.f32 %v4094
      %vm4248 = vweird.f32 %v4242
      %vm4249 = vmor %vm4247, %vm4248
      %v4250 = vsel %vm4249, %v4242, %v4246
      %v4251 = vand.u32 2147483647, %v4094
      %vm4252 = vcmp.eq.f32.partialorder %v4251, 8.507059e+37
      %v4253 = vand.u32 %v4094, 2147483648
      %v4254 = vor.u32 1.1754944e-38, %v4253
      %v4255 = vsel %vm4252, %v4254, %v4250
      %v4256 = vmul.f32 1.0, %v4255
      %v4257 = vrcp.pop %v4095
      %v4258 = vmul.f32 %v4095, %v4257
      %v4259 = vsub.f32 1.0, %v4258
      %v4260 = vmul.f32 %v4257, %v4259
      %v4261 = vadd.f32 %v4257, %v4260
      %vm4262 = vweird.f32 %v4095
      %vm4263 = vweird.f32 %v4257
      %vm4264 = vmor %vm4262, %vm4263
      %v4265 = vsel %vm4264, %v4257, %v4261
      %v4266 = vand.u32 2147483647, %v4095
      %vm4267 = vcmp.eq.f32.partialorder %v4266, 8.507059e+37
      %v4268 = vand.u32 %v4095, 2147483648
      %v4269 = vor.u32 1.1754944e-38, %v4268
      %v4270 = vsel %vm4267, %v4269, %v4265
      %v4271 = vmul.f32 1.0, %v4270
      %v4272 = vrcp.pop %v4096
      %v4273 = vmul.f32 %v4096, %v4272
      %v4274 = vsub.f32 1.0, %v4273
      %v4275 = vmul.f32 %v4272, %v4274
      %v4276 = vadd.f32 %v4272, %v4275
      %vm4277 = vweird.f32 %v4096
      %vm4278 = vweird.f32 %v4272
      %vm4279 = vmor %vm4277, %vm4278
      %v4280 = vsel %vm4279, %v4272, %v4276
      %v4281 = vand.u32 2147483647, %v4096
      %vm4282 = vcmp.eq.f32.partialorder %v4281, 8.507059e+37
      %v4283 = vand.u32 %v4096, 2147483648
      %v4284 = vor.u32 1.1754944e-38, %v4283
      %v4285 = vsel %vm4282, %v4284, %v4280
      %v4286 = vmul.f32 1.0, %v4285
      %v4287 = vrcp.pop %v4097
      %v4288 = vmul.f32 %v4097, %v4287
      %v4289 = vsub.f32 1.0, %v4288
      %v4290 = vmul.f32 %v4287, %v4289
      %v4291 = vadd.f32 %v4287, %v4290
      %vm4292 = vweird.f32 %v4097
      %vm4293 = vweird.f32 %v4287
      %vm4294 = vmor %vm4292, %vm4293
      %v4295 = vsel %vm4294, %v4287, %v4291
      %v4296 = vand.u32 2147483647, %v4097
      %vm4297 = vcmp.eq.f32.partialorder %v4296, 8.507059e+37
      %v4298 = vand.u32 %v4097, 2147483648
      %v4299 = vor.u32 1.1754944e-38, %v4298
      %v4300 = vsel %vm4297, %v4299, %v4295
      %v4301 = vmul.f32 1.0, %v4300
      %v4302 = vrcp.pop %v4098
      %v4303 = vmul.f32 %v4098, %v4302
      %v4304 = vsub.f32 1.0, %v4303
      %v4305 = vmul.f32 %v4302, %v4304
      %v4306 = vadd.f32 %v4302, %v4305
      %vm4307 = vweird.f32 %v4098
      %vm4308 = vweird.f32 %v4302
      %vm4309 = vmor %vm4307, %vm4308
      %v4310 = vsel %vm4309, %v4302, %v4306
      %v4311 = vand.u32 2147483647, %v4098
      %vm4312 = vcmp.eq.f32.partialorder %v4311, 8.507059e+37
      %v4313 = vand.u32 %v4098, 2147483648
      %v4314 = vor.u32 1.1754944e-38, %v4313
      %v4315 = vsel %vm4312, %v4314, %v4310
      %v4316 = vmul.f32 1.0, %v4315
      %v4317 = vrcp.pop %v4099
      %v4318 = vmul.f32 %v4099, %v4317
      %v4319 = vsub.f32 1.0, %v4318
      %v4320 = vmul.f32 %v4317, %v4319
      %v4321 = vadd.f32 %v4317, %v4320
      %vm4322 = vweird.f32 %v4099
      %vm4323 = vweird.f32 %v4317
      %vm4324 = vmor %vm4322, %vm4323
      %v4325 = vsel %vm4324, %v4317, %v4321
      %v4326 = vand.u32 2147483647, %v4099
      %vm4327 = vcmp.eq.f32.partialorder %v4326, 8.507059e+37
      %v4328 = vand.u32 %v4099, 2147483648
      %v4329 = vor.u32 1.1754944e-38, %v4328
      %v4330 = vsel %vm4327, %v4329, %v4325
      %v4331 = vmul.f32 1.0, %v4330
      %v4332 = vrcp.pop %v4100
      %v4333 = vmul.f32 %v4100, %v4332
      %v4334 = vsub.f32 1.0, %v4333
      %v4335 = vmul.f32 %v4332, %v4334
      %v4336 = vadd.f32 %v4332, %v4335
      %vm4337 = vweird.f32 %v4100
      %vm4338 = vweird.f32 %v4332
      %vm4339 = vmor %vm4337, %vm4338
      %v4340 = vsel %vm4339, %v4332, %v4336
      %v4341 = vand.u32 2147483647, %v4100
      %vm4342 = vcmp.eq.f32.partialorder %v4341, 8.507059e+37
      %v4343 = vand.u32 %v4100, 2147483648
      %v4344 = vor.u32 1.1754944e-38, %v4343
      %v4345 = vsel %vm4342, %v4344, %v4340
      %v4346 = vmul.f32 1.0, %v4345
      %v4347 = vrcp.pop %v4101
      %v4348 = vmul.f32 %v4101, %v4347
      %v4349 = vsub.f32 1.0, %v4348
      %v4350 = vmul.f32 %v4347, %v4349
      %v4351 = vadd.f32 %v4347, %v4350
      %vm4352 = vweird.f32 %v4101
      %vm4353 = vweird.f32 %v4347
      %vm4354 = vmor %vm4352, %vm4353
      %v4355 = vsel %vm4354, %v4347, %v4351
      %v4356 = vand.u32 2147483647, %v4101
      %vm4357 = vcmp.eq.f32.partialorder %v4356, 8.507059e+37
      %v4358 = vand.u32 %v4101, 2147483648
      %v4359 = vor.u32 1.1754944e-38, %v4358
      %v4360 = vsel %vm4357, %v4359, %v4355
      %v4361 = vmul.f32 1.0, %v4360
      %v4362 = vrcp.pop %v4102
      %v4363 = vmul.f32 %v4102, %v4362
      %v4364 = vsub.f32 1.0, %v4363
      %v4365 = vmul.f32 %v4362, %v4364
      %v4366 = vadd.f32 %v4362, %v4365
      %vm4367 = vweird.f32 %v4102
      %vm4368 = vweird.f32 %v4362
      %vm4369 = vmor %vm4367, %vm4368
      %v4370 = vsel %vm4369, %v4362, %v4366
      %v4371 = vand.u32 2147483647, %v4102
      %vm4372 = vcmp.eq.f32.partialorder %v4371, 8.507059e+37
      %v4373 = vand.u32 %v4102, 2147483648
      %v4374 = vor.u32 1.1754944e-38, %v4373
      %v4375 = vsel %vm4372, %v4374, %v4370
      %v4376 = vmul.f32 1.0, %v4375
      %v4377 = vrcp.pop %v4103
      %v4378 = vmul.f32 %v4103, %v4377
      %v4379 = vsub.f32 1.0, %v4378
      %v4380 = vmul.f32 %v4377, %v4379
      %v4381 = vadd.f32 %v4377, %v4380
      %vm4382 = vweird.f32 %v4103
      %vm4383 = vweird.f32 %v4377
      %vm4384 = vmor %vm4382, %vm4383
      %v4385 = vsel %vm4384, %v4377, %v4381
      %v4386 = vand.u32 2147483647, %v4103
      %vm4387 = vcmp.eq.f32.partialorder %v4386, 8.507059e+37
      %v4388 = vand.u32 %v4103, 2147483648
      %v4389 = vor.u32 1.1754944e-38, %v4388
      %v4390 = vsel %vm4387, %v4389, %v4385
      %v4391 = vmul.f32 1.0, %v4390
      %v4392 = vrcp.pop %v4104
      %v4393 = vmul.f32 %v4104, %v4392
      %v4394 = vsub.f32 1.0, %v4393
      %v4395 = vmul.f32 %v4392, %v4394
      %v4396 = vadd.f32 %v4392, %v4395
      %vm4397 = vweird.f32 %v4104
      %vm4398 = vweird.f32 %v4392
      %vm4399 = vmor %vm4397, %vm4398
      %v4400 = vsel %vm4399, %v4392, %v4396
      %v4401 = vand.u32 2147483647, %v4104
      %vm4402 = vcmp.eq.f32.partialorder %v4401, 8.507059e+37
      %v4403 = vand.u32 %v4104, 2147483648
      %v4404 = vor.u32 1.1754944e-38, %v4403
      %v4405 = vsel %vm4402, %v4404, %v4400
      %v4406 = vmul.f32 1.0, %v4405
      %v4407 = vrcp.pop %v4105
      %v4408 = vmul.f32 %v4105, %v4407
      %v4409 = vsub.f32 1.0, %v4408
      %v4410 = vmul.f32 %v4407, %v4409
      %v4411 = vadd.f32 %v4407, %v4410
      %vm4412 = vweird.f32 %v4105
      %vm4413 = vweird.f32 %v4407
      %vm4414 = vmor %vm4412, %vm4413
      %v4415 = vsel %vm4414, %v4407, %v4411
      %v4416 = vand.u32 2147483647, %v4105
      %vm4417 = vcmp.eq.f32.partialorder %v4416, 8.507059e+37
      %v4418 = vand.u32 %v4105, 2147483648
      %v4419 = vor.u32 1.1754944e-38, %v4418
      %v4420 = vsel %vm4417, %v4419, %v4415
      %v4421 = vmul.f32 1.0, %v4420
      %v4422 = vrcp.pop %v4106
      %v4423 = vmul.f32 %v4106, %v4422
      %v4424 = vsub.f32 1.0, %v4423
      %v4425 = vmul.f32 %v4422, %v4424
      %v4426 = vadd.f32 %v4422, %v4425
      %vm4427 = vweird.f32 %v4106
      %vm4428 = vweird.f32 %v4422
      %vm4429 = vmor %vm4427, %vm4428
      %v4430 = vsel %vm4429, %v4422, %v4426
      %v4431 = vand.u32 2147483647, %v4106
      %vm4432 = vcmp.eq.f32.partialorder %v4431, 8.507059e+37
      %v4433 = vand.u32 %v4106, 2147483648
      %v4434 = vor.u32 1.1754944e-38, %v4433
      %v4435 = vsel %vm4432, %v4434, %v4430
      %v4436 = vmul.f32 1.0, %v4435
      %v4437 = vrcp.pop %v4107
      %v4438 = vmul.f32 %v4107, %v4437
      %v4439 = vsub.f32 1.0, %v4438
      %v4440 = vmul.f32 %v4437, %v4439
      %v4441 = vadd.f32 %v4437, %v4440
      %vm4442 = vweird.f32 %v4107
      %vm4443 = vweird.f32 %v4437
      %vm4444 = vmor %vm4442, %vm4443
      %v4445 = vsel %vm4444, %v4437, %v4441
      %v4446 = vand.u32 2147483647, %v4107
      %vm4447 = vcmp.eq.f32.partialorder %v4446, 8.507059e+37
      %v4448 = vand.u32 %v4107, 2147483648
      %v4449 = vor.u32 1.1754944e-38, %v4448
      %v4450 = vsel %vm4447, %v4449, %v4445
      %v4451 = vmul.f32 1.0, %v4450
      %v4452 = vrcp.pop %v4108
      %v4453 = vmul.f32 %v4108, %v4452
      %v4454 = vsub.f32 1.0, %v4453
      %v4455 = vmul.f32 %v4452, %v4454
      %v4456 = vadd.f32 %v4452, %v4455
      %vm4457 = vweird.f32 %v4108
      %vm4458 = vweird.f32 %v4452
      %vm4459 = vmor %vm4457, %vm4458
      %v4460 = vsel %vm4459, %v4452, %v4456
      %v4461 = vand.u32 2147483647, %v4108
      %vm4462 = vcmp.eq.f32.partialorder %v4461, 8.507059e+37
      %v4463 = vand.u32 %v4108, 2147483648
      %v4464 = vor.u32 1.1754944e-38, %v4463
      %v4465 = vsel %vm4462, %v4464, %v4460
      %v4466 = vmul.f32 1.0, %v4465
      %v4467 = vrcp.pop %v4109
      %v4468 = vmul.f32 %v4109, %v4467
      %v4469 = vsub.f32 1.0, %v4468
      %v4470 = vmul.f32 %v4467, %v4469
      %v4471 = vadd.f32 %v4467, %v4470
      %vm4472 = vweird.f32 %v4109
      %vm4473 = vweird.f32 %v4467
      %vm4474 = vmor %vm4472, %vm4473
      %v4475 = vsel %vm4474, %v4467, %v4471
      %v4476 = vand.u32 2147483647, %v4109
      %vm4477 = vcmp.eq.f32.partialorder %v4476, 8.507059e+37
      %v4478 = vand.u32 %v4109, 2147483648
      %v4479 = vor.u32 1.1754944e-38, %v4478
      %v4480 = vsel %vm4477, %v4479, %v4475
      %v4481 = vmul.f32 1.0, %v4480
      %v4482 = vrcp.pop %v4110
      %v4483 = vmul.f32 %v4110, %v4482
      %v4484 = vsub.f32 1.0, %v4483
      %v4485 = vmul.f32 %v4482, %v4484
      %v4486 = vadd.f32 %v4482, %v4485
      %vm4487 = vweird.f32 %v4110
      %vm4488 = vweird.f32 %v4482
      %vm4489 = vmor %vm4487, %vm4488
      %v4490 = vsel %vm4489, %v4482, %v4486
      %v4491 = vand.u32 2147483647, %v4110
      %vm4492 = vcmp.eq.f32.partialorder %v4491, 8.507059e+37
      %v4493 = vand.u32 %v4110, 2147483648
      %v4494 = vor.u32 1.1754944e-38, %v4493
      %v4495 = vsel %vm4492, %v4494, %v4490
      %v4496 = vmul.f32 1.0, %v4495
      %v4497 = vrcp.pop %v4111
      %v4498 = vmul.f32 %v4111, %v4497
      %v4499 = vsub.f32 1.0, %v4498
      %v4500 = vmul.f32 %v4497, %v4499
      %v4501 = vadd.f32 %v4497, %v4500
      %vm4502 = vweird.f32 %v4111
      %vm4503 = vweird.f32 %v4497
      %vm4504 = vmor %vm4502, %vm4503
      %v4505 = vsel %vm4504, %v4497, %v4501
      %v4506 = vand.u32 2147483647, %v4111
      %vm4507 = vcmp.eq.f32.partialorder %v4506, 8.507059e+37
      %v4508 = vand.u32 %v4111, 2147483648
      %v4509 = vor.u32 1.1754944e-38, %v4508
      %v4510 = vsel %vm4507, %v4509, %v4505
      %v4511 = vmul.f32 1.0, %v4510
      %v4512 = vrcp.pop %v4112
      %v4513 = vmul.f32 %v4112, %v4512
      %v4514 = vsub.f32 1.0, %v4513
      %v4515 = vmul.f32 %v4512, %v4514
      %v4516 = vadd.f32 %v4512, %v4515
      %vm4517 = vweird.f32 %v4112
      %vm4518 = vweird.f32 %v4512
      %vm4519 = vmor %vm4517, %vm4518
      %v4520 = vsel %vm4519, %v4512, %v4516
      %v4521 = vand.u32 2147483647, %v4112
      %vm4522 = vcmp.eq.f32.partialorder %v4521, 8.507059e+37
      %v4523 = vand.u32 %v4112, 2147483648
      %v4524 = vor.u32 1.1754944e-38, %v4523
      %v4525 = vsel %vm4522, %v4524, %v4520
      %v4526 = vmul.f32 1.0, %v4525
      %v4527 = vrcp.pop %v4113
      %v4528 = vmul.f32 %v4113, %v4527
      %v4529 = vsub.f32 1.0, %v4528
      %v4530 = vmul.f32 %v4527, %v4529
      %v4531 = vadd.f32 %v4527, %v4530
      %vm4532 = vweird.f32 %v4113
      %vm4533 = vweird.f32 %v4527
      %vm4534 = vmor %vm4532, %vm4533
      %v4535 = vsel %vm4534, %v4527, %v4531
      %v4536 = vand.u32 2147483647, %v4113
      %vm4537 = vcmp.eq.f32.partialorder %v4536, 8.507059e+37
      %v4538 = vand.u32 %v4113, 2147483648
      %v4539 = vor.u32 1.1754944e-38, %v4538
      %v4540 = vsel %vm4537, %v4539, %v4535
      %v4541 = vmul.f32 1.0, %v4540
      %v4542 = vrcp.pop %v4114
      %v4543 = vmul.f32 %v4114, %v4542
      %v4544 = vsub.f32 1.0, %v4543
      %v4545 = vmul.f32 %v4542, %v4544
      %v4546 = vadd.f32 %v4542, %v4545
      %vm4547 = vweird.f32 %v4114
      %vm4548 = vweird.f32 %v4542
      %vm4549 = vmor %vm4547, %vm4548
      %v4550 = vsel %vm4549, %v4542, %v4546
      %v4551 = vand.u32 2147483647, %v4114
      %vm4552 = vcmp.eq.f32.partialorder %v4551, 8.507059e+37
      %v4553 = vand.u32 %v4114, 2147483648
      %v4554 = vor.u32 1.1754944e-38, %v4553
      %v4555 = vsel %vm4552, %v4554, %v4550
      %v4556 = vmul.f32 1.0, %v4555
      %v4557 = vrcp.pop %v4115
      %v4558 = vmul.f32 %v4115, %v4557
      %v4559 = vsub.f32 1.0, %v4558
      %v4560 = vmul.f32 %v4557, %v4559
      %v4561 = vadd.f32 %v4557, %v4560
      %vm4562 = vweird.f32 %v4115
      %vm4563 = vweird.f32 %v4557
      %vm4564 = vmor %vm4562, %vm4563
      %v4565 = vsel %vm4564, %v4557, %v4561
      %v4566 = vand.u32 2147483647, %v4115
      %vm4567 = vcmp.eq.f32.partialorder %v4566, 8.507059e+37
      %v4568 = vand.u32 %v4115, 2147483648
      %v4569 = vor.u32 1.1754944e-38, %v4568
      %v4570 = vsel %vm4567, %v4569, %v4565
      %v4571 = vmul.f32 1.0, %v4570
      %v4572 = vrcp.pop %v4116
      %v4573 = vmul.f32 %v4116, %v4572
      %v4574 = vsub.f32 1.0, %v4573
      %v4575 = vmul.f32 %v4572, %v4574
      %v4576 = vadd.f32 %v4572, %v4575
      %vm4577 = vweird.f32 %v4116
      %vm4578 = vweird.f32 %v4572
      %vm4579 = vmor %vm4577, %vm4578
      %v4580 = vsel %vm4579, %v4572, %v4576
      %v4581 = vand.u32 2147483647, %v4116
      %vm4582 = vcmp.eq.f32.partialorder %v4581, 8.507059e+37
      %v4583 = vand.u32 %v4116, 2147483648
      %v4584 = vor.u32 1.1754944e-38, %v4583
      %v4585 = vsel %vm4582, %v4584, %v4580
      %v4586 = vmul.f32 1.0, %v4585
      %v4587 = vrcp.pop %v4117
      %v4588 = vmul.f32 %v4117, %v4587
      %v4589 = vsub.f32 1.0, %v4588
      %v4590 = vmul.f32 %v4587, %v4589
      %v4591 = vadd.f32 %v4587, %v4590
      %vm4592 = vweird.f32 %v4117
      %vm4593 = vweird.f32 %v4587
      %vm4594 = vmor %vm4592, %vm4593
      %v4595 = vsel %vm4594, %v4587, %v4591
      %v4596 = vand.u32 2147483647, %v4117
      %vm4597 = vcmp.eq.f32.partialorder %v4596, 8.507059e+37
      %v4598 = vand.u32 %v4117, 2147483648
      %v4599 = vor.u32 1.1754944e-38, %v4598
      %v4600 = vsel %vm4597, %v4599, %v4595
      %v4601 = vmul.f32 1.0, %v4600
      %v4602 = vrcp.pop %v4118
      %v4603 = vmul.f32 %v4118, %v4602
      %v4604 = vsub.f32 1.0, %v4603
      %v4605 = vmul.f32 %v4602, %v4604
      %v4606 = vadd.f32 %v4602, %v4605
      %vm4607 = vweird.f32 %v4118
      %vm4608 = vweird.f32 %v4602
      %vm4609 = vmor %vm4607, %vm4608
      %v4610 = vsel %vm4609, %v4602, %v4606
      %v4611 = vand.u32 2147483647, %v4118
      %vm4612 = vcmp.eq.f32.partialorder %v4611, 8.507059e+37
      %v4613 = vand.u32 %v4118, 2147483648
      %v4614 = vor.u32 1.1754944e-38, %v4613
      %v4615 = vsel %vm4612, %v4614, %v4610
      %v4616 = vmul.f32 1.0, %v4615
      %v4617 = vrcp.pop %v4119
      %v4618 = vmul.f32 %v4119, %v4617
      %v4619 = vsub.f32 1.0, %v4618
      %v4620 = vmul.f32 %v4617, %v4619
      %v4621 = vadd.f32 %v4617, %v4620
      %vm4622 = vweird.f32 %v4119
      %vm4623 = vweird.f32 %v4617
      %vm4624 = vmor %vm4622, %vm4623
      %v4625 = vsel %vm4624, %v4617, %v4621
      %v4626 = vand.u32 2147483647, %v4119
      %vm4627 = vcmp.eq.f32.partialorder %v4626, 8.507059e+37
      %v4628 = vand.u32 %v4119, 2147483648
      %v4629 = vor.u32 1.1754944e-38, %v4628
      %v4630 = vsel %vm4627, %v4629, %v4625
      %v4631 = vmul.f32 1.0, %v4630
      %v4632 = vrcp.pop %v4120
      %v4633 = vmul.f32 %v4120, %v4632
      %v4634 = vsub.f32 1.0, %v4633
      %v4635 = vmul.f32 %v4632, %v4634
      %v4636 = vadd.f32 %v4632, %v4635
      %vm4637 = vweird.f32 %v4120
      %vm4638 = vweird.f32 %v4632
      %vm4639 = vmor %vm4637, %vm4638
      %v4640 = vsel %vm4639, %v4632, %v4636
      %v4641 = vand.u32 2147483647, %v4120
      %vm4642 = vcmp.eq.f32.partialorder %v4641, 8.507059e+37
      %v4643 = vand.u32 %v4120, 2147483648
      %v4644 = vor.u32 1.1754944e-38, %v4643
      %v4645 = vsel %vm4642, %v4644, %v4640
      %v4646 = vmul.f32 1.0, %v4645
      %v4647 = vrcp.pop %v4121
      %v4648 = vmul.f32 %v4121, %v4647
      %v4649 = vsub.f32 1.0, %v4648
      %v4650 = vmul.f32 %v4647, %v4649
      %v4651 = vadd.f32 %v4647, %v4650
      %vm4652 = vweird.f32 %v4121
      %vm4653 = vweird.f32 %v4647
      %vm4654 = vmor %vm4652, %vm4653
      %v4655 = vsel %vm4654, %v4647, %v4651
      %v4656 = vand.u32 2147483647, %v4121
      %vm4657 = vcmp.eq.f32.partialorder %v4656, 8.507059e+37
      %v4658 = vand.u32 %v4121, 2147483648
      %v4659 = vor.u32 1.1754944e-38, %v4658
      %v4660 = vsel %vm4657, %v4659, %v4655
      %v4661 = vmul.f32 1.0, %v4660
      %v4662 = vmul.f32 %v3942, %v4136
      %v4663 = vmul.f32 %v3943, %v4151
      %v4664 = vmul.f32 %v3944, %v4166
      %v4665 = vmul.f32 %v3945, %v4181
      %v4666 = vmul.f32 %v3946, %v4196
      %v4667 = vmul.f32 %v3947, %v4211
      %v4668 = vmul.f32 %v3948, %v4226
      %v4669 = vmul.f32 %v3949, %v4241
      %v4670 = vmul.f32 %v3950, %v4256
      %v4671 = vmul.f32 %v3951, %v4271
      %v4672 = vmul.f32 %v3952, %v4286
      %v4673 = vmul.f32 %v3953, %v4301
      %v4674 = vmul.f32 %v3954, %v4316
      %v4675 = vmul.f32 %v3955, %v4331
      %v4676 = vmul.f32 %v3956, %v4346
      %v4677 = vmul.f32 %v3957, %v4361
      %v4678 = vmul.f32 %v3958, %v4376
      %v4679 = vmul.f32 %v3959, %v4391
      %v4680 = vmul.f32 %v3960, %v4406
      %v4681 = vmul.f32 %v3961, %v4421
      %v4682 = vmul.f32 %v3962, %v4436
      %v4683 = vmul.f32 %v3963, %v4451
      %v4684 = vmul.f32 %v3964, %v4466
      %v4685 = vmul.f32 %v3965, %v4481
      %v4686 = vmul.f32 %v3966, %v4496
      %v4687 = vmul.f32 %v3967, %v4511
      %v4688 = vmul.f32 %v3968, %v4526
      %v4689 = vmul.f32 %v3969, %v4541
      %v4690 = vmul.f32 %v3970, %v4556
      %v4691 = vmul.f32 %v3971, %v4571
      %v4692 = vmul.f32 %v3972, %v4586
      %v4693 = vmul.f32 %v3973, %v4601
      %v4694 = vmul.f32 %v3974, %v4616
      %v4695 = vmul.f32 %v3975, %v4631
      %v4696 = vmul.f32 %v3976, %v4646
      %v4697 = vmul.f32 %v3977, %v4661
      %v4698 = vld [vmem:[%s6] sm:$0xff]
      %v4699 = vld [vmem:[%s6 + $0x8] sm:$0xff]
      %v4700 = vld [vmem:[%s6 + $0x10] sm:$0xff]
      %v4701 = vld [vmem:[%s6 + $0x18] sm:$0xff]
      %v4702 = vld [vmem:[%s6 + $0x20] sm:$0xff]
      %v4703 = vld [vmem:[%s6 + $0x28] sm:$0xff]
      %v4704 = vld [vmem:[%s6 + $0x30] sm:$0xff]
      %v4705 = vld [vmem:[%s6 + $0x38] sm:$0xff]
      %v4706 = vld [vmem:[%s6 + $0x40] sm:$0xff]
      %v4707 = vld [vmem:[%s6 + $0x48] sm:$0xff]
      %v4708 = vld [vmem:[%s6 + $0x50] sm:$0xff]
      %v4709 = vld [vmem:[%s6 + $0x58] sm:$0xff]
      %v4710 = vld [vmem:[%s6 + $0x60] sm:$0xff]
      %v4711 = vld [vmem:[%s6 + $0x68] sm:$0xff]
      %v4712 = vld [vmem:[%s6 + $0x70] sm:$0xff]
      %v4713 = vld [vmem:[%s6 + $0x78] sm:$0xff]
      %v4714 = vld [vmem:[%s6 + $0x80] sm:$0xff]
      %v4715 = vld [vmem:[%s6 + $0x88] sm:$0xff]
      %v4716 = vld [vmem:[%s6 + $0x90] sm:$0xff]
      %v4717 = vld [vmem:[%s6 + $0x98] sm:$0xff]
      %v4718 = vld [vmem:[%s6 + $0xa0] sm:$0xff]
      %v4719 = vld [vmem:[%s6 + $0xa8] sm:$0xff]
      %v4720 = vld [vmem:[%s6 + $0xb0] sm:$0xff]
      %v4721 = vld [vmem:[%s6 + $0xb8] sm:$0xff]
      %v4722 = vld [vmem:[%s6 + $0xc0] sm:$0xff]
      %v4723 = vld [vmem:[%s6 + $0xc8] sm:$0xff]
      %v4724 = vld [vmem:[%s6 + $0xd0] sm:$0xff]
      %v4725 = vld [vmem:[%s6 + $0xd8] sm:$0xff]
      %v4726 = vld [vmem:[%s6 + $0xe0] sm:$0xff]
      %v4727 = vld [vmem:[%s6 + $0xe8] sm:$0xff]
      %v4728 = vld [vmem:[%s6 + $0xf0] sm:$0xff]
      %v4729 = vld [vmem:[%s6 + $0xf8] sm:$0xff]
      %v4730 = vld [vmem:[%s6 + $0x100] sm:$0xff]
      %v4731 = vld [vmem:[%s6 + $0x108] sm:$0xff]
      %v4732 = vld [vmem:[%s6 + $0x110] sm:$0xff]
      %v4733 = vld [vmem:[%s6 + $0x118] sm:$0xff]
      %4735 = vset.pattern.permute.xlu0 0
      %4736 = vperm.xlu0 %4735, %v4698
      %v4737 = vpop.permute.xlu0 %4736
      %4740 = vset.pattern.permute.xlu0 0
      %4741 = vperm.xlu0 %4740, %v4699
      %v4742 = vpop.permute.xlu0 %4741
      %4745 = vset.pattern.permute.xlu0 0
      %4746 = vperm.xlu0 %4745, %v4700
      %v4747 = vpop.permute.xlu0 %4746
      %4750 = vset.pattern.permute.xlu0 0
      %4751 = vperm.xlu0 %4750, %v4701
      %v4752 = vpop.permute.xlu0 %4751
      %4755 = vset.pattern.permute.xlu0 0
      %4756 = vperm.xlu0 %4755, %v4702
      %v4757 = vpop.permute.xlu0 %4756
      %4760 = vset.pattern.permute.xlu0 0
      %4761 = vperm.xlu0 %4760, %v4703
      %v4762 = vpop.permute.xlu0 %4761
      %4765 = vset.pattern.permute.xlu0 0
      %4766 = vperm.xlu0 %4765, %v4704
      %v4767 = vpop.permute.xlu0 %4766
      %4770 = vset.pattern.permute.xlu0 0
      %4771 = vperm.xlu0 %4770, %v4705
      %v4772 = vpop.permute.xlu0 %4771
      %4775 = vset.pattern.permute.xlu0 0
      %4776 = vperm.xlu0 %4775, %v4706
      %v4777 = vpop.permute.xlu0 %4776
      %4780 = vset.pattern.permute.xlu0 0
      %4781 = vperm.xlu0 %4780, %v4707
      %v4782 = vpop.permute.xlu0 %4781
      %4785 = vset.pattern.permute.xlu0 0
      %4786 = vperm.xlu0 %4785, %v4708
      %v4787 = vpop.permute.xlu0 %4786
      %4790 = vset.pattern.permute.xlu0 0
      %4791 = vperm.xlu0 %4790, %v4709
      %v4792 = vpop.permute.xlu0 %4791
      %4795 = vset.pattern.permute.xlu0 0
      %4796 = vperm.xlu0 %4795, %v4710
      %v4797 = vpop.permute.xlu0 %4796
      %4800 = vset.pattern.permute.xlu0 0
      %4801 = vperm.xlu0 %4800, %v4711
      %v4802 = vpop.permute.xlu0 %4801
      %4805 = vset.pattern.permute.xlu0 0
      %4806 = vperm.xlu0 %4805, %v4712
      %v4807 = vpop.permute.xlu0 %4806
      %4810 = vset.pattern.permute.xlu0 0
      %4811 = vperm.xlu0 %4810, %v4713
      %v4812 = vpop.permute.xlu0 %4811
      %4815 = vset.pattern.permute.xlu0 0
      %4816 = vperm.xlu0 %4815, %v4714
      %v4817 = vpop.permute.xlu0 %4816
      %4820 = vset.pattern.permute.xlu0 0
      %4821 = vperm.xlu0 %4820, %v4715
      %v4822 = vpop.permute.xlu0 %4821
      %4825 = vset.pattern.permute.xlu0 0
      %4826 = vperm.xlu0 %4825, %v4716
      %v4827 = vpop.permute.xlu0 %4826
      %4830 = vset.pattern.permute.xlu0 0
      %4831 = vperm.xlu0 %4830, %v4717
      %v4832 = vpop.permute.xlu0 %4831
      %4835 = vset.pattern.permute.xlu0 0
      %4836 = vperm.xlu0 %4835, %v4718
      %v4837 = vpop.permute.xlu0 %4836
      %4840 = vset.pattern.permute.xlu0 0
      %4841 = vperm.xlu0 %4840, %v4719
      %v4842 = vpop.permute.xlu0 %4841
      %4845 = vset.pattern.permute.xlu0 0
      %4846 = vperm.xlu0 %4845, %v4720
      %v4847 = vpop.permute.xlu0 %4846
      %4850 = vset.pattern.permute.xlu0 0
      %4851 = vperm.xlu0 %4850, %v4721
      %v4852 = vpop.permute.xlu0 %4851
      %4855 = vset.pattern.permute.xlu0 0
      %4856 = vperm.xlu0 %4855, %v4722
      %v4857 = vpop.permute.xlu0 %4856
      %4860 = vset.pattern.permute.xlu0 0
      %4861 = vperm.xlu0 %4860, %v4723
      %v4862 = vpop.permute.xlu0 %4861
      %4865 = vset.pattern.permute.xlu0 0
      %4866 = vperm.xlu0 %4865, %v4724
      %v4867 = vpop.permute.xlu0 %4866
      %4870 = vset.pattern.permute.xlu0 0
      %4871 = vperm.xlu0 %4870, %v4725
      %v4872 = vpop.permute.xlu0 %4871
      %4875 = vset.pattern.permute.xlu0 0
      %4876 = vperm.xlu0 %4875, %v4726
      %v4877 = vpop.permute.xlu0 %4876
      %4880 = vset.pattern.permute.xlu0 0
      %4881 = vperm.xlu0 %4880, %v4727
      %v4882 = vpop.permute.xlu0 %4881
      %4885 = vset.pattern.permute.xlu0 0
      %4886 = vperm.xlu0 %4885, %v4728
      %v4887 = vpop.permute.xlu0 %4886
      %4890 = vset.pattern.permute.xlu0 0
      %4891 = vperm.xlu0 %4890, %v4729
      %v4892 = vpop.permute.xlu0 %4891
      %4895 = vset.pattern.permute.xlu0 0
      %4896 = vperm.xlu0 %4895, %v4730
      %v4897 = vpop.permute.xlu0 %4896
      %4900 = vset.pattern.permute.xlu0 0
      %4901 = vperm.xlu0 %4900, %v4731
      %v4902 = vpop.permute.xlu0 %4901
      %4905 = vset.pattern.permute.xlu0 0
      %4906 = vperm.xlu0 %4905, %v4732
      %v4907 = vpop.permute.xlu0 %4906
      %4910 = vset.pattern.permute.xlu0 0
      %4911 = vperm.xlu0 %4910, %v4733
      %v4912 = vpop.permute.xlu0 %4911
      %v4914 = vmul.f32 %v4662, %v4737
      %v4915 = vmul.f32 %v4663, %v4742
      %v4916 = vmul.f32 %v4664, %v4747
      %v4917 = vmul.f32 %v4665, %v4752
      %v4918 = vmul.f32 %v4666, %v4757
      %v4919 = vmul.f32 %v4667, %v4762
      %v4920 = vmul.f32 %v4668, %v4767
      %v4921 = vmul.f32 %v4669, %v4772
      %v4922 = vmul.f32 %v4670, %v4777
      %v4923 = vmul.f32 %v4671, %v4782
      %v4924 = vmul.f32 %v4672, %v4787
      %v4925 = vmul.f32 %v4673, %v4792
      %v4926 = vmul.f32 %v4674, %v4797
      %v4927 = vmul.f32 %v4675, %v4802
      %v4928 = vmul.f32 %v4676, %v4807
      %v4929 = vmul.f32 %v4677, %v4812
      %v4930 = vmul.f32 %v4678, %v4817
      %v4931 = vmul.f32 %v4679, %v4822
      %v4932 = vmul.f32 %v4680, %v4827
      %v4933 = vmul.f32 %v4681, %v4832
      %v4934 = vmul.f32 %v4682, %v4837
      %v4935 = vmul.f32 %v4683, %v4842
      %v4936 = vmul.f32 %v4684, %v4847
      %v4937 = vmul.f32 %v4685, %v4852
      %v4938 = vmul.f32 %v4686, %v4857
      %v4939 = vmul.f32 %v4687, %v4862
      %v4940 = vmul.f32 %v4688, %v4867
      %v4941 = vmul.f32 %v4689, %v4872
      %v4942 = vmul.f32 %v4690, %v4877
      %v4943 = vmul.f32 %v4691, %v4882
      %v4944 = vmul.f32 %v4692, %v4887
      %v4945 = vmul.f32 %v4693, %v4892
      %v4946 = vmul.f32 %v4694, %v4897
      %v4947 = vmul.f32 %v4695, %v4902
      %v4948 = vmul.f32 %v4696, %v4907
      %v4949 = vmul.f32 %v4697, %v4912
      %v4950 = vpack.c.bf16 %v4914, %v4914
      %v4951 = vpack.c.bf16 %v4915, %v4915
      %v4952 = vpack.c.bf16 %v4916, %v4916
      %v4953 = vpack.c.bf16 %v4917, %v4917
      %v4954 = vpack.c.bf16 %v4918, %v4918
      %v4955 = vpack.c.bf16 %v4919, %v4919
      %v4956 = vpack.c.bf16 %v4920, %v4920
      %v4957 = vpack.c.bf16 %v4921, %v4921
      %v4958 = vpack.c.bf16 %v4922, %v4922
      %v4959 = vpack.c.bf16 %v4923, %v4923
      %v4960 = vpack.c.bf16 %v4924, %v4924
      %v4961 = vpack.c.bf16 %v4925, %v4925
      %v4962 = vpack.c.bf16 %v4926, %v4926
      %v4963 = vpack.c.bf16 %v4927, %v4927
      %v4964 = vpack.c.bf16 %v4928, %v4928
      %v4965 = vpack.c.bf16 %v4929, %v4929
      %v4966 = vpack.c.bf16 %v4930, %v4930
      %v4967 = vpack.c.bf16 %v4931, %v4931
      %v4968 = vpack.c.bf16 %v4932, %v4932
      %v4969 = vpack.c.bf16 %v4933, %v4933
      %v4970 = vpack.c.bf16 %v4934, %v4934
      %v4971 = vpack.c.bf16 %v4935, %v4935
      %v4972 = vpack.c.bf16 %v4936, %v4936
      %v4973 = vpack.c.bf16 %v4937, %v4937
      %v4974 = vpack.c.bf16 %v4938, %v4938
      %v4975 = vpack.c.bf16 %v4939, %v4939
      %v4976 = vpack.c.bf16 %v4940, %v4940
      %v4977 = vpack.c.bf16 %v4941, %v4941
      %v4978 = vpack.c.bf16 %v4942, %v4942
      %v4979 = vpack.c.bf16 %v4943, %v4943
      %v4980 = vpack.c.bf16 %v4944, %v4944
      %v4981 = vpack.c.bf16 %v4945, %v4945
      %v4982 = vpack.c.bf16 %v4946, %v4946
      %v4983 = vpack.c.bf16 %v4947, %v4947
      %v4984 = vpack.c.bf16 %v4948, %v4948
      %v4985 = vpack.c.bf16 %v4949, %v4949
      %vm4986 = vcmask 125952
      %4987 = vst.msk [vmem:[%s338] sm:$0xf] %vm4986, %v4950
      %4988 = vst.msk [vmem:[%s338 + $0x4] sm:$0xf] %vm4986, %v4951
      %4989 = vst.msk [vmem:[%s338 + $0x8] sm:$0xf] %vm4986, %v4952
      %4990 = vst.msk [vmem:[%s338 + $0xc] sm:$0xf] %vm4986, %v4953
      %4991 = vst.msk [vmem:[%s338 + $0x10] sm:$0xf] %vm4986, %v4954
      %4992 = vst.msk [vmem:[%s338 + $0x14] sm:$0xf] %vm4986, %v4955
      %4993 = vst.msk [vmem:[%s338 + $0x18] sm:$0xf] %vm4986, %v4956
      %4994 = vst.msk [vmem:[%s338 + $0x1c] sm:$0xf] %vm4986, %v4957
      %4995 = vst.msk [vmem:[%s338 + $0x20] sm:$0xf] %vm4986, %v4958
      %4996 = vst.msk [vmem:[%s338 + $0x24] sm:$0xf] %vm4986, %v4959
      %4997 = vst.msk [vmem:[%s338 + $0x28] sm:$0xf] %vm4986, %v4960
      %4998 = vst.msk [vmem:[%s338 + $0x2c] sm:$0xf] %vm4986, %v4961
      %4999 = vst.msk [vmem:[%s338 + $0x30] sm:$0xf] %vm4986, %v4962
      %5000 = vst.msk [vmem:[%s338 + $0x34] sm:$0xf] %vm4986, %v4963
      %5001 = vst.msk [vmem:[%s338 + $0x38] sm:$0xf] %vm4986, %v4964
      %5002 = vst.msk [vmem:[%s338 + $0x3c] sm:$0xf] %vm4986, %v4965
      %5003 = vst.msk [vmem:[%s338 + $0x40] sm:$0xf] %vm4986, %v4966
      %5004 = vst.msk [vmem:[%s338 + $0x44] sm:$0xf] %vm4986, %v4967
      %5005 = vst.msk [vmem:[%s338 + $0x48] sm:$0xf] %vm4986, %v4968
      %5006 = vst.msk [vmem:[%s338 + $0x4c] sm:$0xf] %vm4986, %v4969
      %5007 = vst.msk [vmem:[%s338 + $0x50] sm:$0xf] %vm4986, %v4970
      %5008 = vst.msk [vmem:[%s338 + $0x54] sm:$0xf] %vm4986, %v4971
      %5009 = vst.msk [vmem:[%s338 + $0x58] sm:$0xf] %vm4986, %v4972
      %5010 = vst.msk [vmem:[%s338 + $0x5c] sm:$0xf] %vm4986, %v4973
      %5011 = vst.msk [vmem:[%s338 + $0x60] sm:$0xf] %vm4986, %v4974
      %5012 = vst.msk [vmem:[%s338 + $0x64] sm:$0xf] %vm4986, %v4975
      %5013 = vst.msk [vmem:[%s338 + $0x68] sm:$0xf] %vm4986, %v4976
      %5014 = vst.msk [vmem:[%s338 + $0x6c] sm:$0xf] %vm4986, %v4977
      %5015 = vst.msk [vmem:[%s338 + $0x70] sm:$0xf] %vm4986, %v4978
      %5016 = vst.msk [vmem:[%s338 + $0x74] sm:$0xf] %vm4986, %v4979
      %5017 = vst.msk [vmem:[%s338 + $0x78] sm:$0xf] %vm4986, %v4980
      %5018 = vst.msk [vmem:[%s338 + $0x7c] sm:$0xf] %vm4986, %v4981
      %5019 = vst.msk [vmem:[%s338 + $0x80] sm:$0xf] %vm4986, %v4982
      %5020 = vst.msk [vmem:[%s338 + $0x84] sm:$0xf] %vm4986, %v4983
      %5021 = vst.msk [vmem:[%s338 + $0x88] sm:$0xf] %vm4986, %v4984
      %5022 = vst.msk [vmem:[%s338 + $0x8c] sm:$0xf] %vm4986, %v4985
      %v5023 = vsel %vm506, %v4914, 0.0
      %v5024 = vsel %vm506, %v4915, 0.0
      %v5025 = vadd.f32 %v5023, %v5024
      %v5026 = vsel %vm506, %v4916, 0.0
      %v5027 = vadd.f32 %v5025, %v5026
      %v5028 = vsel %vm506, %v4917, 0.0
      %v5029 = vadd.f32 %v5027, %v5028
      %v5030 = vsel %vm506, %v4918, 0.0
      %v5031 = vadd.f32 %v5029, %v5030
      %v5032 = vsel %vm506, %v4919, 0.0
      %v5033 = vadd.f32 %v5031, %v5032
      %v5034 = vsel %vm506, %v4920, 0.0
      %v5035 = vadd.f32 %v5033, %v5034
      %v5036 = vsel %vm506, %v4921, 0.0
      %v5037 = vadd.f32 %v5035, %v5036
      %v5038 = vsel %vm506, %v4922, 0.0
      %v5039 = vadd.f32 %v5037, %v5038
      %v5040 = vsel %vm506, %v4923, 0.0
      %v5041 = vadd.f32 %v5039, %v5040
      %v5042 = vsel %vm506, %v4924, 0.0
      %v5043 = vadd.f32 %v5041, %v5042
      %v5044 = vsel %vm506, %v4925, 0.0
      %v5045 = vadd.f32 %v5043, %v5044
      %v5046 = vsel %vm506, %v4926, 0.0
      %v5047 = vadd.f32 %v5045, %v5046
      %v5048 = vsel %vm506, %v4927, 0.0
      %v5049 = vadd.f32 %v5047, %v5048
      %v5050 = vsel %vm506, %v4928, 0.0
      %v5051 = vadd.f32 %v5049, %v5050
      %v5052 = vsel %vm506, %v4929, 0.0
      %v5053 = vadd.f32 %v5051, %v5052
      %v5054 = vsel %vm506, %v4930, 0.0
      %v5055 = vadd.f32 %v5053, %v5054
      %v5056 = vsel %vm506, %v4931, 0.0
      %v5057 = vadd.f32 %v5055, %v5056
      %v5058 = vsel %vm506, %v4932, 0.0
      %v5059 = vadd.f32 %v5057, %v5058
      %v5060 = vsel %vm506, %v4933, 0.0
      %v5061 = vadd.f32 %v5059, %v5060
      %v5062 = vsel %vm506, %v4934, 0.0
      %v5063 = vadd.f32 %v5061, %v5062
      %v5064 = vsel %vm506, %v4935, 0.0
      %v5065 = vadd.f32 %v5063, %v5064
      %v5066 = vsel %vm506, %v4936, 0.0
      %v5067 = vadd.f32 %v5065, %v5066
      %v5068 = vsel %vm506, %v4937, 0.0
      %v5069 = vadd.f32 %v5067, %v5068
      %v5070 = vsel %vm506, %v4938, 0.0
      %v5071 = vadd.f32 %v5069, %v5070
      %v5072 = vsel %vm506, %v4939, 0.0
      %v5073 = vadd.f32 %v5071, %v5072
      %v5074 = vsel %vm506, %v4940, 0.0
      %v5075 = vadd.f32 %v5073, %v5074
      %v5076 = vsel %vm506, %v4941, 0.0
      %v5077 = vadd.f32 %v5075, %v5076
      %v5078 = vsel %vm506, %v4942, 0.0
      %v5079 = vadd.f32 %v5077, %v5078
      %v5080 = vsel %vm506, %v4943, 0.0
      %v5081 = vadd.f32 %v5079, %v5080
      %v5082 = vsel %vm506, %v4944, 0.0
      %v5083 = vadd.f32 %v5081, %v5082
      %v5084 = vsel %vm506, %v4945, 0.0
      %v5085 = vadd.f32 %v5083, %v5084
      %v5086 = vsel %vm506, %v4946, 0.0
      %v5087 = vadd.f32 %v5085, %v5086
      %v5088 = vsel %vm506, %v4947, 0.0
      %v5089 = vadd.f32 %v5087, %v5088
      %v5090 = vsel %vm506, %v4948, 0.0
      %v5091 = vadd.f32 %v5089, %v5090
      %v5092 = vsel %vm506, %v4949, 0.0
      %v5093 = vadd.f32 %v5091, %v5092
      %v5094 = vrot.slane %v5093, 4
      %v5095 = vadd.f32 %v5093, %v5094
      %v5096 = vrot.slane %v5095, 2
      %v5097 = vadd.f32 %v5095, %v5096
      %v5098 = vrot.slane %v5097, 1
      %v5099 = vadd.f32 %v5097, %v5098
      %v5100 = vmul.f32 %v5099, 0.00390625
      %v5101 = vld [vmem:[%s7] sm:$0xff]
      %v5102 = vld [vmem:[%s7 + $0x8] sm:$0xff]
      %v5104 = vsel %vm506, %v5100, 0
      %5106 = vmatpush.msra.mxu0 0.0
      %5107 = vmatpush.msra.mxu0 0.0
      %5108 = vmatpush.msra.mxu0 0.0
      %5109 = vmatpush.msra.mxu0 0.0
      %5110 = vmatpush.msra.mxu0 0.0
      %5111 = vmatpush.msra.mxu0 0.0
      %5112 = vmatpush.msra.mxu0 0.0
      %5113 = vmatpush.msra.mxu0 0.0
      %5114 = vmatpush.msra.mxu0 0.0
      %5115 = vmatpush.msra.mxu0 0.0
      %5116 = vmatpush.msra.mxu0 0.0
      %5117 = vmatpush.msra.mxu0 0.0
      %5118 = vmatpush.msra.mxu0 0.0
      %5119 = vmatpush.msra.mxu0 0.0
      %5120 = vmatpush.msra.mxu0 %v5102
      %5121 = vmatpush.msra.mxu0 %v5101
      %5122 = vmatmul.f32.gmra.mxu0 %v5104
      %v5123 = vpop.f32.mrf.mxu0
      %v5124 = vadd.f32 0.0, %v5123
      %5125 = vdwg.mxu0
      %v5126 = vxor.u32 %v5124, 2147483648
      %v5127 = vmul.f32 %v5126, 1.442695
      %v5128 = vpow.pop %v5127
      %v5129 = vadd.f32 %v5128, 1.0
      %v5130 = vrcp.pop %v5129
      %v5131 = vmul.f32 %v5129, %v5130
      %v5132 = vsub.f32 1.0, %v5131
      %v5133 = vmul.f32 %v5130, %v5132
      %v5134 = vadd.f32 %v5130, %v5133
      %vm5135 = vweird.f32 %v5129
      %vm5136 = vweird.f32 %v5130
      %vm5137 = vmor %vm5135, %vm5136
      %v5138 = vsel %vm5137, %v5130, %v5134
      %v5139 = vand.u32 2147483647, %v5129
      %vm5140 = vcmp.eq.f32.partialorder %v5139, 8.507059e+37
      %v5141 = vand.u32 %v5129, 2147483648
      %v5142 = vor.u32 1.1754944e-38, %v5141
      %v5143 = vsel %vm5140, %v5142, %v5138
      %v5144 = vmul.f32 1.0, %v5143
      %5145 = vst [vmem:[%s341] sm:$0x1] %v5144
      %p5146 = scmp.lt.s32.totalorder %s21, 1
      %s5147 = scalar_select %p5146, %s21, 1
      %s5148 = smul.addr %s5147, 36
      %s5149 = smul.addr %s5148, 4
      %s5150 = scalar_lea.vmem %s8, %s5149
      %p5151 = scmp.lt.s32.totalorder %s21, 1
      %s5152 = scalar_select %p5151, %s21, 1
      %s5153 = scalar_lea.vmem %s9, %s5152
      // Predicated region
      $region53: #{_lambda_.2} parent=51 // pred_check
        %p5154 = pneg %p212
      $region54: #{_lambda_.2} parent=51 // pred_check_branch
        %5156 = sbr.rel (%p5154) target = $region56
      $region55: #{_lambda_.2} parent=51 // pred_region
        _
      $region56: #{_lambda_.2} parent=51 // pred_fallthru
        _
      // Predicated region
      $region57: #{_lambda_.2} parent=51 // pred_check
        %p5157 = pneg %p238
      $region58: #{_lambda_.2} parent=51 // pred_check_branch
        %5159 = sbr.rel (%p5157) target = $region60
      $region59: #{_lambda_.2} parent=51 // pred_region
        _
      $region60: #{_lambda_.2} parent=51 // pred_fallthru
        _
    $region52: #{_lambda_.2} parent=5 // pred_fallthru
      _
    %p5160 = scmp.le.s32.totalorder 2, %s16
    // Predicated region
    $region61: #{_lambda_.2} parent=5 // pred_check
      %p5161 = pneg %p5160
    $region62: #{_lambda_.2} parent=5 // pred_check_branch
      %5163 = sbr.rel (%p5161) target = $region64
    $region63: #{_lambda_.2} parent=5 // pred_region
      %s5164 = ssub.s32 %s16, 2
      // Predicated region
      $region65: #{_lambda_.2} parent=63 // pred_check
        %p5165 = pneg %p218
      $region66: #{_lambda_.2} parent=63 // pred_check_branch
        %5167 = sbr.rel (%p5165) target = $region68
      $region67: #{_lambda_.2} parent=63 // pred_region
        %p5168 = scmp.lt.s32.totalorder %s22, 1
        %s5169 = scalar_select %p5168, %s22, 1
        %s5170 = smul.addr %s5169, 36
        %s5171 = smul.addr %s5170, 4
        %s5172 = scalar_lea.vmem %s8, %s5171
      $region68: #{_lambda_.2} parent=63 // pred_fallthru
        _
      // Predicated region
      $region69: #{_lambda_.2} parent=63 // pred_check
        %p5173 = pneg %p244
      $region70: #{_lambda_.2} parent=63 // pred_check_branch
        %5175 = sbr.rel (%p5173) target = $region72
      $region71: #{_lambda_.2} parent=63 // pred_region
        %p5176 = scmp.lt.s32.totalorder %s22, 1
        %s5177 = scalar_select %p5176, %s22, 1
        %s5178 = scalar_lea.vmem %s9, %s5177
      $region72: #{_lambda_.2} parent=63 // pred_fallthru
        _
    $region64: #{_lambda_.2} parent=5 // pred_fallthru
      _
  $region6: #{_lambda_.2} parent=0 // loop_footer
    %s20 = sadd.s32 1, %s16
  $region7: #{_lambda_.2} parent=0 // loop_footer_branch
    %15 = sbr.rel target = $region3
  $region8: #{_lambda_.2} parent=0 // loop_exit
    _

</llo_original>
